<compile_context>
chip_gen: v7x
topology: tpu7x:2x2x1
jax: 0.10.0
libtpu: 0.0.40
codegen_flags: <defaults>
</compile_context>

<pallas_src>
import functools

import jax
import jax.numpy as jnp
from jax import lax
from jax.experimental import pallas as pl
from jax.experimental.pallas import tpu as pltpu


# ---------------------------------------------------------------------------
# Fused kernel: conv (l==0) -> encoder layer l -> InstanceNorm + NCHW (l==L-1)
# ---------------------------------------------------------------------------
def _bridge_kernel(x_ref, cw_ref, cb_ref,
                   wqkv_ref, bqkv_ref, wout_ref, bout_ref,
                   g1_ref, b1_ref, wff1_ref, bff1_ref,
                   wff2_ref, bff2_ref, g2_ref, b2_ref,
                   o_ref, h_ref, *, num_heads, eps):
    l = pl.program_id(1)
    n_layers = pl.num_programs(1)

    # ---- l == 0: fused 1x1 conv seeds the VMEM-resident activation slab ----
    @pl.when(l == 0)
    def _():
        xt = x_ref[...]                                       # (S, C) f32
        y = jnp.dot(xt.astype(jnp.bfloat16), cw_ref[...],
                    preferred_element_type=jnp.float32)       # (S, E)
        h_ref[...] = y + cb_ref[...]

    h = h_ref[...]                                            # (S, E) f32
    S, E = h.shape
    h_bf = h.astype(jnp.bfloat16)

    # ---- multi-head self-attention (heads padded to 128 lanes) ----
    dhp = wqkv_ref.shape[-1] // 3                             # padded head dim (>=128)

    def head_body(hd, acc):
        qkv = jnp.dot(h_bf, wqkv_ref[hd],
                      preferred_element_type=jnp.float32) + bqkv_ref[hd]   # (S, 3*dhp)
        q = qkv[:, :dhp]                    # 1/sqrt(dh) pre-folded into W_q / b_q
        k = qkv[:, dhp:2 * dhp]
        v = qkv[:, 2 * dhp:]
        s = lax.dot_general(                                  # (S, S); K = dhp = 128
            q.astype(jnp.bfloat16), k.astype(jnp.bfloat16),
            (((1,), (1,)), ((), ())),
            preferred_element_type=jnp.float32)
        m = jnp.max(s, axis=-1, keepdims=True)
        p = jnp.exp(s - m)
        denom = jnp.sum(p, axis=-1, keepdims=True)
        p = p * pl.reciprocal(denom, approx=False)            # exact softmax rows
        ho = jnp.dot(p.astype(jnp.bfloat16), v.astype(jnp.bfloat16),
                     preferred_element_type=jnp.float32)      # (S, dhp)
        return acc + jnp.dot(ho.astype(jnp.bfloat16), wout_ref[hd],
                             preferred_element_type=jnp.float32)           # (S, E)

    attn = lax.fori_loop(0, num_heads, head_body,
                         jnp.zeros((S, E), jnp.float32))
    attn = attn + bout_ref[...]

    # ---- residual + LayerNorm 1 (post-norm) ----
    x1 = h + attn
    mu1 = jnp.mean(x1, axis=-1, keepdims=True)
    d1 = x1 - mu1
    var1 = jnp.mean(d1 * d1, axis=-1, keepdims=True)
    h1 = d1 * lax.rsqrt(var1 + eps) * g1_ref[...] + b1_ref[...]

    # ---- feed-forward (ReLU) ----
    f = jnp.dot(h1.astype(jnp.bfloat16), wff1_ref[...],
                preferred_element_type=jnp.float32) + bff1_ref[...]
    f = jnp.maximum(f, 0.0)
    f = jnp.dot(f.astype(jnp.bfloat16), wff2_ref[...],
                preferred_element_type=jnp.float32) + bff2_ref[...]

    # ---- residual + LayerNorm 2 ----
    x2 = h1 + f
    mu2 = jnp.mean(x2, axis=-1, keepdims=True)
    d2 = x2 - mu2
    var2 = jnp.mean(d2 * d2, axis=-1, keepdims=True)
    h2 = d2 * lax.rsqrt(var2 + eps) * g2_ref[...] + b2_ref[...]

    h_ref[...] = h2                                           # carry to next layer

    # ---- l == L-1: fused InstanceNorm2d + token-major -> NCHW relayout ----
    @pl.when(l == n_layers - 1)
    def _():
        mu = jnp.mean(h2, axis=0, keepdims=True)              # per-channel spatial mean
        d = h2 - mu
        var = jnp.mean(d * d, axis=0, keepdims=True)
        y = d * lax.rsqrt(var + eps)                          # (S, E)
        o_ref[...] = y.T.astype(o_ref.dtype)                  # (E, S) lane-dense store


def _vmem_limit_bytes(C, S, E, F, nh, dhp):
    # double-buffered per-layer weights (bf16) + biases/LN params (f32)
    wbytes = (nh * E * 3 * dhp * 2 + nh * dhp * E * 2 + E * F * 2 + F * E * 2
              + (nh * 3 * dhp + 6 * E + F) * 4)
    io = C * S * 4 + E * S * 4                                 # x block, out block
    live = (S * 3 * dhp + S * S + S * F + 6 * S * E) * 4       # qkv, scores, ffn, temps
    est = 2 * (wbytes + io) + live + S * E * 4 + (C * E * 2 + E * 4)
    return int(max(min(2 * est, 48 * 1024 * 1024), 32 * 1024 * 1024))


# ---------------------------------------------------------------------------
# Forward pass: one fused pallas_call for the whole bridge
# ---------------------------------------------------------------------------
def transformer_bridge_forward(x, kp, *, num_heads, eps=1e-5):
    B, C, H, W = x.shape
    S = H * W
    E = kp["conv_w"].shape[1]
    L = kp["w_qkv"].shape[0]
    F = kp["w_ff1"].shape[-1]
    dhp = kp["w_qkv"].shape[-1] // 3

    def layer_spec(*shape):
        n = len(shape)
        return pl.BlockSpec((None,) + shape, lambda b, l, n=n: (l,) + (0,) * n)

    def const_spec(*shape):
        n = len(shape)
        return pl.BlockSpec(shape, lambda b, l, n=n: (0,) * n)

    kern = functools.partial(_bridge_kernel, num_heads=num_heads, eps=eps)

    out = pl.pallas_call(
        kern,
        out_shape=jax.ShapeDtypeStruct((B, E, S), jnp.float32),
        grid=(B, L),
        in_specs=[
            pl.BlockSpec((None, S, C), lambda b, l: (b, 0, 0)),   # x, pre-arranged (S, C)
            const_spec(C, E), const_spec(1, E),                   # conv weight / bias
            layer_spec(num_heads, E, 3 * dhp),                    # w_qkv (padded heads)
            layer_spec(num_heads, 1, 3 * dhp),                    # b_qkv
            layer_spec(num_heads, dhp, E),                        # w_out (padded rows)
            layer_spec(1, E),                                     # b_out
            layer_spec(1, E), layer_spec(1, E),                   # ln1 gamma / beta
            layer_spec(E, F), layer_spec(1, F),                   # ffn linear1
            layer_spec(F, E), layer_spec(1, E),                   # ffn linear2
            layer_spec(1, E), layer_spec(1, E),                   # ln2 gamma / beta
        ],
        out_specs=pl.BlockSpec((None, E, S), lambda b, l: (b, 0, 0)),
        scratch_shapes=[pltpu.VMEM((S, E), jnp.float32)],          # layer-carried slab
        compiler_params=pltpu.CompilerParams(
            dimension_semantics=("parallel", "arbitrary"),
            vmem_limit_bytes=_vmem_limit_bytes(C, S, E, F, num_heads, dhp),
        ),
    )(jnp.transpose(x.reshape(B, C, S), (0, 2, 1)),
      kp["conv_w"], kp["conv_b"],
      kp["w_qkv"], kp["b_qkv"], kp["w_out"], kp["b_out"],
      kp["ln1_g"], kp["ln1_b"],
      kp["w_ff1"], kp["b_ff1"], kp["w_ff2"], kp["b_ff2"],
      kp["ln2_g"], kp["ln2_b"])
    return out.reshape(B, E, H, W)


# ---------------------------------------------------------------------------
# Parameters: natural (PyTorch-like, math-orientation) shapes, then packed into
# the kernel layout (stacked over layers, heads padded to 128 lanes, bf16).
# ---------------------------------------------------------------------------
def init_params(key, in_channels, embed_dim, num_layers, ff_dim):
    def rnd(k, shape, scale=0.02):
        return scale * jax.random.normal(k, shape, dtype=jnp.float32)

    keys = iter(jax.random.split(key, 2 + num_layers * 8))
    params = {
        "conv_w": rnd(next(keys), (in_channels, embed_dim)),
        "conv_b": rnd(next(keys), (embed_dim,)),
        "layers": [],
    }
    for _ in range(num_layers):
        params["layers"].append({
            "w_qkv": rnd(next(keys), (embed_dim, 3 * embed_dim)),   # columns [Q | K | V]
            "b_qkv": rnd(next(keys), (3 * embed_dim,)),
            "w_out": rnd(next(keys), (embed_dim, embed_dim)),
            "b_out": rnd(next(keys), (embed_dim,)),
            "ln1_g": jnp.ones((embed_dim,), jnp.float32),
            "ln1_b": jnp.zeros((embed_dim,), jnp.float32),
            "w_ff1": rnd(next(keys), (embed_dim, ff_dim)),
            "b_ff1": rnd(next(keys), (ff_dim,)),
            "w_ff2": rnd(next(keys), (ff_dim, embed_dim)),
            "b_ff2": rnd(next(keys), (embed_dim,)),
            "ln2_g": jnp.ones((embed_dim,), jnp.float32),
            "ln2_b": jnp.zeros((embed_dim,), jnp.float32),
        })
    return params


def pack_params(params, *, num_heads):
    conv_w = params["conv_w"]
    _, E = conv_w.shape
    dh = E // num_heads
    dhp = max(128, ((dh + 127) // 128) * 128)          # pad head_dim to 128 lanes
    pad = dhp - dh
    scale = 1.0 / float(dh) ** 0.5

    def split_cols(w):                                 # (E, E) -> (nh, E, dh)
        return jnp.transpose(w.reshape(E, num_heads, dh), (1, 0, 2))

    wqkv, bqkv, wout, bout = [], [], [], []
    g1, b1, wff1, bff1, wff2, bff2, g2, b2 = ([] for _ in range(8))
    for p in params["layers"]:
        w = p["w_qkv"].astype(jnp.float32)
        bias = p["b_qkv"].astype(jnp.float32)
        qh = split_cols(w[:, :E]) * scale              # fold 1/sqrt(dh) into Q
        kh = split_cols(w[:, E:2 * E])
        vh = split_cols(w[:, 2 * E:])
        qh, kh, vh = (jnp.pad(a, ((0, 0), (0, 0), (0, pad))) for a in (qh, kh, vh))
        wqkv.append(jnp.concatenate([qh, kh, vh], axis=-1))        # (nh, E, 3*dhp)

        bqh = bias[:E].reshape(num_heads, dh) * scale
        bkh = bias[E:2 * E].reshape(num_heads, dh)
        bvh = bias[2 * E:].reshape(num_heads, dh)
        bqh, bkh, bvh = (jnp.pad(a, ((0, 0), (0, pad))) for a in (bqh, bkh, bvh))
        bqkv.append(jnp.concatenate([bqh, bkh, bvh], axis=-1)[:, None, :])  # (nh,1,3*dhp)

        wo = p["w_out"].astype(jnp.float32).reshape(num_heads, dh, E)
        wout.append(jnp.pad(wo, ((0, 0), (0, pad), (0, 0))))       # (nh, dhp, E)
        bout.append(p["b_out"].reshape(1, E))

        g1.append(p["ln1_g"].reshape(1, E)); b1.append(p["ln1_b"].reshape(1, E))
        wff1.append(p["w_ff1"]); bff1.append(p["b_ff1"].reshape(1, -1))
        wff2.append(p["w_ff2"]); bff2.append(p["b_ff2"].reshape(1, E))
        g2.append(p["ln2_g"].reshape(1, E)); b2.append(p["ln2_b"].reshape(1, E))

    stack = lambda xs: jnp.stack(xs, axis=0)
    return {
        "conv_w": conv_w.astype(jnp.bfloat16),
        "conv_b": params["conv_b"].reshape(1, E).astype(jnp.float32),
        "w_qkv": stack(wqkv).astype(jnp.bfloat16),
        "b_qkv": stack(bqkv).astype(jnp.float32),
        "w_out": stack(wout).astype(jnp.bfloat16),
        "b_out": stack(bout).astype(jnp.float32),
        "ln1_g": stack(g1), "ln1_b": stack(b1),
        "w_ff1": stack(wff1).astype(jnp.bfloat16),
        "b_ff1": stack(bff1).astype(jnp.float32),
        "w_ff2": stack(wff2).astype(jnp.bfloat16),
        "b_ff2": stack(bff2).astype(jnp.float32),
        "ln2_g": stack(g2), "ln2_b": stack(b2),
    }


# ---------------------------------------------------------------------------
if __name__ == "__main__":
    B, C, H, W = 2, 4, 16, 16
    embed_dim, num_heads, num_layers, ff_dim = 32, 4, 2, 64

    key = jax.random.PRNGKey(0)
    kx, kp = jax.random.split(key)
    x = jax.random.normal(kx, (B, C, H, W), dtype=jnp.float32)
    params = init_params(kp, C, embed_dim, num_layers, ff_dim)
    packed = pack_params(params, num_heads=num_heads)

    fwd = jax.jit(functools.partial(transformer_bridge_forward, num_heads=num_heads))
    out = jax.block_until_ready(fwd(x, packed))

    assert out.shape == (B, embed_dim, H, W), out.shape
    assert bool(jnp.all(jnp.isfinite(out)))
    print("KERNEL_OK")
</pallas_src>

<mosaic_0001>
module attributes {stable_mosaic.version = 11 : i64} {
  func.func @_bridge_kernel(%arg0: i32, %arg1: i32, %arg2: memref<1x256x4xf32, #tpu.memory_space<vmem>>, %arg3: memref<4x32xbf16, #tpu.memory_space<vmem>>, %arg4: memref<1x32xf32, #tpu.memory_space<vmem>>, %arg5: memref<1x4x32x384xbf16, #tpu.memory_space<vmem>>, %arg6: memref<1x4x1x384xf32, #tpu.memory_space<vmem>>, %arg7: memref<1x4x128x32xbf16, #tpu.memory_space<vmem>>, %arg8: memref<1x1x32xf32, #tpu.memory_space<vmem>>, %arg9: memref<1x1x32xf32, #tpu.memory_space<vmem>>, %arg10: memref<1x1x32xf32, #tpu.memory_space<vmem>>, %arg11: memref<1x32x64xbf16, #tpu.memory_space<vmem>>, %arg12: memref<1x1x64xf32, #tpu.memory_space<vmem>>, %arg13: memref<1x64x32xbf16, #tpu.memory_space<vmem>>, %arg14: memref<1x1x32xf32, #tpu.memory_space<vmem>>, %arg15: memref<1x1x32xf32, #tpu.memory_space<vmem>>, %arg16: memref<1x1x32xf32, #tpu.memory_space<vmem>>, %arg17: memref<1x32x256xf32, #tpu.memory_space<vmem>>, %arg18: memref<256x32xf32, #tpu.memory_space<vmem>>) attributes {dimension_semantics = [#tpu.dimension_semantics<parallel>, #tpu.dimension_semantics<arbitrary>], iteration_bounds = array<i64: 2, 2>, scalar_prefetch = 0 : i64, scratch_operands = 1 : i64, tpu.core_type = #tpu.core_type<tc>, window_params = [{transform_indices = @transform_0, window_bounds = array<i64: 1, 256, 4>}, {pipeline_mode = #tpu.pipeline_mode<synchronous>, transform_indices = @transform_1, window_bounds = array<i64: 4, 32>}, {pipeline_mode = #tpu.pipeline_mode<synchronous>, transform_indices = @transform_2, window_bounds = array<i64: 1, 32>}, {transform_indices = @transform_3, window_bounds = array<i64: 1, 4, 32, 384>}, {transform_indices = @transform_4, window_bounds = array<i64: 1, 4, 1, 384>}, {transform_indices = @transform_5, window_bounds = array<i64: 1, 4, 128, 32>}, {transform_indices = @transform_6, window_bounds = array<i64: 1, 1, 32>}, {transform_indices = @transform_7, window_bounds = array<i64: 1, 1, 32>}, {transform_indices = @transform_8, window_bounds = array<i64: 1, 1, 32>}, {transform_indices = @transform_9, window_bounds = array<i64: 1, 32, 64>}, {transform_indices = @transform_10, window_bounds = array<i64: 1, 1, 64>}, {transform_indices = @transform_11, window_bounds = array<i64: 1, 64, 32>}, {transform_indices = @transform_12, window_bounds = array<i64: 1, 1, 32>}, {transform_indices = @transform_13, window_bounds = array<i64: 1, 1, 32>}, {transform_indices = @transform_14, window_bounds = array<i64: 1, 1, 32>}, {transform_indices = @transform_15, window_bounds = array<i64: 1, 32, 256>}]} {
    %c0_i32 = arith.constant 0 : i32
    %0 = arith.cmpi eq, %arg1, %c0_i32 : i32
    %1 = arith.extui %0 : i1 to i32
    %c0_i32_0 = arith.constant 0 : i32
    %2 = arith.cmpi ne, %1, %c0_i32_0 : i32
    scf.if %2 {
      %c0_48 = arith.constant 0 : index
      %c0_49 = arith.constant 0 : index
      %c0_50 = arith.constant 0 : index
      %84 = vector.load %arg2[%c0_48, %c0_49, %c0_50] : memref<1x256x4xf32, #tpu.memory_space<vmem>>, vector<1x256x4xf32>
      %85 = vector.shape_cast %84 : vector<1x256x4xf32> to vector<256x4xf32>
      %86 = arith.truncf %85 : vector<256x4xf32> to vector<256x4xbf16>
      %c0_51 = arith.constant 0 : index
      %c0_52 = arith.constant 0 : index
      %87 = vector.load %arg3[%c0_51, %c0_52] : memref<4x32xbf16, #tpu.memory_space<vmem>>, vector<4x32xbf16>
      %cst_53 = arith.constant dense<0.000000e+00> : vector<256x32xf32>
      %88 = tpu.matmul %86, %87, %cst_53 {dimension_numbers = #tpu.dot_dimension_numbers<[1], [0], [0], [1], [0, 0, 1, 1], [], []>} : vector<256x4xbf16>, vector<4x32xbf16>, vector<256x32xf32> -> vector<256x32xf32>
      %c0_54 = arith.constant 0 : index
      %c0_55 = arith.constant 0 : index
      %89 = vector.load %arg4[%c0_54, %c0_55] : memref<1x32xf32, #tpu.memory_space<vmem>>, vector<1x32xf32>
      %90 = vector.broadcast %89 : vector<1x32xf32> to vector<256x32xf32>
      %91 = arith.addf %88, %90 : vector<256x32xf32>
      %c0_56 = arith.constant 0 : index
      %c0_57 = arith.constant 0 : index
      %92 = vector.load %arg18[%c0_56, %c0_57] : memref<256x32xf32, #tpu.memory_space<vmem>>, vector<256x32xf32>
      tpu.vector_store %arg18[%c0_56, %c0_57], %91 {strides = array<i32>} : memref<256x32xf32, #tpu.memory_space<vmem>>, vector<256x32xf32>,
    } else {
    }
    %c0 = arith.constant 0 : index
    %c0_1 = arith.constant 0 : index
    %3 = vector.load %arg18[%c0, %c0_1] : memref<256x32xf32, #tpu.memory_space<vmem>>, vector<256x32xf32>
    %4 = arith.truncf %3 : vector<256x32xf32> to vector<256x32xbf16>
    %cst = arith.constant 0.000000e+00 : f32
    %5 = vector.broadcast %cst : f32 to vector<256x32xf32>
    %c0_i32_2 = arith.constant 0 : i32
    %c4_i32 = arith.constant 4 : i32
    %6 = arith.addi %c0_i32_2, %c4_i32 : i32
    %c1_i32 = arith.constant 1 : i32
    %7 = scf.for %arg19 = %c0_i32_2 to %6 step %c1_i32 iter_args(%arg20 = %5) -> (vector<256x32xf32>)  : i32 {
      %c0_48 = arith.constant 0 : index
      %84 = arith.index_cast %arg19 : i32 to index
      %c0_49 = arith.constant 0 : index
      %c0_50 = arith.constant 0 : index
      %85 = vector.load %arg5[%c0_48, %84, %c0_49, %c0_50] : memref<1x4x32x384xbf16, #tpu.memory_space<vmem>>, vector<1x1x32x384xbf16>
      %86 = vector.shape_cast %85 : vector<1x1x32x384xbf16> to vector<32x384xbf16>
      %cst_51 = arith.constant dense<0.000000e+00> : vector<256x384xf32>
      %87 = tpu.matmul %4, %86, %cst_51 {dimension_numbers = #tpu.dot_dimension_numbers<[1], [0], [0], [1], [0, 0, 1, 1], [], []>} : vector<256x32xbf16>, vector<32x384xbf16>, vector<256x384xf32> -> vector<256x384xf32>
      %c0_52 = arith.constant 0 : index
      %88 = arith.index_cast %arg19 : i32 to index
      %c0_53 = arith.constant 0 : index
      %c0_54 = arith.constant 0 : index
      %89 = vector.load %arg6[%c0_52, %88, %c0_53, %c0_54] : memref<1x4x1x384xf32, #tpu.memory_space<vmem>>, vector<1x1x1x384xf32>
      %90 = vector.shape_cast %89 : vector<1x1x1x384xf32> to vector<1x384xf32>
      %91 = vector.broadcast %90 : vector<1x384xf32> to vector<256x384xf32>
      %92 = arith.addf %87, %91 : vector<256x384xf32>
      %93 = vector.extract_strided_slice %92 {offsets = [0, 0], sizes = [256, 128], strides = [1, 1]} : vector<256x384xf32> to vector<256x128xf32>
      %94 = vector.extract_strided_slice %92 {offsets = [0, 128], sizes = [256, 128], strides = [1, 1]} : vector<256x384xf32> to vector<256x128xf32>
      %95 = vector.extract_strided_slice %92 {offsets = [0, 256], sizes = [256, 128], strides = [1, 1]} : vector<256x384xf32> to vector<256x128xf32>
      %96 = arith.truncf %93 : vector<256x128xf32> to vector<256x128xbf16>
      %97 = arith.truncf %94 : vector<256x128xf32> to vector<256x128xbf16>
      %cst_55 = arith.constant dense<0.000000e+00> : vector<256x256xf32>
      %98 = tpu.matmul %96, %97, %cst_55 {dimension_numbers = #tpu.dot_dimension_numbers<[1], [1], [0], [0], [0, 0, 1, 0], [], []>} : vector<256x128xbf16>, vector<256x128xbf16>, vector<256x256xf32> -> vector<256x256xf32>
      %cst_56 = arith.constant dense<0xFF800000> : vector<256xf32>
      %99 = vector.multi_reduction <maximumf>, %98, %cst_56 [1] : vector<256x256xf32> to vector<256xf32>
      %100 = vector.shape_cast %99 : vector<256xf32> to vector<256x1xf32>
      %101 = vector.broadcast %100 : vector<256x1xf32> to vector<256x256xf32>
      %102 = arith.subf %98, %101 : vector<256x256xf32>
      %103 = math.exp %102 : vector<256x256xf32>
      %cst_57 = arith.constant dense<0.000000e+00> : vector<256xf32>
      %104 = vector.multi_reduction <add>, %103, %cst_57 [1] : vector<256x256xf32> to vector<256xf32>
      %105 = vector.shape_cast %104 : vector<256xf32> to vector<256x1xf32>
      %106 = tpu.reciprocal %105 : vector<256x1xf32> -> vector<256x1xf32>
      %107 = vector.broadcast %106 : vector<256x1xf32> to vector<256x256xf32>
      %108 = arith.mulf %103, %107 : vector<256x256xf32>
      %109 = arith.truncf %108 : vector<256x256xf32> to vector<256x256xbf16>
      %110 = arith.truncf %95 : vector<256x128xf32> to vector<256x128xbf16>
      %cst_58 = arith.constant dense<0.000000e+00> : vector<256x128xf32>
      %111 = tpu.matmul %109, %110, %cst_58 {dimension_numbers = #tpu.dot_dimension_numbers<[1], [0], [0], [1], [0, 0, 1, 1], [], []>} : vector<256x256xbf16>, vector<256x128xbf16>, vector<256x128xf32> -> vector<256x128xf32>
      %112 = arith.truncf %111 : vector<256x128xf32> to vector<256x128xbf16>
      %c0_59 = arith.constant 0 : index
      %113 = arith.index_cast %arg19 : i32 to index
      %c0_60 = arith.constant 0 : index
      %c0_61 = arith.constant 0 : index
      %114 = vector.load %arg7[%c0_59, %113, %c0_60, %c0_61] : memref<1x4x128x32xbf16, #tpu.memory_space<vmem>>, vector<1x1x128x32xbf16>
      %115 = vector.shape_cast %114 : vector<1x1x128x32xbf16> to vector<128x32xbf16>
      %cst_62 = arith.constant dense<0.000000e+00> : vector<256x32xf32>
      %116 = tpu.matmul %112, %115, %cst_62 {dimension_numbers = #tpu.dot_dimension_numbers<[1], [0], [0], [1], [0, 0, 1, 1], [], []>} : vector<256x128xbf16>, vector<128x32xbf16>, vector<256x32xf32> -> vector<256x32xf32>
      %117 = arith.addf %arg20, %116 : vector<256x32xf32>
      scf.yield %117 : vector<256x32xf32>
    }
    %c4_i32_3 = arith.constant 4 : i32
    %c0_4 = arith.constant 0 : index
    %c0_5 = arith.constant 0 : index
    %c0_6 = arith.constant 0 : index
    %8 = vector.load %arg8[%c0_4, %c0_5, %c0_6] : memref<1x1x32xf32, #tpu.memory_space<vmem>>, vector<1x1x32xf32>
    %9 = vector.shape_cast %8 : vector<1x1x32xf32> to vector<1x32xf32>
    %10 = vector.broadcast %9 : vector<1x32xf32> to vector<256x32xf32>
    %11 = arith.addf %7, %10 : vector<256x32xf32>
    %12 = arith.addf %3, %11 : vector<256x32xf32>
    %cst_7 = arith.constant dense<0.000000e+00> : vector<256xf32>
    %13 = vector.multi_reduction <add>, %12, %cst_7 [1] : vector<256x32xf32> to vector<256xf32>
    %14 = vector.shape_cast %13 : vector<256xf32> to vector<256x1xf32>
    %cst_8 = arith.constant 3.200000e+01 : f32
    %15 = vector.broadcast %cst_8 : f32 to vector<256x1xf32>
    %16 = arith.divf %14, %15 : vector<256x1xf32>
    %17 = vector.broadcast %16 : vector<256x1xf32> to vector<256x32xf32>
    %18 = arith.subf %12, %17 : vector<256x32xf32>
    %19 = arith.mulf %18, %18 : vector<256x32xf32>
    %cst_9 = arith.constant dense<0.000000e+00> : vector<256xf32>
    %20 = vector.multi_reduction <add>, %19, %cst_9 [1] : vector<256x32xf32> to vector<256xf32>
    %21 = vector.shape_cast %20 : vector<256xf32> to vector<256x1xf32>
    %cst_10 = arith.constant 3.200000e+01 : f32
    %22 = vector.broadcast %cst_10 : f32 to vector<256x1xf32>
    %23 = arith.divf %21, %22 : vector<256x1xf32>
    %cst_11 = arith.constant 9.99999974E-6 : f32
    %24 = vector.broadcast %cst_11 : f32 to vector<256x1xf32>
    %25 = arith.addf %23, %24 : vector<256x1xf32>
    %26 = math.rsqrt %25 : vector<256x1xf32>
    %27 = vector.broadcast %26 : vector<256x1xf32> to vector<256x32xf32>
    %28 = arith.mulf %18, %27 : vector<256x32xf32>
    %c0_12 = arith.constant 0 : index
    %c0_13 = arith.constant 0 : index
    %c0_14 = arith.constant 0 : index
    %29 = vector.load %arg9[%c0_12, %c0_13, %c0_14] : memref<1x1x32xf32, #tpu.memory_space<vmem>>, vector<1x1x32xf32>
    %30 = vector.shape_cast %29 : vector<1x1x32xf32> to vector<1x32xf32>
    %31 = vector.broadcast %30 : vector<1x32xf32> to vector<256x32xf32>
    %32 = arith.mulf %28, %31 : vector<256x32xf32>
    %c0_15 = arith.constant 0 : index
    %c0_16 = arith.constant 0 : index
    %c0_17 = arith.constant 0 : index
    %33 = vector.load %arg10[%c0_15, %c0_16, %c0_17] : memref<1x1x32xf32, #tpu.memory_space<vmem>>, vector<1x1x32xf32>
    %34 = vector.shape_cast %33 : vector<1x1x32xf32> to vector<1x32xf32>
    %35 = vector.broadcast %34 : vector<1x32xf32> to vector<256x32xf32>
    %36 = arith.addf %32, %35 : vector<256x32xf32>
    %37 = arith.truncf %36 : vector<256x32xf32> to vector<256x32xbf16>
    %c0_18 = arith.constant 0 : index
    %c0_19 = arith.constant 0 : index
    %c0_20 = arith.constant 0 : index
    %38 = vector.load %arg11[%c0_18, %c0_19, %c0_20] : memref<1x32x64xbf16, #tpu.memory_space<vmem>>, vector<1x32x64xbf16>
    %39 = vector.shape_cast %38 : vector<1x32x64xbf16> to vector<32x64xbf16>
    %cst_21 = arith.constant dense<0.000000e+00> : vector<256x64xf32>
    %40 = tpu.matmul %37, %39, %cst_21 {dimension_numbers = #tpu.dot_dimension_numbers<[1], [0], [0], [1], [0, 0, 1, 1], [], []>} : vector<256x32xbf16>, vector<32x64xbf16>, vector<256x64xf32> -> vector<256x64xf32>
    %c0_22 = arith.constant 0 : index
    %c0_23 = arith.constant 0 : index
    %c0_24 = arith.constant 0 : index
    %41 = vector.load %arg12[%c0_22, %c0_23, %c0_24] : memref<1x1x64xf32, #tpu.memory_space<vmem>>, vector<1x1x64xf32>
    %42 = vector.shape_cast %41 : vector<1x1x64xf32> to vector<1x64xf32>
    %43 = vector.broadcast %42 : vector<1x64xf32> to vector<256x64xf32>
    %44 = arith.addf %40, %43 : vector<256x64xf32>
    %cst_25 = arith.constant 0.000000e+00 : f32
    %45 = vector.broadcast %cst_25 : f32 to vector<256x64xf32>
    %46 = arith.maximumf %44, %45 : vector<256x64xf32>
    %47 = arith.truncf %46 : vector<256x64xf32> to vector<256x64xbf16>
    %c0_26 = arith.constant 0 : index
    %c0_27 = arith.constant 0 : index
    %c0_28 = arith.constant 0 : index
    %48 = vector.load %arg13[%c0_26, %c0_27, %c0_28] : memref<1x64x32xbf16, #tpu.memory_space<vmem>>, vector<1x64x32xbf16>
    %49 = vector.shape_cast %48 : vector<1x64x32xbf16> to vector<64x32xbf16>
    %cst_29 = arith.constant dense<0.000000e+00> : vector<256x32xf32>
    %50 = tpu.matmul %47, %49, %cst_29 {dimension_numbers = #tpu.dot_dimension_numbers<[1], [0], [0], [1], [0, 0, 1, 1], [], []>} : vector<256x64xbf16>, vector<64x32xbf16>, vector<256x32xf32> -> vector<256x32xf32>
    %c0_30 = arith.constant 0 : index
    %c0_31 = arith.constant 0 : index
    %c0_32 = arith.constant 0 : index
    %51 = vector.load %arg14[%c0_30, %c0_31, %c0_32] : memref<1x1x32xf32, #tpu.memory_space<vmem>>, vector<1x1x32xf32>
    %52 = vector.shape_cast %51 : vector<1x1x32xf32> to vector<1x32xf32>
    %53 = vector.broadcast %52 : vector<1x32xf32> to vector<256x32xf32>
    %54 = arith.addf %50, %53 : vector<256x32xf32>
    %55 = arith.addf %36, %54 : vector<256x32xf32>
    %cst_33 = arith.constant dense<0.000000e+00> : vector<256xf32>
    %56 = vector.multi_reduction <add>, %55, %cst_33 [1] : vector<256x32xf32> to vector<256xf32>
    %57 = vector.shape_cast %56 : vector<256xf32> to vector<256x1xf32>
    %cst_34 = arith.constant 3.200000e+01 : f32
    %58 = vector.broadcast %cst_34 : f32 to vector<256x1xf32>
    %59 = arith.divf %57, %58 : vector<256x1xf32>
    %60 = vector.broadcast %59 : vector<256x1xf32> to vector<256x32xf32>
    %61 = arith.subf %55, %60 : vector<256x32xf32>
    %62 = arith.mulf %61, %61 : vector<256x32xf32>
    %cst_35 = arith.constant dense<0.000000e+00> : vector<256xf32>
    %63 = vector.multi_reduction <add>, %62, %cst_35 [1] : vector<256x32xf32> to vector<256xf32>
    %64 = vector.shape_cast %63 : vector<256xf32> to vector<256x1xf32>
    %cst_36 = arith.constant 3.200000e+01 : f32
    %65 = vector.broadcast %cst_36 : f32 to vector<256x1xf32>
    %66 = arith.divf %64, %65 : vector<256x1xf32>
    %cst_37 = arith.constant 9.99999974E-6 : f32
    %67 = vector.broadcast %cst_37 : f32 to vector<256x1xf32>
    %68 = arith.addf %66, %67 : vector<256x1xf32>
    %69 = math.rsqrt %68 : vector<256x1xf32>
    %70 = vector.broadcast %69 : vector<256x1xf32> to vector<256x32xf32>
    %71 = arith.mulf %61, %70 : vector<256x32xf32>
    %c0_38 = arith.constant 0 : index
    %c0_39 = arith.constant 0 : index
    %c0_40 = arith.constant 0 : index
    %72 = vector.load %arg15[%c0_38, %c0_39, %c0_40] : memref<1x1x32xf32, #tpu.memory_space<vmem>>, vector<1x1x32xf32>
    %73 = vector.shape_cast %72 : vector<1x1x32xf32> to vector<1x32xf32>
    %74 = vector.broadcast %73 : vector<1x32xf32> to vector<256x32xf32>
    %75 = arith.mulf %71, %74 : vector<256x32xf32>
    %c0_41 = arith.constant 0 : index
    %c0_42 = arith.constant 0 : index
    %c0_43 = arith.constant 0 : index
    %76 = vector.load %arg16[%c0_41, %c0_42, %c0_43] : memref<1x1x32xf32, #tpu.memory_space<vmem>>, vector<1x1x32xf32>
    %77 = vector.shape_cast %76 : vector<1x1x32xf32> to vector<1x32xf32>
    %78 = vector.broadcast %77 : vector<1x32xf32> to vector<256x32xf32>
    %79 = arith.addf %75, %78 : vector<256x32xf32>
    %c0_44 = arith.constant 0 : index
    %c0_45 = arith.constant 0 : index
    %80 = vector.load %arg18[%c0_44, %c0_45] : memref<256x32xf32, #tpu.memory_space<vmem>>, vector<256x32xf32>
    tpu.vector_store %arg18[%c0_44, %c0_45], %79 {strides = array<i32>} : memref<256x32xf32, #tpu.memory_space<vmem>>, vector<256x32xf32>,
    %c1_i32_46 = arith.constant 1 : i32
    %81 = arith.cmpi eq, %arg1, %c1_i32_46 : i32
    %82 = arith.extui %81 : i1 to i32
    %c0_i32_47 = arith.constant 0 : i32
    %83 = arith.cmpi ne, %82, %c0_i32_47 : i32
    scf.if %83 {
      %cst_48 = arith.constant dense<0.000000e+00> : vector<32xf32>
      %84 = vector.multi_reduction <add>, %79, %cst_48 [0] : vector<256x32xf32> to vector<32xf32>
      %85 = vector.shape_cast %84 : vector<32xf32> to vector<1x32xf32>
      %cst_49 = arith.constant 2.560000e+02 : f32
      %86 = vector.broadcast %cst_49 : f32 to vector<1x32xf32>
      %87 = arith.divf %85, %86 : vector<1x32xf32>
      %88 = vector.broadcast %87 : vector<1x32xf32> to vector<256x32xf32>
      %89 = arith.subf %79, %88 : vector<256x32xf32>
      %90 = arith.mulf %89, %89 : vector<256x32xf32>
      %cst_50 = arith.constant dense<0.000000e+00> : vector<32xf32>
      %91 = vector.multi_reduction <add>, %90, %cst_50 [0] : vector<256x32xf32> to vector<32xf32>
      %92 = vector.shape_cast %91 : vector<32xf32> to vector<1x32xf32>
      %cst_51 = arith.constant 2.560000e+02 : f32
      %93 = vector.broadcast %cst_51 : f32 to vector<1x32xf32>
      %94 = arith.divf %92, %93 : vector<1x32xf32>
      %cst_52 = arith.constant 9.99999974E-6 : f32
      %95 = vector.broadcast %cst_52 : f32 to vector<1x32xf32>
      %96 = arith.addf %94, %95 : vector<1x32xf32>
      %97 = math.rsqrt %96 : vector<1x32xf32>
      %98 = vector.broadcast %97 : vector<1x32xf32> to vector<256x32xf32>
      %99 = arith.mulf %89, %98 : vector<256x32xf32>
      %100 = tpu.transpose %99, [1, 0] : vector<256x32xf32> -> vector<32x256xf32>
      %c0_53 = arith.constant 0 : index
      %c0_54 = arith.constant 0 : index
      %c0_55 = arith.constant 0 : index
      %101 = vector.load %arg17[%c0_53, %c0_54, %c0_55] : memref<1x32x256xf32, #tpu.memory_space<vmem>>, vector<1x32x256xf32>
      %102 = vector.shape_cast %101 : vector<1x32x256xf32> to vector<32x256xf32>
      %103 = vector.shape_cast %100 : vector<32x256xf32> to vector<1x32x256xf32>
      tpu.vector_store %arg17[%c0_53, %c0_54, %c0_55], %103 {strides = array<i32>} : memref<1x32x256xf32, #tpu.memory_space<vmem>>, vector<1x32x256xf32>,
    } else {
    }
    return
  }
  func.func @transform_0(%arg0: i32, %arg1: i32) -> (i32, i32, i32) {
    %c0_i32 = arith.constant 0 : i32
    %c0_i32_0 = arith.constant 0 : i32
    %c0_i32_1 = arith.constant 0 : i32
    return %arg0, %c0_i32, %c0_i32_0 : i32, i32, i32
  }
  func.func @transform_1(%arg0: i32, %arg1: i32) -> (i32, i32) {
    %c0_i32 = arith.constant 0 : i32
    %c0_i32_0 = arith.constant 0 : i32
    %c0_i32_1 = arith.constant 0 : i32
    return %c0_i32, %c0_i32_0 : i32, i32
  }
  func.func @transform_2(%arg0: i32, %arg1: i32) -> (i32, i32) {
    %c0_i32 = arith.constant 0 : i32
    %c0_i32_0 = arith.constant 0 : i32
    %c0_i32_1 = arith.constant 0 : i32
    return %c0_i32, %c0_i32_0 : i32, i32
  }
  func.func @transform_3(%arg0: i32, %arg1: i32) -> (i32, i32, i32, i32) {
    %c0_i32 = arith.constant 0 : i32
    %c0_i32_0 = arith.constant 0 : i32
    %c0_i32_1 = arith.constant 0 : i32
    %c0_i32_2 = arith.constant 0 : i32
    return %arg1, %c0_i32, %c0_i32_0, %c0_i32_1 : i32, i32, i32, i32
  }
  func.func @transform_4(%arg0: i32, %arg1: i32) -> (i32, i32, i32, i32) {
    %c0_i32 = arith.constant 0 : i32
    %c0_i32_0 = arith.constant 0 : i32
    %c0_i32_1 = arith.constant 0 : i32
    %c0_i32_2 = arith.constant 0 : i32
    return %arg1, %c0_i32, %c0_i32_0, %c0_i32_1 : i32, i32, i32, i32
  }
  func.func @transform_5(%arg0: i32, %arg1: i32) -> (i32, i32, i32, i32) {
    %c0_i32 = arith.constant 0 : i32
    %c0_i32_0 = arith.constant 0 : i32
    %c0_i32_1 = arith.constant 0 : i32
    %c0_i32_2 = arith.constant 0 : i32
    return %arg1, %c0_i32, %c0_i32_0, %c0_i32_1 : i32, i32, i32, i32
  }
  func.func @transform_6(%arg0: i32, %arg1: i32) -> (i32, i32, i32) {
    %c0_i32 = arith.constant 0 : i32
    %c0_i32_0 = arith.constant 0 : i32
    %c0_i32_1 = arith.constant 0 : i32
    return %arg1, %c0_i32, %c0_i32_0 : i32, i32, i32
  }
  func.func @transform_7(%arg0: i32, %arg1: i32) -> (i32, i32, i32) {
    %c0_i32 = arith.constant 0 : i32
    %c0_i32_0 = arith.constant 0 : i32
    %c0_i32_1 = arith.constant 0 : i32
    return %arg1, %c0_i32, %c0_i32_0 : i32, i32, i32
  }
  func.func @transform_8(%arg0: i32, %arg1: i32) -> (i32, i32, i32) {
    %c0_i32 = arith.constant 0 : i32
    %c0_i32_0 = arith.constant 0 : i32
    %c0_i32_1 = arith.constant 0 : i32
    return %arg1, %c0_i32, %c0_i32_0 : i32, i32, i32
  }
  func.func @transform_9(%arg0: i32, %arg1: i32) -> (i32, i32, i32) {
    %c0_i32 = arith.constant 0 : i32
    %c0_i32_0 = arith.constant 0 : i32
    %c0_i32_1 = arith.constant 0 : i32
    return %arg1, %c0_i32, %c0_i32_0 : i32, i32, i32
  }
  func.func @transform_10(%arg0: i32, %arg1: i32) -> (i32, i32, i32) {
    %c0_i32 = arith.constant 0 : i32
    %c0_i32_0 = arith.constant 0 : i32
    %c0_i32_1 = arith.constant 0 : i32
    return %arg1, %c0_i32, %c0_i32_0 : i32, i32, i32
  }
  func.func @transform_11(%arg0: i32, %arg1: i32) -> (i32, i32, i32) {
    %c0_i32 = arith.constant 0 : i32
    %c0_i32_0 = arith.constant 0 : i32
    %c0_i32_1 = arith.constant 0 : i32
    return %arg1, %c0_i32, %c0_i32_0 : i32, i32, i32
  }
  func.func @transform_12(%arg0: i32, %arg1: i32) -> (i32, i32, i32) {
    %c0_i32 = arith.constant 0 : i32
    %c0_i32_0 = arith.constant 0 : i32
    %c0_i32_1 = arith.constant 0 : i32
    return %arg1, %c0_i32, %c0_i32_0 : i32, i32, i32
  }
  func.func @transform_13(%arg0: i32, %arg1: i32) -> (i32, i32, i32) {
    %c0_i32 = arith.constant 0 : i32
    %c0_i32_0 = arith.constant 0 : i32
    %c0_i32_1 = arith.constant 0 : i32
    return %arg1, %c0_i32, %c0_i32_0 : i32, i32, i32
  }
  func.func @transform_14(%arg0: i32, %arg1: i32) -> (i32, i32, i32) {
    %c0_i32 = arith.constant 0 : i32
    %c0_i32_0 = arith.constant 0 : i32
    %c0_i32_1 = arith.constant 0 : i32
    return %arg1, %c0_i32, %c0_i32_0 : i32, i32, i32
  }
  func.func @transform_15(%arg0: i32, %arg1: i32) -> (i32, i32, i32) {
    %c0_i32 = arith.constant 0 : i32
    %c0_i32_0 = arith.constant 0 : i32
    %c0_i32_1 = arith.constant 0 : i32
    return %arg0, %c0_i32, %c0_i32_0 : i32, i32, i32
  }
}

</mosaic_0001>

<llo_original>
// kernel: transformer_bridge_forward.1
$region0: #{transformer_bridge_forward.1}
  #allocation0 [shape = 'u32[]', space=smem, size = 0x4, offset = 0x4, fixed_abs, tag = 'smem constant byte address 0x4 - core index']
  #allocation1 [shape = 'u32[144,128]{1,0:T(1,128)}', space=vmem, size = 0x12000, scoped, tag = 'internal scratch']
  #allocation2 [shape = 'f32[256,32]{1,0:T(8,128)}', space=vmem, size = 0x20000, scoped, tag = 'scratch operand']
  %s0 = inlined_call_operand.vmem [shape: f32[2,256,4], index: 0, kind: input, shape index: {}]
  %s1 = inlined_call_operand.vmem [shape: bf16[4,32], index: 1, kind: input, shape index: {}]
  %s2 = inlined_call_operand.vmem [shape: f32[1,32], index: 2, kind: input, shape index: {}]
  %s3 = inlined_call_operand.vmem [shape: bf16[2,4,32,384], index: 3, kind: input, shape index: {}]
  %s4 = inlined_call_operand.vmem [shape: f32[2,4,1,384], index: 4, kind: input, shape index: {}]
  %s5 = inlined_call_operand.vmem [shape: bf16[2,4,128,32], index: 5, kind: input, shape index: {}]
  %s6 = inlined_call_operand.vmem [shape: f32[2,1,32], index: 6, kind: input, shape index: {}]
  %s7 = inlined_call_operand.vmem [shape: f32[2,1,32], index: 7, kind: input, shape index: {}]
  %s8 = inlined_call_operand.vmem [shape: f32[2,1,32], index: 8, kind: input, shape index: {}]
  %s9 = inlined_call_operand.vmem [shape: bf16[2,32,64], index: 9, kind: input, shape index: {}]
  %s10 = inlined_call_operand.vmem [shape: f32[2,1,64], index: 10, kind: input, shape index: {}]
  %s11 = inlined_call_operand.vmem [shape: bf16[2,64,32], index: 11, kind: input, shape index: {}]
  %s12 = inlined_call_operand.vmem [shape: f32[2,1,32], index: 12, kind: input, shape index: {}]
  %s13 = inlined_call_operand.vmem [shape: f32[2,1,32], index: 13, kind: input, shape index: {}]
  %s14 = inlined_call_operand.vmem [shape: f32[2,1,32], index: 14, kind: input, shape index: {}]
  %s15 = inlined_call_operand.vmem [shape: f32[2,32,256], index: 15, kind: output, shape index: {}]
  %s16 = sld [smem:[#allocation0]]
  $region108: #{transformer_bridge_forward.1} parent=0
    _
  %s18 = ssub.s32 1, %s16
  %s19 = scalar_select 0, %s18, %s16
  loop: start=0, step=1, limit=6
  $region2: #{transformer_bridge_forward.1} parent=0 // loop_pre_header
    _
  $region3: #{transformer_bridge_forward.1} parent=0 // loop_header
    %s21 = sphi 0, %s25
    %p22 = scmp.ge.s32.totalorder %s21, 6
    %s28 = sphi 0, %s40
    %s29 = sphi 0, %s36
    %s30 = sphi 0, %s28
    %s31 = sphi 0, %s29
    %s32 = sphi 0, %s30
    %s33 = sphi 0, %s31
    %s43 = sphi 0, %s45
    %s46 = sphi 0, %s43
    %s47 = sphi 0, %s46
    %s63 = sphi 0, %s47
    %s67 = sphi 0, %s67
    %s69 = sphi 0, %s67
    %s70 = sphi 0, %s69
    %s84 = sphi 0, %s70
    %s88 = sphi 0, %s88
    %s90 = sphi 0, %s88
    %s91 = sphi 0, %s90
    %s105 = sphi 0, %s91
    %s111 = sphi 0, %s113
    %s114 = sphi 0, %s111
    %s115 = sphi 0, %s114
    %s131 = sphi 0, %s115
    %s137 = sphi 0, %s139
    %s140 = sphi 0, %s137
    %s141 = sphi 0, %s140
    %s157 = sphi 0, %s141
    %s163 = sphi 0, %s165
    %s166 = sphi 0, %s163
    %s167 = sphi 0, %s166
    %s183 = sphi 0, %s167
    %s189 = sphi 0, %s191
    %s192 = sphi 0, %s189
    %s193 = sphi 0, %s192
    %s209 = sphi 0, %s193
    %s215 = sphi 0, %s217
    %s218 = sphi 0, %s215
    %s219 = sphi 0, %s218
    %s235 = sphi 0, %s219
    %s241 = sphi 0, %s243
    %s244 = sphi 0, %s241
    %s245 = sphi 0, %s244
    %s261 = sphi 0, %s245
    %s267 = sphi 0, %s269
    %s270 = sphi 0, %s267
    %s271 = sphi 0, %s270
    %s287 = sphi 0, %s271
    %s293 = sphi 0, %s295
    %s296 = sphi 0, %s293
    %s297 = sphi 0, %s296
    %s313 = sphi 0, %s297
    %s319 = sphi 0, %s321
    %s322 = sphi 0, %s319
    %s323 = sphi 0, %s322
    %s339 = sphi 0, %s323
    %s345 = sphi 0, %s347
    %s348 = sphi 0, %s345
    %s349 = sphi 0, %s348
    %s365 = sphi 0, %s349
    %s371 = sphi 0, %s373
    %s374 = sphi 0, %s371
    %s375 = sphi 0, %s374
    %s391 = sphi 0, %s375
    %s397 = sphi 0, %s399
    %s400 = sphi 0, %s397
    %s401 = sphi 0, %s400
    %s417 = sphi 0, %s401
    %s423 = sphi 0, %s425
    %s426 = sphi 0, %s423
    %s427 = sphi 0, %s426
    %s443 = sphi 0, %s427
  $region4: #{transformer_bridge_forward.1} parent=0 // loop_header_branch
    %24 = sbr.rel (%p22) target = $region8
  $region5: #{transformer_bridge_forward.1} parent=0 // loop_body
    %s26 = ssub.s32 %s21, 1
    %s27 = ssub.s32 %s21, 2
    %s34 = sadd.s32 1, %s29
    %p35 = scmp.ge.s32.totalorder %s34, 2
    %s36 = scalar_select %p35, 0, %s34
    %s37 = sadd.s32 1, %s28
    %s38 = scalar_select %p35, %s37, %s28
    %p39 = scmp.ge.s32.totalorder %s38, 2
    %s40 = scalar_select %p39, 0, %s38
    %s41 = ssub.s32 %s28, %s40
    %p42 = scmp.eq.s32.totalorder %s41, 0
    %s44 = sadd.s32 %s43, 1
    %s45 = scalar_select %p42, %s43, %s44
    %p48 = pneg %p42
    %p49 = scmp.eq.s32.totalorder %s21, 3
    %p50 = por %p48, %p49
    %p51 = scmp.ne.s32.totalorder %s43, %s46
    %p52 = scmp.eq.s32.totalorder %s21, 0
    %p53 = por %p51, %p52
    %p54 = scmp.ne.s32.totalorder %s43, %s46
    %p55 = scmp.eq.s32.totalorder %s26, 3
    %p56 = por %p54, %p55
    %p57 = scmp.ne.s32.totalorder %s46, %s47
    %p58 = scmp.eq.s32.totalorder %s26, 0
    %p59 = por %p57, %p58
    %p60 = scmp.ne.s32.totalorder %s46, %s47
    %p61 = scmp.eq.s32.totalorder %s27, 3
    %p62 = por %p60, %p61
    %p64 = scmp.ne.s32.totalorder %s47, %s63
    %p65 = scmp.eq.s32.totalorder %s27, 0
    %p66 = por %p64, %p65
    %s68 = sadd.s32 %s67, 1
    %p71 = scmp.eq.s32.totalorder %s21, 3
    %p72 = scmp.ne.s32.totalorder %s67, %s69
    %p73 = scmp.eq.s32.totalorder %s21, 0
    %p74 = por %p72, %p73
    %p75 = scmp.ne.s32.totalorder %s67, %s69
    %p76 = scmp.eq.s32.totalorder %s26, 3
    %p77 = por %p75, %p76
    %p78 = scmp.ne.s32.totalorder %s69, %s70
    %p79 = scmp.eq.s32.totalorder %s26, 0
    %p80 = por %p78, %p79
    %p81 = scmp.ne.s32.totalorder %s69, %s70
    %p82 = scmp.eq.s32.totalorder %s27, 3
    %p83 = por %p81, %p82
    %p85 = scmp.ne.s32.totalorder %s70, %s84
    %p86 = scmp.eq.s32.totalorder %s27, 0
    %p87 = por %p85, %p86
    %s89 = sadd.s32 %s88, 1
    %p92 = scmp.eq.s32.totalorder %s21, 3
    %p93 = scmp.ne.s32.totalorder %s88, %s90
    %p94 = scmp.eq.s32.totalorder %s21, 0
    %p95 = por %p93, %p94
    %p96 = scmp.ne.s32.totalorder %s88, %s90
    %p97 = scmp.eq.s32.totalorder %s26, 3
    %p98 = por %p96, %p97
    %p99 = scmp.ne.s32.totalorder %s90, %s91
    %p100 = scmp.eq.s32.totalorder %s26, 0
    %p101 = por %p99, %p100
    %p102 = scmp.ne.s32.totalorder %s90, %s91
    %p103 = scmp.eq.s32.totalorder %s27, 3
    %p104 = por %p102, %p103
    %p106 = scmp.ne.s32.totalorder %s91, %s105
    %p107 = scmp.eq.s32.totalorder %s27, 0
    %p108 = por %p106, %p107
    %s109 = ssub.s32 %s29, %s36
    %p110 = scmp.eq.s32.totalorder %s109, 0
    %s112 = sadd.s32 %s111, 1
    %s113 = scalar_select %p110, %s111, %s112
    %p116 = pneg %p110
    %p117 = scmp.eq.s32.totalorder %s21, 3
    %p118 = por %p116, %p117
    %p119 = scmp.ne.s32.totalorder %s111, %s114
    %p120 = scmp.eq.s32.totalorder %s21, 0
    %p121 = por %p119, %p120
    %p122 = scmp.ne.s32.totalorder %s111, %s114
    %p123 = scmp.eq.s32.totalorder %s26, 3
    %p124 = por %p122, %p123
    %p125 = scmp.ne.s32.totalorder %s114, %s115
    %p126 = scmp.eq.s32.totalorder %s26, 0
    %p127 = por %p125, %p126
    %p128 = scmp.ne.s32.totalorder %s114, %s115
    %p129 = scmp.eq.s32.totalorder %s27, 3
    %p130 = por %p128, %p129
    %p132 = scmp.ne.s32.totalorder %s115, %s131
    %p133 = scmp.eq.s32.totalorder %s27, 0
    %p134 = por %p132, %p133
    %s135 = ssub.s32 %s29, %s36
    %p136 = scmp.eq.s32.totalorder %s135, 0
    %s138 = sadd.s32 %s137, 1
    %s139 = scalar_select %p136, %s137, %s138
    %p142 = pneg %p136
    %p143 = scmp.eq.s32.totalorder %s21, 3
    %p144 = por %p142, %p143
    %p145 = scmp.ne.s32.totalorder %s137, %s140
    %p146 = scmp.eq.s32.totalorder %s21, 0
    %p147 = por %p145, %p146
    %p148 = scmp.ne.s32.totalorder %s137, %s140
    %p149 = scmp.eq.s32.totalorder %s26, 3
    %p150 = por %p148, %p149
    %p151 = scmp.ne.s32.totalorder %s140, %s141
    %p152 = scmp.eq.s32.totalorder %s26, 0
    %p153 = por %p151, %p152
    %p154 = scmp.ne.s32.totalorder %s140, %s141
    %p155 = scmp.eq.s32.totalorder %s27, 3
    %p156 = por %p154, %p155
    %p158 = scmp.ne.s32.totalorder %s141, %s157
    %p159 = scmp.eq.s32.totalorder %s27, 0
    %p160 = por %p158, %p159
    %s161 = ssub.s32 %s29, %s36
    %p162 = scmp.eq.s32.totalorder %s161, 0
    %s164 = sadd.s32 %s163, 1
    %s165 = scalar_select %p162, %s163, %s164
    %p168 = pneg %p162
    %p169 = scmp.eq.s32.totalorder %s21, 3
    %p170 = por %p168, %p169
    %p171 = scmp.ne.s32.totalorder %s163, %s166
    %p172 = scmp.eq.s32.totalorder %s21, 0
    %p173 = por %p171, %p172
    %p174 = scmp.ne.s32.totalorder %s163, %s166
    %p175 = scmp.eq.s32.totalorder %s26, 3
    %p176 = por %p174, %p175
    %p177 = scmp.ne.s32.totalorder %s166, %s167
    %p178 = scmp.eq.s32.totalorder %s26, 0
    %p179 = por %p177, %p178
    %p180 = scmp.ne.s32.totalorder %s166, %s167
    %p181 = scmp.eq.s32.totalorder %s27, 3
    %p182 = por %p180, %p181
    %p184 = scmp.ne.s32.totalorder %s167, %s183
    %p185 = scmp.eq.s32.totalorder %s27, 0
    %p186 = por %p184, %p185
    %s187 = ssub.s32 %s29, %s36
    %p188 = scmp.eq.s32.totalorder %s187, 0
    %s190 = sadd.s32 %s189, 1
    %s191 = scalar_select %p188, %s189, %s190
    %p194 = pneg %p188
    %p195 = scmp.eq.s32.totalorder %s21, 3
    %p196 = por %p194, %p195
    %p197 = scmp.ne.s32.totalorder %s189, %s192
    %p198 = scmp.eq.s32.totalorder %s21, 0
    %p199 = por %p197, %p198
    %p200 = scmp.ne.s32.totalorder %s189, %s192
    %p201 = scmp.eq.s32.totalorder %s26, 3
    %p202 = por %p200, %p201
    %p203 = scmp.ne.s32.totalorder %s192, %s193
    %p204 = scmp.eq.s32.totalorder %s26, 0
    %p205 = por %p203, %p204
    %p206 = scmp.ne.s32.totalorder %s192, %s193
    %p207 = scmp.eq.s32.totalorder %s27, 3
    %p208 = por %p206, %p207
    %p210 = scmp.ne.s32.totalorder %s193, %s209
    %p211 = scmp.eq.s32.totalorder %s27, 0
    %p212 = por %p210, %p211
    %s213 = ssub.s32 %s29, %s36
    %p214 = scmp.eq.s32.totalorder %s213, 0
    %s216 = sadd.s32 %s215, 1
    %s217 = scalar_select %p214, %s215, %s216
    %p220 = pneg %p214
    %p221 = scmp.eq.s32.totalorder %s21, 3
    %p222 = por %p220, %p221
    %p223 = scmp.ne.s32.totalorder %s215, %s218
    %p224 = scmp.eq.s32.totalorder %s21, 0
    %p225 = por %p223, %p224
    %p226 = scmp.ne.s32.totalorder %s215, %s218
    %p227 = scmp.eq.s32.totalorder %s26, 3
    %p228 = por %p226, %p227
    %p229 = scmp.ne.s32.totalorder %s218, %s219
    %p230 = scmp.eq.s32.totalorder %s26, 0
    %p231 = por %p229, %p230
    %p232 = scmp.ne.s32.totalorder %s218, %s219
    %p233 = scmp.eq.s32.totalorder %s27, 3
    %p234 = por %p232, %p233
    %p236 = scmp.ne.s32.totalorder %s219, %s235
    %p237 = scmp.eq.s32.totalorder %s27, 0
    %p238 = por %p236, %p237
    %s239 = ssub.s32 %s29, %s36
    %p240 = scmp.eq.s32.totalorder %s239, 0
    %s242 = sadd.s32 %s241, 1
    %s243 = scalar_select %p240, %s241, %s242
    %p246 = pneg %p240
    %p247 = scmp.eq.s32.totalorder %s21, 3
    %p248 = por %p246, %p247
    %p249 = scmp.ne.s32.totalorder %s241, %s244
    %p250 = scmp.eq.s32.totalorder %s21, 0
    %p251 = por %p249, %p250
    %p252 = scmp.ne.s32.totalorder %s241, %s244
    %p253 = scmp.eq.s32.totalorder %s26, 3
    %p254 = por %p252, %p253
    %p255 = scmp.ne.s32.totalorder %s244, %s245
    %p256 = scmp.eq.s32.totalorder %s26, 0
    %p257 = por %p255, %p256
    %p258 = scmp.ne.s32.totalorder %s244, %s245
    %p259 = scmp.eq.s32.totalorder %s27, 3
    %p260 = por %p258, %p259
    %p262 = scmp.ne.s32.totalorder %s245, %s261
    %p263 = scmp.eq.s32.totalorder %s27, 0
    %p264 = por %p262, %p263
    %s265 = ssub.s32 %s29, %s36
    %p266 = scmp.eq.s32.totalorder %s265, 0
    %s268 = sadd.s32 %s267, 1
    %s269 = scalar_select %p266, %s267, %s268
    %p272 = pneg %p266
    %p273 = scmp.eq.s32.totalorder %s21, 3
    %p274 = por %p272, %p273
    %p275 = scmp.ne.s32.totalorder %s267, %s270
    %p276 = scmp.eq.s32.totalorder %s21, 0
    %p277 = por %p275, %p276
    %p278 = scmp.ne.s32.totalorder %s267, %s270
    %p279 = scmp.eq.s32.totalorder %s26, 3
    %p280 = por %p278, %p279
    %p281 = scmp.ne.s32.totalorder %s270, %s271
    %p282 = scmp.eq.s32.totalorder %s26, 0
    %p283 = por %p281, %p282
    %p284 = scmp.ne.s32.totalorder %s270, %s271
    %p285 = scmp.eq.s32.totalorder %s27, 3
    %p286 = por %p284, %p285
    %p288 = scmp.ne.s32.totalorder %s271, %s287
    %p289 = scmp.eq.s32.totalorder %s27, 0
    %p290 = por %p288, %p289
    %s291 = ssub.s32 %s29, %s36
    %p292 = scmp.eq.s32.totalorder %s291, 0
    %s294 = sadd.s32 %s293, 1
    %s295 = scalar_select %p292, %s293, %s294
    %p298 = pneg %p292
    %p299 = scmp.eq.s32.totalorder %s21, 3
    %p300 = por %p298, %p299
    %p301 = scmp.ne.s32.totalorder %s293, %s296
    %p302 = scmp.eq.s32.totalorder %s21, 0
    %p303 = por %p301, %p302
    %p304 = scmp.ne.s32.totalorder %s293, %s296
    %p305 = scmp.eq.s32.totalorder %s26, 3
    %p306 = por %p304, %p305
    %p307 = scmp.ne.s32.totalorder %s296, %s297
    %p308 = scmp.eq.s32.totalorder %s26, 0
    %p309 = por %p307, %p308
    %p310 = scmp.ne.s32.totalorder %s296, %s297
    %p311 = scmp.eq.s32.totalorder %s27, 3
    %p312 = por %p310, %p311
    %p314 = scmp.ne.s32.totalorder %s297, %s313
    %p315 = scmp.eq.s32.totalorder %s27, 0
    %p316 = por %p314, %p315
    %s317 = ssub.s32 %s29, %s36
    %p318 = scmp.eq.s32.totalorder %s317, 0
    %s320 = sadd.s32 %s319, 1
    %s321 = scalar_select %p318, %s319, %s320
    %p324 = pneg %p318
    %p325 = scmp.eq.s32.totalorder %s21, 3
    %p326 = por %p324, %p325
    %p327 = scmp.ne.s32.totalorder %s319, %s322
    %p328 = scmp.eq.s32.totalorder %s21, 0
    %p329 = por %p327, %p328
    %p330 = scmp.ne.s32.totalorder %s319, %s322
    %p331 = scmp.eq.s32.totalorder %s26, 3
    %p332 = por %p330, %p331
    %p333 = scmp.ne.s32.totalorder %s322, %s323
    %p334 = scmp.eq.s32.totalorder %s26, 0
    %p335 = por %p333, %p334
    %p336 = scmp.ne.s32.totalorder %s322, %s323
    %p337 = scmp.eq.s32.totalorder %s27, 3
    %p338 = por %p336, %p337
    %p340 = scmp.ne.s32.totalorder %s323, %s339
    %p341 = scmp.eq.s32.totalorder %s27, 0
    %p342 = por %p340, %p341
    %s343 = ssub.s32 %s29, %s36
    %p344 = scmp.eq.s32.totalorder %s343, 0
    %s346 = sadd.s32 %s345, 1
    %s347 = scalar_select %p344, %s345, %s346
    %p350 = pneg %p344
    %p351 = scmp.eq.s32.totalorder %s21, 3
    %p352 = por %p350, %p351
    %p353 = scmp.ne.s32.totalorder %s345, %s348
    %p354 = scmp.eq.s32.totalorder %s21, 0
    %p355 = por %p353, %p354
    %p356 = scmp.ne.s32.totalorder %s345, %s348
    %p357 = scmp.eq.s32.totalorder %s26, 3
    %p358 = por %p356, %p357
    %p359 = scmp.ne.s32.totalorder %s348, %s349
    %p360 = scmp.eq.s32.totalorder %s26, 0
    %p361 = por %p359, %p360
    %p362 = scmp.ne.s32.totalorder %s348, %s349
    %p363 = scmp.eq.s32.totalorder %s27, 3
    %p364 = por %p362, %p363
    %p366 = scmp.ne.s32.totalorder %s349, %s365
    %p367 = scmp.eq.s32.totalorder %s27, 0
    %p368 = por %p366, %p367
    %s369 = ssub.s32 %s29, %s36
    %p370 = scmp.eq.s32.totalorder %s369, 0
    %s372 = sadd.s32 %s371, 1
    %s373 = scalar_select %p370, %s371, %s372
    %p376 = pneg %p370
    %p377 = scmp.eq.s32.totalorder %s21, 3
    %p378 = por %p376, %p377
    %p379 = scmp.ne.s32.totalorder %s371, %s374
    %p380 = scmp.eq.s32.totalorder %s21, 0
    %p381 = por %p379, %p380
    %p382 = scmp.ne.s32.totalorder %s371, %s374
    %p383 = scmp.eq.s32.totalorder %s26, 3
    %p384 = por %p382, %p383
    %p385 = scmp.ne.s32.totalorder %s374, %s375
    %p386 = scmp.eq.s32.totalorder %s26, 0
    %p387 = por %p385, %p386
    %p388 = scmp.ne.s32.totalorder %s374, %s375
    %p389 = scmp.eq.s32.totalorder %s27, 3
    %p390 = por %p388, %p389
    %p392 = scmp.ne.s32.totalorder %s375, %s391
    %p393 = scmp.eq.s32.totalorder %s27, 0
    %p394 = por %p392, %p393
    %s395 = ssub.s32 %s29, %s36
    %p396 = scmp.eq.s32.totalorder %s395, 0
    %s398 = sadd.s32 %s397, 1
    %s399 = scalar_select %p396, %s397, %s398
    %p402 = pneg %p396
    %p403 = scmp.eq.s32.totalorder %s21, 3
    %p404 = por %p402, %p403
    %p405 = scmp.ne.s32.totalorder %s397, %s400
    %p406 = scmp.eq.s32.totalorder %s21, 0
    %p407 = por %p405, %p406
    %p408 = scmp.ne.s32.totalorder %s397, %s400
    %p409 = scmp.eq.s32.totalorder %s26, 3
    %p410 = por %p408, %p409
    %p411 = scmp.ne.s32.totalorder %s400, %s401
    %p412 = scmp.eq.s32.totalorder %s26, 0
    %p413 = por %p411, %p412
    %p414 = scmp.ne.s32.totalorder %s400, %s401
    %p415 = scmp.eq.s32.totalorder %s27, 3
    %p416 = por %p414, %p415
    %p418 = scmp.ne.s32.totalorder %s401, %s417
    %p419 = scmp.eq.s32.totalorder %s27, 0
    %p420 = por %p418, %p419
    %s421 = ssub.s32 %s28, %s40
    %p422 = scmp.eq.s32.totalorder %s421, 0
    %s424 = sadd.s32 %s423, 1
    %s425 = scalar_select %p422, %s423, %s424
    %p428 = pneg %p422
    %p429 = scmp.eq.s32.totalorder %s21, 3
    %p430 = por %p428, %p429
    %p431 = scmp.ne.s32.totalorder %s423, %s426
    %p432 = scmp.eq.s32.totalorder %s21, 0
    %p433 = por %p431, %p432
    %p434 = scmp.ne.s32.totalorder %s423, %s426
    %p435 = scmp.eq.s32.totalorder %s26, 3
    %p436 = por %p434, %p435
    %p437 = scmp.ne.s32.totalorder %s426, %s427
    %p438 = scmp.eq.s32.totalorder %s26, 0
    %p439 = por %p437, %p438
    %p440 = scmp.ne.s32.totalorder %s426, %s427
    %p441 = scmp.eq.s32.totalorder %s27, 3
    %p442 = por %p440, %p441
    %p444 = scmp.ne.s32.totalorder %s427, %s443
    %p445 = scmp.eq.s32.totalorder %s27, 0
    %p446 = por %p444, %p445
    %p447 = scmp.le.s32.totalorder 1, %s21
    %p448 = scmp.lt.s32.totalorder %s21, 5
    %p449 = pnand %p447, %p448
    %p450 = pneg %p449
    // Predicated region
    $region9: #{transformer_bridge_forward.1} parent=5 // pred_check
      _
    $region10: #{transformer_bridge_forward.1} parent=5 // pred_check_branch
      %452 = sbr.rel (%p449) target = $region12
    $region11: #{transformer_bridge_forward.1} parent=5 // pred_region
      %s453 = ssub.s32 %s21, 1
      // Predicated region
      $region13: #{transformer_bridge_forward.1} parent=11 // pred_check
        %p454 = pneg %p80
      $region14: #{transformer_bridge_forward.1} parent=11 // pred_check_branch
        %456 = sbr.rel (%p454) target = $region16
      $region15: #{transformer_bridge_forward.1} parent=11 // pred_region
        _
      $region16: #{transformer_bridge_forward.1} parent=11 // pred_fallthru
        _
      // Predicated region
      $region17: #{transformer_bridge_forward.1} parent=11 // pred_check
        %p457 = pneg %p101
      $region18: #{transformer_bridge_forward.1} parent=11 // pred_check_branch
        %459 = sbr.rel (%p457) target = $region20
      $region19: #{transformer_bridge_forward.1} parent=11 // pred_region
        _
      $region20: #{transformer_bridge_forward.1} parent=11 // pred_fallthru
        _
    $region12: #{transformer_bridge_forward.1} parent=5 // pred_fallthru
      _
    %p460 = scmp.lt.s32.totalorder %s21, 4
    // Predicated region
    $region21: #{transformer_bridge_forward.1} parent=5 // pred_check
      %p461 = pneg %p460
    $region22: #{transformer_bridge_forward.1} parent=5 // pred_check_branch
      %463 = sbr.rel (%p461) target = $region24
    $region23: #{transformer_bridge_forward.1} parent=5 // pred_region
      // Predicated region
      $region25: #{transformer_bridge_forward.1} parent=23 // pred_check
        %p464 = pneg %p53
      $region26: #{transformer_bridge_forward.1} parent=23 // pred_check_branch
        %466 = sbr.rel (%p464) target = $region28
      $region27: #{transformer_bridge_forward.1} parent=23 // pred_region
        %p467 = scmp.lt.s32.totalorder %s28, 1
        %s468 = scalar_select %p467, %s28, 1
        %s469 = smul.addr %s468, 32
        %s470 = smul.addr %s469, 8
        %s471 = scalar_lea.vmem %s0, %s470
      $region28: #{transformer_bridge_forward.1} parent=23 // pred_fallthru
        _
      // Predicated region
      $region29: #{transformer_bridge_forward.1} parent=23 // pred_check
        %p472 = pneg %p121
      $region30: #{transformer_bridge_forward.1} parent=23 // pred_check_branch
        %474 = sbr.rel (%p472) target = $region32
      $region31: #{transformer_bridge_forward.1} parent=23 // pred_region
        %p475 = scmp.lt.s32.totalorder %s29, 1
        %s476 = scalar_select %p475, %s29, 1
        %s477 = smul.addr %s476, 48
        %s478 = smul.addr %s477, 4
        %s479 = scalar_lea.vmem %s3, %s478
      $region32: #{transformer_bridge_forward.1} parent=23 // pred_fallthru
        _
      // Predicated region
      $region33: #{transformer_bridge_forward.1} parent=23 // pred_check
        %p480 = pneg %p147
      $region34: #{transformer_bridge_forward.1} parent=23 // pred_check_branch
        %482 = sbr.rel (%p480) target = $region36
      $region35: #{transformer_bridge_forward.1} parent=23 // pred_region
        %p483 = scmp.lt.s32.totalorder %s29, 1
        %s484 = scalar_select %p483, %s29, 1
        %s485 = smul.addr %s484, 12
        %s486 = scalar_lea.vmem %s4, %s485
      $region36: #{transformer_bridge_forward.1} parent=23 // pred_fallthru
        _
      // Predicated region
      $region37: #{transformer_bridge_forward.1} parent=23 // pred_check
        %p487 = pneg %p173
      $region38: #{transformer_bridge_forward.1} parent=23 // pred_check_branch
        %489 = sbr.rel (%p487) target = $region40
      $region39: #{transformer_bridge_forward.1} parent=23 // pred_region
        %p490 = scmp.lt.s32.totalorder %s29, 1
        %s491 = scalar_select %p490, %s29, 1
        %s492 = smul.addr %s491, 64
        %s493 = smul.addr %s492, 4
        %s494 = scalar_lea.vmem %s5, %s493
      $region40: #{transformer_bridge_forward.1} parent=23 // pred_fallthru
        _
      // Predicated region
      $region41: #{transformer_bridge_forward.1} parent=23 // pred_check
        %p495 = pneg %p199
      $region42: #{transformer_bridge_forward.1} parent=23 // pred_check_branch
        %497 = sbr.rel (%p495) target = $region44
      $region43: #{transformer_bridge_forward.1} parent=23 // pred_region
        %p498 = scmp.lt.s32.totalorder %s29, 1
        %s499 = scalar_select %p498, %s29, 1
        %s500 = scalar_lea.vmem %s6, %s499
      $region44: #{transformer_bridge_forward.1} parent=23 // pred_fallthru
        _
      // Predicated region
      $region45: #{transformer_bridge_forward.1} parent=23 // pred_check
        %p501 = pneg %p225
      $region46: #{transformer_bridge_forward.1} parent=23 // pred_check_branch
        %503 = sbr.rel (%p501) target = $region48
      $region47: #{transformer_bridge_forward.1} parent=23 // pred_region
        %p504 = scmp.lt.s32.totalorder %s29, 1
        %s505 = scalar_select %p504, %s29, 1
        %s506 = scalar_lea.vmem %s7, %s505
      $region48: #{transformer_bridge_forward.1} parent=23 // pred_fallthru
        _
      // Predicated region
      $region49: #{transformer_bridge_forward.1} parent=23 // pred_check
        %p507 = pneg %p251
      $region50: #{transformer_bridge_forward.1} parent=23 // pred_check_branch
        %509 = sbr.rel (%p507) target = $region52
      $region51: #{transformer_bridge_forward.1} parent=23 // pred_region
        %p510 = scmp.lt.s32.totalorder %s29, 1
        %s511 = scalar_select %p510, %s29, 1
        %s512 = scalar_lea.vmem %s8, %s511
      $region52: #{transformer_bridge_forward.1} parent=23 // pred_fallthru
        _
      // Predicated region
      $region53: #{transformer_bridge_forward.1} parent=23 // pred_check
        %p513 = pneg %p277
      $region54: #{transformer_bridge_forward.1} parent=23 // pred_check_branch
        %515 = sbr.rel (%p513) target = $region56
      $region55: #{transformer_bridge_forward.1} parent=23 // pred_region
        %p516 = scmp.lt.s32.totalorder %s29, 1
        %s517 = scalar_select %p516, %s29, 1
        %s518 = smul.addr %s517, 4
        %s519 = smul.addr %s518, 4
        %s520 = scalar_lea.vmem %s9, %s519
      $region56: #{transformer_bridge_forward.1} parent=23 // pred_fallthru
        _
      // Predicated region
      $region57: #{transformer_bridge_forward.1} parent=23 // pred_check
        %p521 = pneg %p303
      $region58: #{transformer_bridge_forward.1} parent=23 // pred_check_branch
        %523 = sbr.rel (%p521) target = $region60
      $region59: #{transformer_bridge_forward.1} parent=23 // pred_region
        %p524 = scmp.lt.s32.totalorder %s29, 1
        %s525 = scalar_select %p524, %s29, 1
        %s526 = scalar_lea.vmem %s10, %s525
      $region60: #{transformer_bridge_forward.1} parent=23 // pred_fallthru
        _
      // Predicated region
      $region61: #{transformer_bridge_forward.1} parent=23 // pred_check
        %p527 = pneg %p329
      $region62: #{transformer_bridge_forward.1} parent=23 // pred_check_branch
        %529 = sbr.rel (%p527) target = $region64
      $region63: #{transformer_bridge_forward.1} parent=23 // pred_region
        %p530 = scmp.lt.s32.totalorder %s29, 1
        %s531 = scalar_select %p530, %s29, 1
        %s532 = smul.addr %s531, 8
        %s533 = smul.addr %s532, 4
        %s534 = scalar_lea.vmem %s11, %s533
      $region64: #{transformer_bridge_forward.1} parent=23 // pred_fallthru
        _
      // Predicated region
      $region65: #{transformer_bridge_forward.1} parent=23 // pred_check
        %p535 = pneg %p355
      $region66: #{transformer_bridge_forward.1} parent=23 // pred_check_branch
        %537 = sbr.rel (%p535) target = $region68
      $region67: #{transformer_bridge_forward.1} parent=23 // pred_region
        %p538 = scmp.lt.s32.totalorder %s29, 1
        %s539 = scalar_select %p538, %s29, 1
        %s540 = scalar_lea.vmem %s12, %s539
      $region68: #{transformer_bridge_forward.1} parent=23 // pred_fallthru
        _
      // Predicated region
      $region69: #{transformer_bridge_forward.1} parent=23 // pred_check
        %p541 = pneg %p381
      $region70: #{transformer_bridge_forward.1} parent=23 // pred_check_branch
        %543 = sbr.rel (%p541) target = $region72
      $region71: #{transformer_bridge_forward.1} parent=23 // pred_region
        %p544 = scmp.lt.s32.totalorder %s29, 1
        %s545 = scalar_select %p544, %s29, 1
        %s546 = scalar_lea.vmem %s13, %s545
      $region72: #{transformer_bridge_forward.1} parent=23 // pred_fallthru
        _
      // Predicated region
      $region73: #{transformer_bridge_forward.1} parent=23 // pred_check
        %p547 = pneg %p407
      $region74: #{transformer_bridge_forward.1} parent=23 // pred_check_branch
        %549 = sbr.rel (%p547) target = $region76
      $region75: #{transformer_bridge_forward.1} parent=23 // pred_region
        %p550 = scmp.lt.s32.totalorder %s29, 1
        %s551 = scalar_select %p550, %s29, 1
        %s552 = scalar_lea.vmem %s14, %s551
      $region76: #{transformer_bridge_forward.1} parent=23 // pred_fallthru
        _
    $region24: #{transformer_bridge_forward.1} parent=5 // pred_fallthru
      _
    %p553 = scmp.le.s32.totalorder 1, %s21
    %p554 = scmp.lt.s32.totalorder %s21, 5
    %p555 = pnand %p553, %p554
    %p556 = pneg %p555
    // Predicated region
    $region77: #{transformer_bridge_forward.1} parent=5 // pred_check
      _
    $region78: #{transformer_bridge_forward.1} parent=5 // pred_check_branch
      %558 = sbr.rel (%p555) target = $region80
    $region79: #{transformer_bridge_forward.1} parent=5 // pred_region
      %s559 = ssub.s32 %s21, 1
      %p560 = scmp.lt.s32.totalorder %s30, 1
      %s561 = scalar_select %p560, %s30, 1
      %s562 = smul.addr %s561, 32
      %s563 = smul.addr %s562, 8
      %s564 = scalar_lea.vmem %s0, %s563
      %p565 = pneg %p59
      %p566 = pneg %p56
      %p567 = pneg %p80
      %p568 = pneg %p77
      %p569 = pneg %p101
      %p570 = pneg %p98
      %p571 = scmp.lt.s32.totalorder %s31, 1
      %s572 = scalar_select %p571, %s31, 1
      %s573 = smul.addr %s572, 48
      %s574 = smul.addr %s573, 4
      %s575 = scalar_lea.vmem %s3, %s574
      %p576 = pneg %p127
      %p577 = pneg %p124
      %p578 = scmp.lt.s32.totalorder %s31, 1
      %s579 = scalar_select %p578, %s31, 1
      %s580 = smul.addr %s579, 12
      %s581 = scalar_lea.vmem %s4, %s580
      %p582 = pneg %p153
      %p583 = pneg %p150
      %p584 = scmp.lt.s32.totalorder %s31, 1
      %s585 = scalar_select %p584, %s31, 1
      %s586 = smul.addr %s585, 64
      %s587 = smul.addr %s586, 4
      %s588 = scalar_lea.vmem %s5, %s587
      %p589 = pneg %p179
      %p590 = pneg %p176
      %p591 = scmp.lt.s32.totalorder %s31, 1
      %s592 = scalar_select %p591, %s31, 1
      %s593 = scalar_lea.vmem %s6, %s592
      %p594 = pneg %p205
      %p595 = pneg %p202
      %p596 = scmp.lt.s32.totalorder %s31, 1
      %s597 = scalar_select %p596, %s31, 1
      %s598 = scalar_lea.vmem %s7, %s597
      %p599 = pneg %p231
      %p600 = pneg %p228
      %p601 = scmp.lt.s32.totalorder %s31, 1
      %s602 = scalar_select %p601, %s31, 1
      %s603 = scalar_lea.vmem %s8, %s602
      %p604 = pneg %p257
      %p605 = pneg %p254
      %p606 = scmp.lt.s32.totalorder %s31, 1
      %s607 = scalar_select %p606, %s31, 1
      %s608 = smul.addr %s607, 4
      %s609 = smul.addr %s608, 4
      %s610 = scalar_lea.vmem %s9, %s609
      %p611 = pneg %p283
      %p612 = pneg %p280
      %p613 = scmp.lt.s32.totalorder %s31, 1
      %s614 = scalar_select %p613, %s31, 1
      %s615 = scalar_lea.vmem %s10, %s614
      %p616 = pneg %p309
      %p617 = pneg %p306
      %p618 = scmp.lt.s32.totalorder %s31, 1
      %s619 = scalar_select %p618, %s31, 1
      %s620 = smul.addr %s619, 8
      %s621 = smul.addr %s620, 4
      %s622 = scalar_lea.vmem %s11, %s621
      %p623 = pneg %p335
      %p624 = pneg %p332
      %p625 = scmp.lt.s32.totalorder %s31, 1
      %s626 = scalar_select %p625, %s31, 1
      %s627 = scalar_lea.vmem %s12, %s626
      %p628 = pneg %p361
      %p629 = pneg %p358
      %p630 = scmp.lt.s32.totalorder %s31, 1
      %s631 = scalar_select %p630, %s31, 1
      %s632 = scalar_lea.vmem %s13, %s631
      %p633 = pneg %p387
      %p634 = pneg %p384
      %p635 = scmp.lt.s32.totalorder %s31, 1
      %s636 = scalar_select %p635, %s31, 1
      %s637 = scalar_lea.vmem %s14, %s636
      %p638 = pneg %p413
      %p639 = pneg %p410
      %p640 = pneg %p439
      %p641 = pneg %p436
      %p642 = scmp.lt.s32.totalorder %s30, 1
      %s643 = scalar_select %p642, %s30, 1
      %s644 = smul.addr %s643, 8
      %s645 = smul.addr %s644, 8
      %s646 = scalar_lea.vmem %s15, %s645
      %p647 = scmp.lt.s32.totalorder %s30, 1
      %s648 = scalar_select %p647, %s30, 1
      %s649 = smul.addr %s648, 32
      %s650 = smul.addr %s649, 8
      %s651 = scalar_lea.vmem %s0, %s650
      %p652 = scmp.lt.s32.totalorder %s31, 1
      %s653 = scalar_select %p652, %s31, 1
      %s654 = smul.addr %s653, 48
      %s655 = smul.addr %s654, 4
      %s656 = scalar_lea.vmem %s3, %s655
      %p657 = scmp.lt.s32.totalorder %s31, 1
      %s658 = scalar_select %p657, %s31, 1
      %s659 = smul.addr %s658, 12
      %s660 = scalar_lea.vmem %s4, %s659
      %p661 = scmp.lt.s32.totalorder %s31, 1
      %s662 = scalar_select %p661, %s31, 1
      %s663 = smul.addr %s662, 64
      %s664 = smul.addr %s663, 4
      %s665 = scalar_lea.vmem %s5, %s664
      %p666 = scmp.lt.s32.totalorder %s31, 1
      %s667 = scalar_select %p666, %s31, 1
      %s668 = scalar_lea.vmem %s6, %s667
      %p669 = scmp.lt.s32.totalorder %s31, 1
      %s670 = scalar_select %p669, %s31, 1
      %s671 = scalar_lea.vmem %s7, %s670
      %p672 = scmp.lt.s32.totalorder %s31, 1
      %s673 = scalar_select %p672, %s31, 1
      %s674 = scalar_lea.vmem %s8, %s673
      %p675 = scmp.lt.s32.totalorder %s31, 1
      %s676 = scalar_select %p675, %s31, 1
      %s677 = smul.addr %s676, 4
      %s678 = smul.addr %s677, 4
      %s679 = scalar_lea.vmem %s9, %s678
      %p680 = scmp.lt.s32.totalorder %s31, 1
      %s681 = scalar_select %p680, %s31, 1
      %s682 = scalar_lea.vmem %s10, %s681
      %p683 = scmp.lt.s32.totalorder %s31, 1
      %s684 = scalar_select %p683, %s31, 1
      %s685 = smul.addr %s684, 8
      %s686 = smul.addr %s685, 4
      %s687 = scalar_lea.vmem %s11, %s686
      %p688 = scmp.lt.s32.totalorder %s31, 1
      %s689 = scalar_select %p688, %s31, 1
      %s690 = scalar_lea.vmem %s12, %s689
      %p691 = scmp.lt.s32.totalorder %s31, 1
      %s692 = scalar_select %p691, %s31, 1
      %s693 = scalar_lea.vmem %s13, %s692
      %p694 = scmp.lt.s32.totalorder %s31, 1
      %s695 = scalar_select %p694, %s31, 1
      %s696 = scalar_lea.vmem %s14, %s695
      %p697 = scmp.lt.s32.totalorder %s30, 1
      %s698 = scalar_select %p697, %s30, 1
      %s699 = smul.addr %s698, 8
      %s700 = smul.addr %s699, 8
      %s701 = scalar_lea.vmem %s15, %s700
      %p703 = scmp.eq.s32.totalorder %s31, 0
      // Predicated region
      $region81: #{transformer_bridge_forward.1} parent=79 // pred_check
        %p704 = pneg %p703
      $region82: #{transformer_bridge_forward.1} parent=79 // pred_check_branch
        %706 = sbr.rel (%p704) target = $region84
      $region83: #{transformer_bridge_forward.1} parent=79 // pred_region
        %v707 = vld [vmem:[%s651] sm:$0xff]
        %v708 = vld [vmem:[%s651 + $0x8] sm:$0xff]
        %v709 = vld [vmem:[%s651 + $0x10] sm:$0xff]
        %v710 = vld [vmem:[%s651 + $0x18] sm:$0xff]
        %v711 = vld [vmem:[%s651 + $0x20] sm:$0xff]
        %v712 = vld [vmem:[%s651 + $0x28] sm:$0xff]
        %v713 = vld [vmem:[%s651 + $0x30] sm:$0xff]
        %v714 = vld [vmem:[%s651 + $0x38] sm:$0xff]
        %v715 = vld [vmem:[%s651 + $0x40] sm:$0xff]
        %v716 = vld [vmem:[%s651 + $0x48] sm:$0xff]
        %v717 = vld [vmem:[%s651 + $0x50] sm:$0xff]
        %v718 = vld [vmem:[%s651 + $0x58] sm:$0xff]
        %v719 = vld [vmem:[%s651 + $0x60] sm:$0xff]
        %v720 = vld [vmem:[%s651 + $0x68] sm:$0xff]
        %v721 = vld [vmem:[%s651 + $0x70] sm:$0xff]
        %v722 = vld [vmem:[%s651 + $0x78] sm:$0xff]
        %v723 = vld [vmem:[%s651 + $0x80] sm:$0xff]
        %v724 = vld [vmem:[%s651 + $0x88] sm:$0xff]
        %v725 = vld [vmem:[%s651 + $0x90] sm:$0xff]
        %v726 = vld [vmem:[%s651 + $0x98] sm:$0xff]
        %v727 = vld [vmem:[%s651 + $0xa0] sm:$0xff]
        %v728 = vld [vmem:[%s651 + $0xa8] sm:$0xff]
        %v729 = vld [vmem:[%s651 + $0xb0] sm:$0xff]
        %v730 = vld [vmem:[%s651 + $0xb8] sm:$0xff]
        %v731 = vld [vmem:[%s651 + $0xc0] sm:$0xff]
        %v732 = vld [vmem:[%s651 + $0xc8] sm:$0xff]
        %v733 = vld [vmem:[%s651 + $0xd0] sm:$0xff]
        %v734 = vld [vmem:[%s651 + $0xd8] sm:$0xff]
        %v735 = vld [vmem:[%s651 + $0xe0] sm:$0xff]
        %v736 = vld [vmem:[%s651 + $0xe8] sm:$0xff]
        %v737 = vld [vmem:[%s651 + $0xf0] sm:$0xff]
        %v738 = vld [vmem:[%s651 + $0xf8] sm:$0xff]
        %v739 = vpack.c.bf16 %v708, %v707
        %v740 = vpack.c.bf16 %v710, %v709
        %v741 = vpack.c.bf16 %v712, %v711
        %v742 = vpack.c.bf16 %v714, %v713
        %v743 = vpack.c.bf16 %v716, %v715
        %v744 = vpack.c.bf16 %v718, %v717
        %v745 = vpack.c.bf16 %v720, %v719
        %v746 = vpack.c.bf16 %v722, %v721
        %v747 = vpack.c.bf16 %v724, %v723
        %v748 = vpack.c.bf16 %v726, %v725
        %v749 = vpack.c.bf16 %v728, %v727
        %v750 = vpack.c.bf16 %v730, %v729
        %v751 = vpack.c.bf16 %v732, %v731
        %v752 = vpack.c.bf16 %v734, %v733
        %v753 = vpack.c.bf16 %v736, %v735
        %v754 = vpack.c.bf16 %v738, %v737
        %v755 = vld [vmem:[%s1] sm:$0x3]
        %v756 = vld [vmem:[%s2] sm:$0x1]
        %v758 = vlaneseq
        %v759 = vshrl.u32 %v758, 7
        %v760 = vsub.s32 0, %v759
        %v761 = vrot.slane %v756, %v760
        %vm763 = vcmask 31744
        %v765 = vsel %vm763, %v739, 0
        %v768 = vsel %vm763, %v740, 0
        %v771 = vsel %vm763, %v741, 0
        %v774 = vsel %vm763, %v742, 0
        %v777 = vsel %vm763, %v743, 0
        %v780 = vsel %vm763, %v744, 0
        %v783 = vsel %vm763, %v745, 0
        %v786 = vsel %vm763, %v746, 0
        %v789 = vsel %vm763, %v747, 0
        %v792 = vsel %vm763, %v748, 0
        %v795 = vsel %vm763, %v749, 0
        %v798 = vsel %vm763, %v750, 0
        %v801 = vsel %vm763, %v751, 0
        %v804 = vsel %vm763, %v752, 0
        %v807 = vsel %vm763, %v753, 0
        %v810 = vsel %vm763, %v754, 0
        %vm812 = vcmask 1041408
        %v814 = vsel %vm812, %v755, 0
        %816 = vmatprep.subr.bf16.mxu0 0
        %817 = vmatpush1.bf16.msra.mxu0 %v814
        %818 = vmatprep.subr.bf16.mxu0 0
        %819 = vmatpush1.bf16.msra.mxu0 0
        %820 = vmatprep.subr.bf16.mxu0 0
        %821 = vmatpush1.bf16.msra.mxu0 0
        %822 = vmatprep.subr.bf16.mxu0 0
        %823 = vmatpush1.bf16.msra.mxu0 0
        %824 = vmatprep.subr.bf16.mxu0 0
        %825 = vmatpush1.bf16.msra.mxu0 0
        %826 = vmatprep.subr.bf16.mxu0 0
        %827 = vmatpush1.bf16.msra.mxu0 0
        %828 = vmatprep.subr.bf16.mxu0 0
        %829 = vmatpush1.bf16.msra.mxu0 0
        %830 = vmatprep.subr.bf16.mxu0 0
        %831 = vmatpush1.bf16.msra.mxu0 0
        %832 = vmatprep.subr.bf16.mxu0 0
        %833 = vmatpush1.bf16.msra.mxu0 0
        %834 = vmatprep.subr.bf16.mxu0 0
        %835 = vmatpush1.bf16.msra.mxu0 0
        %836 = vmatprep.subr.bf16.mxu0 0
        %837 = vmatpush1.bf16.msra.mxu0 0
        %838 = vmatprep.subr.bf16.mxu0 0
        %839 = vmatpush1.bf16.msra.mxu0 0
        %840 = vmatprep.subr.bf16.mxu0 0
        %841 = vmatpush1.bf16.msra.mxu0 0
        %842 = vmatprep.subr.bf16.mxu0 0
        %843 = vmatpush1.bf16.msra.mxu0 0
        %844 = vmatprep.subr.bf16.mxu0 0
        %845 = vmatpush1.bf16.msra.mxu0 0
        %846 = vmatprep.subr.bf16.mxu0 0
        %847 = vmatpush1.bf16.msra.mxu0 0
        %848 = vmatprep.mubr.bf16.mxu0 0
        %849 = vmatmul.mubr.bf16.gmra.mrb[0].mxu0 %v765
        %v850 = vpop.f32.mrb[0].mxu0
        %v851 = vadd.f32 %v761, %v850
        %v852 = vpop.f32.mrb[0].mxu0
        %v853 = vpop.f32.mrb[0].mxu0
        %v854 = vadd.f32 %v761, %v853
        %v855 = vpop.f32.mrb[0].mxu0
        %856 = vmatprep.mubr.bf16.mxu0 0
        %857 = vmatmul.mubr.bf16.gmra.mrb[0].mxu0 %v768
        %v858 = vpop.f32.mrb[0].mxu0
        %v859 = vadd.f32 %v761, %v858
        %v860 = vpop.f32.mrb[0].mxu0
        %v861 = vpop.f32.mrb[0].mxu0
        %v862 = vadd.f32 %v761, %v861
        %v863 = vpop.f32.mrb[0].mxu0
        %864 = vmatprep.mubr.bf16.mxu0 0
        %865 = vmatmul.mubr.bf16.gmra.mrb[0].mxu0 %v771
        %v866 = vpop.f32.mrb[0].mxu0
        %v867 = vadd.f32 %v761, %v866
        %v868 = vpop.f32.mrb[0].mxu0
        %v869 = vpop.f32.mrb[0].mxu0
        %v870 = vadd.f32 %v761, %v869
        %v871 = vpop.f32.mrb[0].mxu0
        %872 = vmatprep.mubr.bf16.mxu0 0
        %873 = vmatmul.mubr.bf16.gmra.mrb[0].mxu0 %v774
        %v874 = vpop.f32.mrb[0].mxu0
        %v875 = vadd.f32 %v761, %v874
        %v876 = vpop.f32.mrb[0].mxu0
        %v877 = vpop.f32.mrb[0].mxu0
        %v878 = vadd.f32 %v761, %v877
        %v879 = vpop.f32.mrb[0].mxu0
        %880 = vmatprep.mubr.bf16.mxu0 0
        %881 = vmatmul.mubr.bf16.gmra.mrb[0].mxu0 %v777
        %v882 = vpop.f32.mrb[0].mxu0
        %v883 = vadd.f32 %v761, %v882
        %v884 = vpop.f32.mrb[0].mxu0
        %v885 = vpop.f32.mrb[0].mxu0
        %v886 = vadd.f32 %v761, %v885
        %v887 = vpop.f32.mrb[0].mxu0
        %888 = vmatprep.mubr.bf16.mxu0 0
        %889 = vmatmul.mubr.bf16.gmra.mrb[0].mxu0 %v780
        %v890 = vpop.f32.mrb[0].mxu0
        %v891 = vadd.f32 %v761, %v890
        %v892 = vpop.f32.mrb[0].mxu0
        %v893 = vpop.f32.mrb[0].mxu0
        %v894 = vadd.f32 %v761, %v893
        %v895 = vpop.f32.mrb[0].mxu0
        %896 = vmatprep.mubr.bf16.mxu0 0
        %897 = vmatmul.mubr.bf16.gmra.mrb[0].mxu0 %v783
        %v898 = vpop.f32.mrb[0].mxu0
        %v899 = vadd.f32 %v761, %v898
        %v900 = vpop.f32.mrb[0].mxu0
        %v901 = vpop.f32.mrb[0].mxu0
        %v902 = vadd.f32 %v761, %v901
        %v903 = vpop.f32.mrb[0].mxu0
        %904 = vmatprep.mubr.bf16.mxu0 0
        %905 = vmatmul.mubr.bf16.gmra.mrb[0].mxu0 %v786
        %v906 = vpop.f32.mrb[0].mxu0
        %v907 = vadd.f32 %v761, %v906
        %v908 = vpop.f32.mrb[0].mxu0
        %v909 = vpop.f32.mrb[0].mxu0
        %v910 = vadd.f32 %v761, %v909
        %v911 = vpop.f32.mrb[0].mxu0
        %912 = vmatprep.mubr.bf16.mxu0 0
        %913 = vmatmul.mubr.bf16.gmra.mrb[0].mxu0 %v789
        %v914 = vpop.f32.mrb[0].mxu0
        %v915 = vadd.f32 %v761, %v914
        %v916 = vpop.f32.mrb[0].mxu0
        %v917 = vpop.f32.mrb[0].mxu0
        %v918 = vadd.f32 %v761, %v917
        %v919 = vpop.f32.mrb[0].mxu0
        %920 = vmatprep.mubr.bf16.mxu0 0
        %921 = vmatmul.mubr.bf16.gmra.mrb[0].mxu0 %v792
        %v922 = vpop.f32.mrb[0].mxu0
        %v923 = vadd.f32 %v761, %v922
        %v924 = vpop.f32.mrb[0].mxu0
        %v925 = vpop.f32.mrb[0].mxu0
        %v926 = vadd.f32 %v761, %v925
        %v927 = vpop.f32.mrb[0].mxu0
        %928 = vmatprep.mubr.bf16.mxu0 0
        %929 = vmatmul.mubr.bf16.gmra.mrb[0].mxu0 %v795
        %v930 = vpop.f32.mrb[0].mxu0
        %v931 = vadd.f32 %v761, %v930
        %v932 = vpop.f32.mrb[0].mxu0
        %v933 = vpop.f32.mrb[0].mxu0
        %v934 = vadd.f32 %v761, %v933
        %v935 = vpop.f32.mrb[0].mxu0
        %936 = vmatprep.mubr.bf16.mxu0 0
        %937 = vmatmul.mubr.bf16.gmra.mrb[0].mxu0 %v798
        %v938 = vpop.f32.mrb[0].mxu0
        %v939 = vadd.f32 %v761, %v938
        %v940 = vpop.f32.mrb[0].mxu0
        %v941 = vpop.f32.mrb[0].mxu0
        %v942 = vadd.f32 %v761, %v941
        %v943 = vpop.f32.mrb[0].mxu0
        %944 = vmatprep.mubr.bf16.mxu0 0
        %945 = vmatmul.mubr.bf16.gmra.mrb[0].mxu0 %v801
        %v946 = vpop.f32.mrb[0].mxu0
        %v947 = vadd.f32 %v761, %v946
        %v948 = vpop.f32.mrb[0].mxu0
        %v949 = vpop.f32.mrb[0].mxu0
        %v950 = vadd.f32 %v761, %v949
        %v951 = vpop.f32.mrb[0].mxu0
        %952 = vmatprep.mubr.bf16.mxu0 0
        %953 = vmatmul.mubr.bf16.gmra.mrb[0].mxu0 %v804
        %v954 = vpop.f32.mrb[0].mxu0
        %v955 = vadd.f32 %v761, %v954
        %v956 = vpop.f32.mrb[0].mxu0
        %v957 = vpop.f32.mrb[0].mxu0
        %v958 = vadd.f32 %v761, %v957
        %v959 = vpop.f32.mrb[0].mxu0
        %960 = vmatprep.mubr.bf16.mxu0 0
        %961 = vmatmul.mubr.bf16.gmra.mrb[0].mxu0 %v807
        %v962 = vpop.f32.mrb[0].mxu0
        %v963 = vadd.f32 %v761, %v962
        %v964 = vpop.f32.mrb[0].mxu0
        %v965 = vpop.f32.mrb[0].mxu0
        %v966 = vadd.f32 %v761, %v965
        %v967 = vpop.f32.mrb[0].mxu0
        %968 = vmatprep.mubr.bf16.mxu0 0
        %969 = vmatmul.mubr.bf16.gmra.mrb[0].mxu0 %v810
        %v970 = vpop.f32.mrb[0].mxu0
        %v971 = vadd.f32 %v761, %v970
        %v972 = vpop.f32.mrb[0].mxu0
        %v973 = vpop.f32.mrb[0].mxu0
        %v974 = vadd.f32 %v761, %v973
        %v975 = vpop.f32.mrb[0].mxu0
        %976 = vdwg.mxu0
        %vm977 = vcmask 261120
        %978 = vst.msk [vmem:[#allocation2] sm:$0xff] %vm977, %v851
        %979 = vst.msk [vmem:[#allocation2 + $0x8] sm:$0xff] %vm977, %v854
        %980 = vst.msk [vmem:[#allocation2 + $0x10] sm:$0xff] %vm977, %v859
        %981 = vst.msk [vmem:[#allocation2 + $0x18] sm:$0xff] %vm977, %v862
        %982 = vst.msk [vmem:[#allocation2 + $0x20] sm:$0xff] %vm977, %v867
        %983 = vst.msk [vmem:[#allocation2 + $0x28] sm:$0xff] %vm977, %v870
        %984 = vst.msk [vmem:[#allocation2 + $0x30] sm:$0xff] %vm977, %v875
        %985 = vst.msk [vmem:[#allocation2 + $0x38] sm:$0xff] %vm977, %v878
        %986 = vst.msk [vmem:[#allocation2 + $0x40] sm:$0xff] %vm977, %v883
        %987 = vst.msk [vmem:[#allocation2 + $0x48] sm:$0xff] %vm977, %v886
        %988 = vst.msk [vmem:[#allocation2 + $0x50] sm:$0xff] %vm977, %v891
        %989 = vst.msk [vmem:[#allocation2 + $0x58] sm:$0xff] %vm977, %v894
        %990 = vst.msk [vmem:[#allocation2 + $0x60] sm:$0xff] %vm977, %v899
        %991 = vst.msk [vmem:[#allocation2 + $0x68] sm:$0xff] %vm977, %v902
        %992 = vst.msk [vmem:[#allocation2 + $0x70] sm:$0xff] %vm977, %v907
        %993 = vst.msk [vmem:[#allocation2 + $0x78] sm:$0xff] %vm977, %v910
        %994 = vst.msk [vmem:[#allocation2 + $0x80] sm:$0xff] %vm977, %v915
        %995 = vst.msk [vmem:[#allocation2 + $0x88] sm:$0xff] %vm977, %v918
        %996 = vst.msk [vmem:[#allocation2 + $0x90] sm:$0xff] %vm977, %v923
        %997 = vst.msk [vmem:[#allocation2 + $0x98] sm:$0xff] %vm977, %v926
        %998 = vst.msk [vmem:[#allocation2 + $0xa0] sm:$0xff] %vm977, %v931
        %999 = vst.msk [vmem:[#allocation2 + $0xa8] sm:$0xff] %vm977, %v934
        %1000 = vst.msk [vmem:[#allocation2 + $0xb0] sm:$0xff] %vm977, %v939
        %1001 = vst.msk [vmem:[#allocation2 + $0xb8] sm:$0xff] %vm977, %v942
        %1002 = vst.msk [vmem:[#allocation2 + $0xc0] sm:$0xff] %vm977, %v947
        %1003 = vst.msk [vmem:[#allocation2 + $0xc8] sm:$0xff] %vm977, %v950
        %1004 = vst.msk [vmem:[#allocation2 + $0xd0] sm:$0xff] %vm977, %v955
        %1005 = vst.msk [vmem:[#allocation2 + $0xd8] sm:$0xff] %vm977, %v958
        %1006 = vst.msk [vmem:[#allocation2 + $0xe0] sm:$0xff] %vm977, %v963
        %1007 = vst.msk [vmem:[#allocation2 + $0xe8] sm:$0xff] %vm977, %v966
        %1008 = vst.msk [vmem:[#allocation2 + $0xf0] sm:$0xff] %vm977, %v971
        %1009 = vst.msk [vmem:[#allocation2 + $0xf8] sm:$0xff] %vm977, %v974
      $region84: #{transformer_bridge_forward.1} parent=79 // pred_fallthru
        _
      %v1010 = vld [vmem:[#allocation2] sm:$0xff]
      %v1011 = vld [vmem:[#allocation2 + $0x8] sm:$0xff]
      %v1012 = vld [vmem:[#allocation2 + $0x10] sm:$0xff]
      %v1013 = vld [vmem:[#allocation2 + $0x18] sm:$0xff]
      %v1014 = vld [vmem:[#allocation2 + $0x20] sm:$0xff]
      %v1015 = vld [vmem:[#allocation2 + $0x28] sm:$0xff]
      %v1016 = vld [vmem:[#allocation2 + $0x30] sm:$0xff]
      %v1017 = vld [vmem:[#allocation2 + $0x38] sm:$0xff]
      %v1018 = vld [vmem:[#allocation2 + $0x40] sm:$0xff]
      %v1019 = vld [vmem:[#allocation2 + $0x48] sm:$0xff]
      %v1020 = vld [vmem:[#allocation2 + $0x50] sm:$0xff]
      %v1021 = vld [vmem:[#allocation2 + $0x58] sm:$0xff]
      %v1022 = vld [vmem:[#allocation2 + $0x60] sm:$0xff]
      %v1023 = vld [vmem:[#allocation2 + $0x68] sm:$0xff]
      %v1024 = vld [vmem:[#allocation2 + $0x70] sm:$0xff]
      %v1025 = vld [vmem:[#allocation2 + $0x78] sm:$0xff]
      %v1026 = vld [vmem:[#allocation2 + $0x80] sm:$0xff]
      %v1027 = vld [vmem:[#allocation2 + $0x88] sm:$0xff]
      %v1028 = vld [vmem:[#allocation2 + $0x90] sm:$0xff]
      %v1029 = vld [vmem:[#allocation2 + $0x98] sm:$0xff]
      %v1030 = vld [vmem:[#allocation2 + $0xa0] sm:$0xff]
      %v1031 = vld [vmem:[#allocation2 + $0xa8] sm:$0xff]
      %v1032 = vld [vmem:[#allocation2 + $0xb0] sm:$0xff]
      %v1033 = vld [vmem:[#allocation2 + $0xb8] sm:$0xff]
      %v1034 = vld [vmem:[#allocation2 + $0xc0] sm:$0xff]
      %v1035 = vld [vmem:[#allocation2 + $0xc8] sm:$0xff]
      %v1036 = vld [vmem:[#allocation2 + $0xd0] sm:$0xff]
      %v1037 = vld [vmem:[#allocation2 + $0xd8] sm:$0xff]
      %v1038 = vld [vmem:[#allocation2 + $0xe0] sm:$0xff]
      %v1039 = vld [vmem:[#allocation2 + $0xe8] sm:$0xff]
      %v1040 = vld [vmem:[#allocation2 + $0xf0] sm:$0xff]
      %v1041 = vld [vmem:[#allocation2 + $0xf8] sm:$0xff]
      %v1042 = vpack.c.bf16 %v1011, %v1010
      %v1043 = vpack.c.bf16 %v1013, %v1012
      %v1044 = vpack.c.bf16 %v1015, %v1014
      %v1045 = vpack.c.bf16 %v1017, %v1016
      %v1046 = vpack.c.bf16 %v1019, %v1018
      %v1047 = vpack.c.bf16 %v1021, %v1020
      %v1048 = vpack.c.bf16 %v1023, %v1022
      %v1049 = vpack.c.bf16 %v1025, %v1024
      %v1050 = vpack.c.bf16 %v1027, %v1026
      %v1051 = vpack.c.bf16 %v1029, %v1028
      %v1052 = vpack.c.bf16 %v1031, %v1030
      %v1053 = vpack.c.bf16 %v1033, %v1032
      %v1054 = vpack.c.bf16 %v1035, %v1034
      %v1055 = vpack.c.bf16 %v1037, %v1036
      %v1056 = vpack.c.bf16 %v1039, %v1038
      %v1057 = vpack.c.bf16 %v1041, %v1040
      loop: start=0, step=1, limit=4
      $region85: #{transformer_bridge_forward.1} parent=79 // loop_pre_header
        _
      $region86: #{transformer_bridge_forward.1} parent=79 // loop_header
        %s1059 = sphi 0, %s1063
        %p1060 = scmp.ge.s32.totalorder %s1059, 4
        %v1064 = vphi 0.0, %v2719
        %v1065 = vphi 0.0, %v2720
        %v1066 = vphi 0.0, %v2721
        %v1067 = vphi 0.0, %v2722
        %v1068 = vphi 0.0, %v2723
        %v1069 = vphi 0.0, %v2724
        %v1070 = vphi 0.0, %v2725
        %v1071 = vphi 0.0, %v2726
        %v1072 = vphi 0.0, %v2727
        %v1073 = vphi 0.0, %v2728
        %v1074 = vphi 0.0, %v2729
        %v1075 = vphi 0.0, %v2730
        %v1076 = vphi 0.0, %v2731
        %v1077 = vphi 0.0, %v2732
        %v1078 = vphi 0.0, %v2733
        %v1079 = vphi 0.0, %v2734
        %v1080 = vphi 0.0, %v2735
        %v1081 = vphi 0.0, %v2736
        %v1082 = vphi 0.0, %v2737
        %v1083 = vphi 0.0, %v2738
        %v1084 = vphi 0.0, %v2739
        %v1085 = vphi 0.0, %v2740
        %v1086 = vphi 0.0, %v2741
        %v1087 = vphi 0.0, %v2742
        %v1088 = vphi 0.0, %v2743
        %v1089 = vphi 0.0, %v2744
        %v1090 = vphi 0.0, %v2745
        %v1091 = vphi 0.0, %v2746
        %v1092 = vphi 0.0, %v2747
        %v1093 = vphi 0.0, %v2748
        %v1094 = vphi 0.0, %v2749
        %v1095 = vphi 0.0, %v2750
      $region87: #{transformer_bridge_forward.1} parent=79 // loop_header_branch
        %1062 = sbr.rel (%p1060) target = $region91
      $region88: #{transformer_bridge_forward.1} parent=79 // loop_body
        %s1096 = smul.u32 %s1059, 12
        %s1097 = smul.addr %s1096, 4
        %s1098 = scalar_lea.vmem %s656, %s1097
        %v1099 = vld [vmem:[%s1098] sm:$0xff]
        %v1100 = vld [vmem:[%s1098 + $0x8] sm:$0xf]
        %v1101 = vld [vmem:[%s1098 + $0xc] sm:$0xff]
        %v1102 = vld [vmem:[%s1098 + $0x14] sm:$0xf]
        %v1103 = vld [vmem:[%s1098 + $0x18] sm:$0xff]
        %v1104 = vld [vmem:[%s1098 + $0x20] sm:$0xf]
        %v1105 = vld [vmem:[%s1098 + $0x24] sm:$0xff]
        %v1106 = vld [vmem:[%s1098 + $0x2c] sm:$0xf]
        %s1107 = smul.u32 %s1059, 3
        %s1108 = scalar_lea.vmem %s660, %s1107
        %v1109 = vld [vmem:[%s1108] sm:$0x7]
        %v1111 = vlaneseq
        %v1112 = vshrl.u32 %v1111, 7
        %v1113 = vsub.s32 0, %v1112
        %v1114 = vrot.slane %v1109, %v1113
        %v1115 = vlaneseq
        %v1116 = vshrl.u32 %v1115, 7
        %v1117 = vsub.s32 1, %v1116
        %v1118 = vrot.slane %v1109, %v1117
        %v1119 = vlaneseq
        %v1120 = vshrl.u32 %v1119, 7
        %v1121 = vsub.s32 2, %v1120
        %v1122 = vrot.slane %v1109, %v1121
        %v1134 = vunpack.c.l.b16 %v1099
        %v1135 = vunpack.c.h.b16 %v1099
        %v1136 = vunpack.c.l.b16 %v1100
        %v1137 = vunpack.c.l.b16 %v1101
        %v1138 = vunpack.c.h.b16 %v1101
        %v1139 = vunpack.c.l.b16 %v1102
        %v1140 = vunpack.c.l.b16 %v1103
        %v1141 = vunpack.c.h.b16 %v1103
        %v1142 = vunpack.c.l.b16 %v1104
        %v1143 = vunpack.c.l.b16 %v1105
        %v1144 = vunpack.c.h.b16 %v1105
        %v1145 = vunpack.c.l.b16 %v1106
        %v1146 = vpack.c.b16 %v1137, %v1134
        %v1147 = vpack.c.b16 %v1138, %v1135
        %v1148 = vpack.c.b16 %v1139, %v1136
        %v1149 = vpack.c.b16 %v1143, %v1140
        %v1150 = vpack.c.b16 %v1144, %v1141
        %v1151 = vpack.c.b16 %v1145, %v1142
        %vm1158 = vcmask 261120
        %v1160 = vsel %vm1158, %v1042, 0
        %v1163 = vsel %vm1158, %v1043, 0
        %v1166 = vsel %vm1158, %v1044, 0
        %v1169 = vsel %vm1158, %v1045, 0
        %v1172 = vsel %vm1158, %v1046, 0
        %v1175 = vsel %vm1158, %v1047, 0
        %v1178 = vsel %vm1158, %v1048, 0
        %v1181 = vsel %vm1158, %v1049, 0
        %v1184 = vsel %vm1158, %v1050, 0
        %v1187 = vsel %vm1158, %v1051, 0
        %v1190 = vsel %vm1158, %v1052, 0
        %v1193 = vsel %vm1158, %v1053, 0
        %v1196 = vsel %vm1158, %v1054, 0
        %v1199 = vsel %vm1158, %v1055, 0
        %v1202 = vsel %vm1158, %v1056, 0
        %v1205 = vsel %vm1158, %v1057, 0
        %1207 = vmatprep.subr.bf16.mxu0 %v1147
        %1208 = vmatpush1.bf16.msra.mxu0 %v1146
        %1209 = vmatprep.subr.bf16.mxu0 %v1150
        %1210 = vmatpush1.bf16.msra.mxu0 %v1149
        %1211 = vmatprep.subr.bf16.mxu0 0
        %1212 = vmatpush1.bf16.msra.mxu0 0
        %1213 = vmatprep.subr.bf16.mxu0 0
        %1214 = vmatpush1.bf16.msra.mxu0 0
        %1215 = vmatprep.subr.bf16.mxu0 0
        %1216 = vmatpush1.bf16.msra.mxu0 0
        %1217 = vmatprep.subr.bf16.mxu0 0
        %1218 = vmatpush1.bf16.msra.mxu0 0
        %1219 = vmatprep.subr.bf16.mxu0 0
        %1220 = vmatpush1.bf16.msra.mxu0 0
        %1221 = vmatprep.subr.bf16.mxu0 0
        %1222 = vmatpush1.bf16.msra.mxu0 0
        %1223 = vmatprep.subr.bf16.mxu0 0
        %1224 = vmatpush1.bf16.msra.mxu0 0
        %1225 = vmatprep.subr.bf16.mxu0 0
        %1226 = vmatpush1.bf16.msra.mxu0 0
        %1227 = vmatprep.subr.bf16.mxu0 0
        %1228 = vmatpush1.bf16.msra.mxu0 0
        %1229 = vmatprep.subr.bf16.mxu0 0
        %1230 = vmatpush1.bf16.msra.mxu0 0
        %1231 = vmatprep.subr.bf16.mxu0 0
        %1232 = vmatpush1.bf16.msra.mxu0 0
        %1233 = vmatprep.subr.bf16.mxu0 0
        %1234 = vmatpush1.bf16.msra.mxu0 0
        %1235 = vmatprep.subr.bf16.mxu0 0
        %1236 = vmatpush1.bf16.msra.mxu0 0
        %1237 = vmatprep.subr.bf16.mxu0 0
        %1238 = vmatpush1.bf16.msra.mxu0 0
        %1239 = vmatprep.mubr.bf16.mxu0 0
        %1240 = vmatmul.mubr.bf16.gmra.mrb[0].mxu0 %v1160
        %v1241 = vpop.f32.mrb[0].mxu0
        %v1242 = vadd.f32 %v1114, %v1241
        %v1243 = vpop.f32.mrb[0].mxu0
        %v1244 = vadd.f32 %v1118, %v1243
        %v1245 = vpop.f32.mrb[0].mxu0
        %v1246 = vadd.f32 %v1114, %v1245
        %v1247 = vpop.f32.mrb[0].mxu0
        %v1248 = vadd.f32 %v1118, %v1247
        %1249 = vmatprep.mubr.bf16.mxu0 0
        %1250 = vmatmul.mubr.bf16.gmra.mrb[0].mxu0 %v1163
        %v1251 = vpop.f32.mrb[0].mxu0
        %v1252 = vadd.f32 %v1114, %v1251
        %v1253 = vpop.f32.mrb[0].mxu0
        %v1254 = vadd.f32 %v1118, %v1253
        %v1255 = vpop.f32.mrb[0].mxu0
        %v1256 = vadd.f32 %v1114, %v1255
        %v1257 = vpop.f32.mrb[0].mxu0
        %v1258 = vadd.f32 %v1118, %v1257
        %1259 = vmatprep.mubr.bf16.mxu0 0
        %1260 = vmatmul.mubr.bf16.gmra.mrb[0].mxu0 %v1166
        %v1261 = vpop.f32.mrb[0].mxu0
        %v1262 = vadd.f32 %v1114, %v1261
        %v1263 = vpop.f32.mrb[0].mxu0
        %v1264 = vadd.f32 %v1118, %v1263
        %v1265 = vpop.f32.mrb[0].mxu0
        %v1266 = vadd.f32 %v1114, %v1265
        %v1267 = vpop.f32.mrb[0].mxu0
        %v1268 = vadd.f32 %v1118, %v1267
        %1269 = vmatprep.mubr.bf16.mxu0 0
        %1270 = vmatmul.mubr.bf16.gmra.mrb[0].mxu0 %v1169
        %v1271 = vpop.f32.mrb[0].mxu0
        %v1272 = vadd.f32 %v1114, %v1271
        %v1273 = vpop.f32.mrb[0].mxu0
        %v1274 = vadd.f32 %v1118, %v1273
        %v1275 = vpop.f32.mrb[0].mxu0
        %v1276 = vadd.f32 %v1114, %v1275
        %v1277 = vpop.f32.mrb[0].mxu0
        %v1278 = vadd.f32 %v1118, %v1277
        %1279 = vmatprep.mubr.bf16.mxu0 0
        %1280 = vmatmul.mubr.bf16.gmra.mrb[0].mxu0 %v1172
        %v1281 = vpop.f32.mrb[0].mxu0
        %v1282 = vadd.f32 %v1114, %v1281
        %v1283 = vpop.f32.mrb[0].mxu0
        %v1284 = vadd.f32 %v1118, %v1283
        %v1285 = vpop.f32.mrb[0].mxu0
        %v1286 = vadd.f32 %v1114, %v1285
        %v1287 = vpop.f32.mrb[0].mxu0
        %v1288 = vadd.f32 %v1118, %v1287
        %1289 = vmatprep.mubr.bf16.mxu0 0
        %1290 = vmatmul.mubr.bf16.gmra.mrb[0].mxu0 %v1175
        %v1291 = vpop.f32.mrb[0].mxu0
        %v1292 = vadd.f32 %v1114, %v1291
        %v1293 = vpop.f32.mrb[0].mxu0
        %v1294 = vadd.f32 %v1118, %v1293
        %v1295 = vpop.f32.mrb[0].mxu0
        %v1296 = vadd.f32 %v1114, %v1295
        %v1297 = vpop.f32.mrb[0].mxu0
        %v1298 = vadd.f32 %v1118, %v1297
        %1299 = vmatprep.mubr.bf16.mxu0 0
        %1300 = vmatmul.mubr.bf16.gmra.mrb[0].mxu0 %v1178
        %v1301 = vpop.f32.mrb[0].mxu0
        %v1302 = vadd.f32 %v1114, %v1301
        %v1303 = vpop.f32.mrb[0].mxu0
        %v1304 = vadd.f32 %v1118, %v1303
        %v1305 = vpop.f32.mrb[0].mxu0
        %v1306 = vadd.f32 %v1114, %v1305
        %v1307 = vpop.f32.mrb[0].mxu0
        %v1308 = vadd.f32 %v1118, %v1307
        %1309 = vmatprep.mubr.bf16.mxu0 0
        %1310 = vmatmul.mubr.bf16.gmra.mrb[0].mxu0 %v1181
        %v1311 = vpop.f32.mrb[0].mxu0
        %v1312 = vadd.f32 %v1114, %v1311
        %v1313 = vpop.f32.mrb[0].mxu0
        %v1314 = vadd.f32 %v1118, %v1313
        %v1315 = vpop.f32.mrb[0].mxu0
        %v1316 = vadd.f32 %v1114, %v1315
        %v1317 = vpop.f32.mrb[0].mxu0
        %v1318 = vadd.f32 %v1118, %v1317
        %1319 = vmatprep.mubr.bf16.mxu0 0
        %1320 = vmatmul.mubr.bf16.gmra.mrb[0].mxu0 %v1184
        %v1321 = vpop.f32.mrb[0].mxu0
        %v1322 = vadd.f32 %v1114, %v1321
        %v1323 = vpop.f32.mrb[0].mxu0
        %v1324 = vadd.f32 %v1118, %v1323
        %v1325 = vpop.f32.mrb[0].mxu0
        %v1326 = vadd.f32 %v1114, %v1325
        %v1327 = vpop.f32.mrb[0].mxu0
        %v1328 = vadd.f32 %v1118, %v1327
        %1329 = vmatprep.mubr.bf16.mxu0 0
        %1330 = vmatmul.mubr.bf16.gmra.mrb[0].mxu0 %v1187
        %v1331 = vpop.f32.mrb[0].mxu0
        %v1332 = vadd.f32 %v1114, %v1331
        %v1333 = vpop.f32.mrb[0].mxu0
        %v1334 = vadd.f32 %v1118, %v1333
        %v1335 = vpop.f32.mrb[0].mxu0
        %v1336 = vadd.f32 %v1114, %v1335
        %v1337 = vpop.f32.mrb[0].mxu0
        %v1338 = vadd.f32 %v1118, %v1337
        %1339 = vmatprep.mubr.bf16.mxu0 0
        %1340 = vmatmul.mubr.bf16.gmra.mrb[0].mxu0 %v1190
        %v1341 = vpop.f32.mrb[0].mxu0
        %v1342 = vadd.f32 %v1114, %v1341
        %v1343 = vpop.f32.mrb[0].mxu0
        %v1344 = vadd.f32 %v1118, %v1343
        %v1345 = vpop.f32.mrb[0].mxu0
        %v1346 = vadd.f32 %v1114, %v1345
        %v1347 = vpop.f32.mrb[0].mxu0
        %v1348 = vadd.f32 %v1118, %v1347
        %1349 = vmatprep.mubr.bf16.mxu0 0
        %1350 = vmatmul.mubr.bf16.gmra.mrb[0].mxu0 %v1193
        %v1351 = vpop.f32.mrb[0].mxu0
        %v1352 = vadd.f32 %v1114, %v1351
        %v1353 = vpop.f32.mrb[0].mxu0
        %v1354 = vadd.f32 %v1118, %v1353
        %v1355 = vpop.f32.mrb[0].mxu0
        %v1356 = vadd.f32 %v1114, %v1355
        %v1357 = vpop.f32.mrb[0].mxu0
        %v1358 = vadd.f32 %v1118, %v1357
        %1359 = vmatprep.mubr.bf16.mxu0 0
        %1360 = vmatmul.mubr.bf16.gmra.mrb[0].mxu0 %v1196
        %v1361 = vpop.f32.mrb[0].mxu0
        %v1362 = vadd.f32 %v1114, %v1361
        %v1363 = vpop.f32.mrb[0].mxu0
        %v1364 = vadd.f32 %v1118, %v1363
        %v1365 = vpop.f32.mrb[0].mxu0
        %v1366 = vadd.f32 %v1114, %v1365
        %v1367 = vpop.f32.mrb[0].mxu0
        %v1368 = vadd.f32 %v1118, %v1367
        %1369 = vmatprep.mubr.bf16.mxu0 0
        %1370 = vmatmul.mubr.bf16.gmra.mrb[0].mxu0 %v1199
        %v1371 = vpop.f32.mrb[0].mxu0
        %v1372 = vadd.f32 %v1114, %v1371
        %v1373 = vpop.f32.mrb[0].mxu0
        %v1374 = vadd.f32 %v1118, %v1373
        %v1375 = vpop.f32.mrb[0].mxu0
        %v1376 = vadd.f32 %v1114, %v1375
        %v1377 = vpop.f32.mrb[0].mxu0
        %v1378 = vadd.f32 %v1118, %v1377
        %1379 = vmatprep.mubr.bf16.mxu0 0
        %1380 = vmatmul.mubr.bf16.gmra.mrb[0].mxu0 %v1202
        %v1381 = vpop.f32.mrb[0].mxu0
        %v1382 = vadd.f32 %v1114, %v1381
        %v1383 = vpop.f32.mrb[0].mxu0
        %v1384 = vadd.f32 %v1118, %v1383
        %v1385 = vpop.f32.mrb[0].mxu0
        %v1386 = vadd.f32 %v1114, %v1385
        %v1387 = vpop.f32.mrb[0].mxu0
        %v1388 = vadd.f32 %v1118, %v1387
        %1389 = vmatprep.mubr.bf16.mxu0 0
        %1390 = vmatmul.mubr.bf16.gmra.mrb[0].mxu0 %v1205
        %v1391 = vpop.f32.mrb[0].mxu0
        %v1392 = vadd.f32 %v1114, %v1391
        %v1393 = vpop.f32.mrb[0].mxu0
        %v1394 = vadd.f32 %v1118, %v1393
        %v1395 = vpop.f32.mrb[0].mxu0
        %v1396 = vadd.f32 %v1114, %v1395
        %v1397 = vpop.f32.mrb[0].mxu0
        %v1398 = vadd.f32 %v1118, %v1397
        %1399 = vdwg.mxu0
        %1400 = vmatprep.subr.bf16.mxu0 0
        %1401 = vmatpush1.bf16.msra.mxu0 %v1148
        %1402 = vmatprep.subr.bf16.mxu0 0
        %1403 = vmatpush1.bf16.msra.mxu0 %v1151
        %1404 = vmatprep.subr.bf16.mxu0 0
        %1405 = vmatpush1.bf16.msra.mxu0 0
        %1406 = vmatprep.subr.bf16.mxu0 0
        %1407 = vmatpush1.bf16.msra.mxu0 0
        %1408 = vmatprep.subr.bf16.mxu0 0
        %1409 = vmatpush1.bf16.msra.mxu0 0
        %1410 = vmatprep.subr.bf16.mxu0 0
        %1411 = vmatpush1.bf16.msra.mxu0 0
        %1412 = vmatprep.subr.bf16.mxu0 0
        %1413 = vmatpush1.bf16.msra.mxu0 0
        %1414 = vmatprep.subr.bf16.mxu0 0
        %1415 = vmatpush1.bf16.msra.mxu0 0
        %1416 = vmatprep.subr.bf16.mxu0 0
        %1417 = vmatpush1.bf16.msra.mxu0 0
        %1418 = vmatprep.subr.bf16.mxu0 0
        %1419 = vmatpush1.bf16.msra.mxu0 0
        %1420 = vmatprep.subr.bf16.mxu0 0
        %1421 = vmatpush1.bf16.msra.mxu0 0
        %1422 = vmatprep.subr.bf16.mxu0 0
        %1423 = vmatpush1.bf16.msra.mxu0 0
        %1424 = vmatprep.subr.bf16.mxu0 0
        %1425 = vmatpush1.bf16.msra.mxu0 0
        %1426 = vmatprep.subr.bf16.mxu0 0
        %1427 = vmatpush1.bf16.msra.mxu0 0
        %1428 = vmatprep.subr.bf16.mxu0 0
        %1429 = vmatpush1.bf16.msra.mxu0 0
        %1430 = vmatprep.subr.bf16.mxu0 0
        %1431 = vmatpush1.bf16.msra.mxu0 0
        %1432 = vmatprep.mubr.bf16.mxu0 0
        %1433 = vmatmul.mubr.bf16.gmra.mrb[0].mxu0 %v1160
        %v1434 = vpop.f32.mrb[0].mxu0
        %v1435 = vadd.f32 %v1122, %v1434
        %v1436 = vpop.f32.mrb[0].mxu0
        %v1437 = vpop.f32.mrb[0].mxu0
        %v1438 = vadd.f32 %v1122, %v1437
        %v1439 = vpop.f32.mrb[0].mxu0
        %1440 = vmatprep.mubr.bf16.mxu0 0
        %1441 = vmatmul.mubr.bf16.gmra.mrb[0].mxu0 %v1163
        %v1442 = vpop.f32.mrb[0].mxu0
        %v1443 = vadd.f32 %v1122, %v1442
        %v1444 = vpop.f32.mrb[0].mxu0
        %v1445 = vpop.f32.mrb[0].mxu0
        %v1446 = vadd.f32 %v1122, %v1445
        %v1447 = vpop.f32.mrb[0].mxu0
        %1448 = vmatprep.mubr.bf16.mxu0 0
        %1449 = vmatmul.mubr.bf16.gmra.mrb[0].mxu0 %v1166
        %v1450 = vpop.f32.mrb[0].mxu0
        %v1451 = vadd.f32 %v1122, %v1450
        %v1452 = vpop.f32.mrb[0].mxu0
        %v1453 = vpop.f32.mrb[0].mxu0
        %v1454 = vadd.f32 %v1122, %v1453
        %v1455 = vpop.f32.mrb[0].mxu0
        %1456 = vmatprep.mubr.bf16.mxu0 0
        %1457 = vmatmul.mubr.bf16.gmra.mrb[0].mxu0 %v1169
        %v1458 = vpop.f32.mrb[0].mxu0
        %v1459 = vadd.f32 %v1122, %v1458
        %v1460 = vpop.f32.mrb[0].mxu0
        %v1461 = vpop.f32.mrb[0].mxu0
        %v1462 = vadd.f32 %v1122, %v1461
        %v1463 = vpop.f32.mrb[0].mxu0
        %1464 = vmatprep.mubr.bf16.mxu0 0
        %1465 = vmatmul.mubr.bf16.gmra.mrb[0].mxu0 %v1172
        %v1466 = vpop.f32.mrb[0].mxu0
        %v1467 = vadd.f32 %v1122, %v1466
        %v1468 = vpop.f32.mrb[0].mxu0
        %v1469 = vpop.f32.mrb[0].mxu0
        %v1470 = vadd.f32 %v1122, %v1469
        %v1471 = vpop.f32.mrb[0].mxu0
        %1472 = vmatprep.mubr.bf16.mxu0 0
        %1473 = vmatmul.mubr.bf16.gmra.mrb[0].mxu0 %v1175
        %v1474 = vpop.f32.mrb[0].mxu0
        %v1475 = vadd.f32 %v1122, %v1474
        %v1476 = vpop.f32.mrb[0].mxu0
        %v1477 = vpop.f32.mrb[0].mxu0
        %v1478 = vadd.f32 %v1122, %v1477
        %v1479 = vpop.f32.mrb[0].mxu0
        %1480 = vmatprep.mubr.bf16.mxu0 0
        %1481 = vmatmul.mubr.bf16.gmra.mrb[0].mxu0 %v1178
        %v1482 = vpop.f32.mrb[0].mxu0
        %v1483 = vadd.f32 %v1122, %v1482
        %v1484 = vpop.f32.mrb[0].mxu0
        %v1485 = vpop.f32.mrb[0].mxu0
        %v1486 = vadd.f32 %v1122, %v1485
        %v1487 = vpop.f32.mrb[0].mxu0
        %1488 = vmatprep.mubr.bf16.mxu0 0
        %1489 = vmatmul.mubr.bf16.gmra.mrb[0].mxu0 %v1181
        %v1490 = vpop.f32.mrb[0].mxu0
        %v1491 = vadd.f32 %v1122, %v1490
        %v1492 = vpop.f32.mrb[0].mxu0
        %v1493 = vpop.f32.mrb[0].mxu0
        %v1494 = vadd.f32 %v1122, %v1493
        %v1495 = vpop.f32.mrb[0].mxu0
        %1496 = vmatprep.mubr.bf16.mxu0 0
        %1497 = vmatmul.mubr.bf16.gmra.mrb[0].mxu0 %v1184
        %v1498 = vpop.f32.mrb[0].mxu0
        %v1499 = vadd.f32 %v1122, %v1498
        %v1500 = vpop.f32.mrb[0].mxu0
        %v1501 = vpop.f32.mrb[0].mxu0
        %v1502 = vadd.f32 %v1122, %v1501
        %v1503 = vpop.f32.mrb[0].mxu0
        %1504 = vmatprep.mubr.bf16.mxu0 0
        %1505 = vmatmul.mubr.bf16.gmra.mrb[0].mxu0 %v1187
        %v1506 = vpop.f32.mrb[0].mxu0
        %v1507 = vadd.f32 %v1122, %v1506
        %v1508 = vpop.f32.mrb[0].mxu0
        %v1509 = vpop.f32.mrb[0].mxu0
        %v1510 = vadd.f32 %v1122, %v1509
        %v1511 = vpop.f32.mrb[0].mxu0
        %1512 = vmatprep.mubr.bf16.mxu0 0
        %1513 = vmatmul.mubr.bf16.gmra.mrb[0].mxu0 %v1190
        %v1514 = vpop.f32.mrb[0].mxu0
        %v1515 = vadd.f32 %v1122, %v1514
        %v1516 = vpop.f32.mrb[0].mxu0
        %v1517 = vpop.f32.mrb[0].mxu0
        %v1518 = vadd.f32 %v1122, %v1517
        %v1519 = vpop.f32.mrb[0].mxu0
        %1520 = vmatprep.mubr.bf16.mxu0 0
        %1521 = vmatmul.mubr.bf16.gmra.mrb[0].mxu0 %v1193
        %v1522 = vpop.f32.mrb[0].mxu0
        %v1523 = vadd.f32 %v1122, %v1522
        %v1524 = vpop.f32.mrb[0].mxu0
        %v1525 = vpop.f32.mrb[0].mxu0
        %v1526 = vadd.f32 %v1122, %v1525
        %v1527 = vpop.f32.mrb[0].mxu0
        %1528 = vmatprep.mubr.bf16.mxu0 0
        %1529 = vmatmul.mubr.bf16.gmra.mrb[0].mxu0 %v1196
        %v1530 = vpop.f32.mrb[0].mxu0
        %v1531 = vadd.f32 %v1122, %v1530
        %v1532 = vpop.f32.mrb[0].mxu0
        %v1533 = vpop.f32.mrb[0].mxu0
        %v1534 = vadd.f32 %v1122, %v1533
        %v1535 = vpop.f32.mrb[0].mxu0
        %1536 = vmatprep.mubr.bf16.mxu0 0
        %1537 = vmatmul.mubr.bf16.gmra.mrb[0].mxu0 %v1199
        %v1538 = vpop.f32.mrb[0].mxu0
        %v1539 = vadd.f32 %v1122, %v1538
        %v1540 = vpop.f32.mrb[0].mxu0
        %v1541 = vpop.f32.mrb[0].mxu0
        %v1542 = vadd.f32 %v1122, %v1541
        %v1543 = vpop.f32.mrb[0].mxu0
        %1544 = vmatprep.mubr.bf16.mxu0 0
        %1545 = vmatmul.mubr.bf16.gmra.mrb[0].mxu0 %v1202
        %v1546 = vpop.f32.mrb[0].mxu0
        %v1547 = vadd.f32 %v1122, %v1546
        %v1548 = vpop.f32.mrb[0].mxu0
        %v1549 = vpop.f32.mrb[0].mxu0
        %v1550 = vadd.f32 %v1122, %v1549
        %v1551 = vpop.f32.mrb[0].mxu0
        %1552 = vmatprep.mubr.bf16.mxu0 0
        %1553 = vmatmul.mubr.bf16.gmra.mrb[0].mxu0 %v1205
        %v1554 = vpop.f32.mrb[0].mxu0
        %v1555 = vadd.f32 %v1122, %v1554
        %v1556 = vpop.f32.mrb[0].mxu0
        %v1557 = vpop.f32.mrb[0].mxu0
        %v1558 = vadd.f32 %v1122, %v1557
        %v1559 = vpop.f32.mrb[0].mxu0
        %1560 = vdwg.mxu0
        %v1561 = vpack.c.bf16 %v1246, %v1242
        %v1562 = vpack.c.bf16 %v1256, %v1252
        %v1563 = vpack.c.bf16 %v1266, %v1262
        %v1564 = vpack.c.bf16 %v1276, %v1272
        %v1565 = vpack.c.bf16 %v1286, %v1282
        %v1566 = vpack.c.bf16 %v1296, %v1292
        %v1567 = vpack.c.bf16 %v1306, %v1302
        %v1568 = vpack.c.bf16 %v1316, %v1312
        %v1569 = vpack.c.bf16 %v1326, %v1322
        %v1570 = vpack.c.bf16 %v1336, %v1332
        %v1571 = vpack.c.bf16 %v1346, %v1342
        %v1572 = vpack.c.bf16 %v1356, %v1352
        %v1573 = vpack.c.bf16 %v1366, %v1362
        %v1574 = vpack.c.bf16 %v1376, %v1372
        %v1575 = vpack.c.bf16 %v1386, %v1382
        %v1576 = vpack.c.bf16 %v1396, %v1392
        %v1577 = vpack.c.bf16 %v1248, %v1244
        %v1578 = vpack.c.bf16 %v1258, %v1254
        %v1579 = vpack.c.bf16 %v1268, %v1264
        %v1580 = vpack.c.bf16 %v1278, %v1274
        %v1581 = vpack.c.bf16 %v1288, %v1284
        %v1582 = vpack.c.bf16 %v1298, %v1294
        %v1583 = vpack.c.bf16 %v1308, %v1304
        %v1584 = vpack.c.bf16 %v1318, %v1314
        %v1585 = vpack.c.bf16 %v1328, %v1324
        %v1586 = vpack.c.bf16 %v1338, %v1334
        %v1587 = vpack.c.bf16 %v1348, %v1344
        %v1588 = vpack.c.bf16 %v1358, %v1354
        %v1589 = vpack.c.bf16 %v1368, %v1364
        %v1590 = vpack.c.bf16 %v1378, %v1374
        %v1591 = vpack.c.bf16 %v1388, %v1384
        %v1592 = vpack.c.bf16 %v1398, %v1394
        %1593 = vmatprep.subr.bf16.mxu0 0
        %1594 = vmatpush1.bf16.xpose.msra.mxu0 %v1577
        %1595 = vmatprep.subr.bf16.mxu0 0
        %1596 = vmatpush1.bf16.xpose.msra.mxu0 %v1578
        %1597 = vmatprep.subr.bf16.mxu0 0
        %1598 = vmatpush1.bf16.xpose.msra.mxu0 %v1579
        %1599 = vmatprep.subr.bf16.mxu0 0
        %1600 = vmatpush1.bf16.xpose.msra.mxu0 %v1580
        %1601 = vmatprep.subr.bf16.mxu0 0
        %1602 = vmatpush1.bf16.xpose.msra.mxu0 %v1581
        %1603 = vmatprep.subr.bf16.mxu0 0
        %1604 = vmatpush1.bf16.xpose.msra.mxu0 %v1582
        %1605 = vmatprep.subr.bf16.mxu0 0
        %1606 = vmatpush1.bf16.xpose.msra.mxu0 %v1583
        %1607 = vmatprep.subr.bf16.mxu0 0
        %1608 = vmatpush1.bf16.xpose.msra.mxu0 %v1584
        %1609 = vmatprep.subr.bf16.mxu0 0
        %1610 = vmatpush1.bf16.xpose.msra.mxu0 %v1585
        %1611 = vmatprep.subr.bf16.mxu0 0
        %1612 = vmatpush1.bf16.xpose.msra.mxu0 %v1586
        %1613 = vmatprep.subr.bf16.mxu0 0
        %1614 = vmatpush1.bf16.xpose.msra.mxu0 %v1587
        %1615 = vmatprep.subr.bf16.mxu0 0
        %1616 = vmatpush1.bf16.xpose.msra.mxu0 %v1588
        %1617 = vmatprep.subr.bf16.mxu0 0
        %1618 = vmatpush1.bf16.xpose.msra.mxu0 %v1589
        %1619 = vmatprep.subr.bf16.mxu0 0
        %1620 = vmatpush1.bf16.xpose.msra.mxu0 %v1590
        %1621 = vmatprep.subr.bf16.mxu0 0
        %1622 = vmatpush1.bf16.xpose.msra.mxu0 %v1591
        %1623 = vmatprep.subr.bf16.mxu0 0
        %1624 = vmatpush1.bf16.xpose.msra.mxu0 %v1592
        %1625 = vmatprep.mubr.bf16.mxu0 0
        %1626 = vmatmul.mubr.bf16.gmra.mrb[0].mxu0 %v1561
        %v1627 = vpop.f32.mrb[0].mxu0
        %v1628 = vadd.f32 0.0, %v1627
        %v1629 = vpop.f32.mrb[0].mxu0
        %v1630 = vadd.f32 0.0, %v1629
        %v1631 = vpop.f32.mrb[0].mxu0
        %v1632 = vadd.f32 0.0, %v1631
        %v1633 = vpop.f32.mrb[0].mxu0
        %v1634 = vadd.f32 0.0, %v1633
        %1635 = vmatprep.mubr.bf16.mxu0 0
        %1636 = vmatmul.mubr.bf16.gmra.mrb[0].mxu0 %v1562
        %v1637 = vpop.f32.mrb[0].mxu0
        %v1638 = vadd.f32 0.0, %v1637
        %v1639 = vpop.f32.mrb[0].mxu0
        %v1640 = vadd.f32 0.0, %v1639
        %v1641 = vpop.f32.mrb[0].mxu0
        %v1642 = vadd.f32 0.0, %v1641
        %v1643 = vpop.f32.mrb[0].mxu0
        %v1644 = vadd.f32 0.0, %v1643
        %1645 = vmatprep.mubr.bf16.mxu0 0
        %1646 = vmatmul.mubr.bf16.gmra.mrb[0].mxu0 %v1563
        %v1647 = vpop.f32.mrb[0].mxu0
        %v1648 = vadd.f32 0.0, %v1647
        %v1649 = vpop.f32.mrb[0].mxu0
        %v1650 = vadd.f32 0.0, %v1649
        %v1651 = vpop.f32.mrb[0].mxu0
        %v1652 = vadd.f32 0.0, %v1651
        %v1653 = vpop.f32.mrb[0].mxu0
        %v1654 = vadd.f32 0.0, %v1653
        %1655 = vmatprep.mubr.bf16.mxu0 0
        %1656 = vmatmul.mubr.bf16.gmra.mrb[0].mxu0 %v1564
        %v1657 = vpop.f32.mrb[0].mxu0
        %v1658 = vadd.f32 0.0, %v1657
        %v1659 = vpop.f32.mrb[0].mxu0
        %v1660 = vadd.f32 0.0, %v1659
        %v1661 = vpop.f32.mrb[0].mxu0
        %v1662 = vadd.f32 0.0, %v1661
        %v1663 = vpop.f32.mrb[0].mxu0
        %v1664 = vadd.f32 0.0, %v1663
        %1665 = vmatprep.mubr.bf16.mxu0 0
        %1666 = vmatmul.mubr.bf16.gmra.mrb[0].mxu0 %v1565
        %v1667 = vpop.f32.mrb[0].mxu0
        %v1668 = vadd.f32 0.0, %v1667
        %v1669 = vpop.f32.mrb[0].mxu0
        %v1670 = vadd.f32 0.0, %v1669
        %v1671 = vpop.f32.mrb[0].mxu0
        %v1672 = vadd.f32 0.0, %v1671
        %v1673 = vpop.f32.mrb[0].mxu0
        %v1674 = vadd.f32 0.0, %v1673
        %1675 = vmatprep.mubr.bf16.mxu0 0
        %1676 = vmatmul.mubr.bf16.gmra.mrb[0].mxu0 %v1566
        %v1677 = vpop.f32.mrb[0].mxu0
        %v1678 = vadd.f32 0.0, %v1677
        %v1679 = vpop.f32.mrb[0].mxu0
        %v1680 = vadd.f32 0.0, %v1679
        %v1681 = vpop.f32.mrb[0].mxu0
        %v1682 = vadd.f32 0.0, %v1681
        %v1683 = vpop.f32.mrb[0].mxu0
        %v1684 = vadd.f32 0.0, %v1683
        %1685 = vmatprep.mubr.bf16.mxu0 0
        %1686 = vmatmul.mubr.bf16.gmra.mrb[0].mxu0 %v1567
        %v1687 = vpop.f32.mrb[0].mxu0
        %v1688 = vadd.f32 0.0, %v1687
        %v1689 = vpop.f32.mrb[0].mxu0
        %v1690 = vadd.f32 0.0, %v1689
        %v1691 = vpop.f32.mrb[0].mxu0
        %v1692 = vadd.f32 0.0, %v1691
        %v1693 = vpop.f32.mrb[0].mxu0
        %v1694 = vadd.f32 0.0, %v1693
        %1695 = vmatprep.mubr.bf16.mxu0 0
        %1696 = vmatmul.mubr.bf16.gmra.mrb[0].mxu0 %v1568
        %v1697 = vpop.f32.mrb[0].mxu0
        %v1698 = vadd.f32 0.0, %v1697
        %v1699 = vpop.f32.mrb[0].mxu0
        %v1700 = vadd.f32 0.0, %v1699
        %v1701 = vpop.f32.mrb[0].mxu0
        %v1702 = vadd.f32 0.0, %v1701
        %v1703 = vpop.f32.mrb[0].mxu0
        %v1704 = vadd.f32 0.0, %v1703
        %1705 = vmatprep.mubr.bf16.mxu0 0
        %1706 = vmatmul.mubr.bf16.gmra.mrb[0].mxu0 %v1569
        %v1707 = vpop.f32.mrb[0].mxu0
        %v1708 = vadd.f32 0.0, %v1707
        %v1709 = vpop.f32.mrb[0].mxu0
        %v1710 = vadd.f32 0.0, %v1709
        %v1711 = vpop.f32.mrb[0].mxu0
        %v1712 = vadd.f32 0.0, %v1711
        %v1713 = vpop.f32.mrb[0].mxu0
        %v1714 = vadd.f32 0.0, %v1713
        %1715 = vmatprep.mubr.bf16.mxu0 0
        %1716 = vmatmul.mubr.bf16.gmra.mrb[0].mxu0 %v1570
        %v1717 = vpop.f32.mrb[0].mxu0
        %v1718 = vadd.f32 0.0, %v1717
        %v1719 = vpop.f32.mrb[0].mxu0
        %v1720 = vadd.f32 0.0, %v1719
        %v1721 = vpop.f32.mrb[0].mxu0
        %v1722 = vadd.f32 0.0, %v1721
        %v1723 = vpop.f32.mrb[0].mxu0
        %v1724 = vadd.f32 0.0, %v1723
        %1725 = vmatprep.mubr.bf16.mxu0 0
        %1726 = vmatmul.mubr.bf16.gmra.mrb[0].mxu0 %v1571
        %v1727 = vpop.f32.mrb[0].mxu0
        %v1728 = vadd.f32 0.0, %v1727
        %v1729 = vpop.f32.mrb[0].mxu0
        %v1730 = vadd.f32 0.0, %v1729
        %v1731 = vpop.f32.mrb[0].mxu0
        %v1732 = vadd.f32 0.0, %v1731
        %v1733 = vpop.f32.mrb[0].mxu0
        %v1734 = vadd.f32 0.0, %v1733
        %1735 = vmatprep.mubr.bf16.mxu0 0
        %1736 = vmatmul.mubr.bf16.gmra.mrb[0].mxu0 %v1572
        %v1737 = vpop.f32.mrb[0].mxu0
        %v1738 = vadd.f32 0.0, %v1737
        %v1739 = vpop.f32.mrb[0].mxu0
        %v1740 = vadd.f32 0.0, %v1739
        %v1741 = vpop.f32.mrb[0].mxu0
        %v1742 = vadd.f32 0.0, %v1741
        %v1743 = vpop.f32.mrb[0].mxu0
        %v1744 = vadd.f32 0.0, %v1743
        %1745 = vmatprep.mubr.bf16.mxu0 0
        %1746 = vmatmul.mubr.bf16.gmra.mrb[0].mxu0 %v1573
        %v1747 = vpop.f32.mrb[0].mxu0
        %v1748 = vadd.f32 0.0, %v1747
        %v1749 = vpop.f32.mrb[0].mxu0
        %v1750 = vadd.f32 0.0, %v1749
        %v1751 = vpop.f32.mrb[0].mxu0
        %v1752 = vadd.f32 0.0, %v1751
        %v1753 = vpop.f32.mrb[0].mxu0
        %v1754 = vadd.f32 0.0, %v1753
        %1755 = vmatprep.mubr.bf16.mxu0 0
        %1756 = vmatmul.mubr.bf16.gmra.mrb[0].mxu0 %v1574
        %v1757 = vpop.f32.mrb[0].mxu0
        %v1758 = vadd.f32 0.0, %v1757
        %v1759 = vpop.f32.mrb[0].mxu0
        %v1760 = vadd.f32 0.0, %v1759
        %v1761 = vpop.f32.mrb[0].mxu0
        %v1762 = vadd.f32 0.0, %v1761
        %v1763 = vpop.f32.mrb[0].mxu0
        %v1764 = vadd.f32 0.0, %v1763
        %1765 = vmatprep.mubr.bf16.mxu0 0
        %1766 = vmatmul.mubr.bf16.gmra.mrb[0].mxu0 %v1575
        %v1767 = vpop.f32.mrb[0].mxu0
        %v1768 = vadd.f32 0.0, %v1767
        %v1769 = vpop.f32.mrb[0].mxu0
        %v1770 = vadd.f32 0.0, %v1769
        %v1771 = vpop.f32.mrb[0].mxu0
        %v1772 = vadd.f32 0.0, %v1771
        %v1773 = vpop.f32.mrb[0].mxu0
        %v1774 = vadd.f32 0.0, %v1773
        %1775 = vmatprep.mubr.bf16.mxu0 0
        %1776 = vmatmul.mubr.bf16.gmra.mrb[0].mxu0 %v1576
        %v1777 = vpop.f32.mrb[0].mxu0
        %v1778 = vadd.f32 0.0, %v1777
        %v1779 = vpop.f32.mrb[0].mxu0
        %v1780 = vadd.f32 0.0, %v1779
        %v1781 = vpop.f32.mrb[0].mxu0
        %v1782 = vadd.f32 0.0, %v1781
        %v1783 = vpop.f32.mrb[0].mxu0
        %v1784 = vadd.f32 0.0, %v1783
        %1785 = vdwg.mxu0
        %v1786 = vmax.f32 %v1628, %v1630
        %1787 = vmax.xlane.f32.xlu0 %v1786
        %v1788 = vpop.xlane.xlu0 %1787
        %v1789 = vmax.f32 %v1632, %v1634
        %1790 = vmax.xlane.f32.xlu0 %v1789
        %v1791 = vpop.xlane.xlu0 %1790
        %v1792 = vmax.f32 %v1638, %v1640
        %1793 = vmax.xlane.f32.xlu0 %v1792
        %v1794 = vpop.xlane.xlu0 %1793
        %v1795 = vmax.f32 %v1642, %v1644
        %1796 = vmax.xlane.f32.xlu0 %v1795
        %v1797 = vpop.xlane.xlu0 %1796
        %v1798 = vmax.f32 %v1648, %v1650
        %1799 = vmax.xlane.f32.xlu0 %v1798
        %v1800 = vpop.xlane.xlu0 %1799
        %v1801 = vmax.f32 %v1652, %v1654
        %1802 = vmax.xlane.f32.xlu0 %v1801
        %v1803 = vpop.xlane.xlu0 %1802
        %v1804 = vmax.f32 %v1658, %v1660
        %1805 = vmax.xlane.f32.xlu0 %v1804
        %v1806 = vpop.xlane.xlu0 %1805
        %v1807 = vmax.f32 %v1662, %v1664
        %1808 = vmax.xlane.f32.xlu0 %v1807
        %v1809 = vpop.xlane.xlu0 %1808
        %v1810 = vmax.f32 %v1668, %v1670
        %1811 = vmax.xlane.f32.xlu0 %v1810
        %v1812 = vpop.xlane.xlu0 %1811
        %v1813 = vmax.f32 %v1672, %v1674
        %1814 = vmax.xlane.f32.xlu0 %v1813
        %v1815 = vpop.xlane.xlu0 %1814
        %v1816 = vmax.f32 %v1678, %v1680
        %1817 = vmax.xlane.f32.xlu0 %v1816
        %v1818 = vpop.xlane.xlu0 %1817
        %v1819 = vmax.f32 %v1682, %v1684
        %1820 = vmax.xlane.f32.xlu0 %v1819
        %v1821 = vpop.xlane.xlu0 %1820
        %v1822 = vmax.f32 %v1688, %v1690
        %1823 = vmax.xlane.f32.xlu0 %v1822
        %v1824 = vpop.xlane.xlu0 %1823
        %v1825 = vmax.f32 %v1692, %v1694
        %1826 = vmax.xlane.f32.xlu0 %v1825
        %v1827 = vpop.xlane.xlu0 %1826
        %v1828 = vmax.f32 %v1698, %v1700
        %1829 = vmax.xlane.f32.xlu0 %v1828
        %v1830 = vpop.xlane.xlu0 %1829
        %v1831 = vmax.f32 %v1702, %v1704
        %1832 = vmax.xlane.f32.xlu0 %v1831
        %v1833 = vpop.xlane.xlu0 %1832
        %v1834 = vmax.f32 %v1708, %v1710
        %1835 = vmax.xlane.f32.xlu0 %v1834
        %v1836 = vpop.xlane.xlu0 %1835
        %v1837 = vmax.f32 %v1712, %v1714
        %1838 = vmax.xlane.f32.xlu0 %v1837
        %v1839 = vpop.xlane.xlu0 %1838
        %v1840 = vmax.f32 %v1718, %v1720
        %1841 = vmax.xlane.f32.xlu0 %v1840
        %v1842 = vpop.xlane.xlu0 %1841
        %v1843 = vmax.f32 %v1722, %v1724
        %1844 = vmax.xlane.f32.xlu0 %v1843
        %v1845 = vpop.xlane.xlu0 %1844
        %v1846 = vmax.f32 %v1728, %v1730
        %1847 = vmax.xlane.f32.xlu0 %v1846
        %v1848 = vpop.xlane.xlu0 %1847
        %v1849 = vmax.f32 %v1732, %v1734
        %1850 = vmax.xlane.f32.xlu0 %v1849
        %v1851 = vpop.xlane.xlu0 %1850
        %v1852 = vmax.f32 %v1738, %v1740
        %1853 = vmax.xlane.f32.xlu0 %v1852
        %v1854 = vpop.xlane.xlu0 %1853
        %v1855 = vmax.f32 %v1742, %v1744
        %1856 = vmax.xlane.f32.xlu0 %v1855
        %v1857 = vpop.xlane.xlu0 %1856
        %v1858 = vmax.f32 %v1748, %v1750
        %1859 = vmax.xlane.f32.xlu0 %v1858
        %v1860 = vpop.xlane.xlu0 %1859
        %v1861 = vmax.f32 %v1752, %v1754
        %1862 = vmax.xlane.f32.xlu0 %v1861
        %v1863 = vpop.xlane.xlu0 %1862
        %v1864 = vmax.f32 %v1758, %v1760
        %1865 = vmax.xlane.f32.xlu0 %v1864
        %v1866 = vpop.xlane.xlu0 %1865
        %v1867 = vmax.f32 %v1762, %v1764
        %1868 = vmax.xlane.f32.xlu0 %v1867
        %v1869 = vpop.xlane.xlu0 %1868
        %v1870 = vmax.f32 %v1768, %v1770
        %1871 = vmax.xlane.f32.xlu0 %v1870
        %v1872 = vpop.xlane.xlu0 %1871
        %v1873 = vmax.f32 %v1772, %v1774
        %1874 = vmax.xlane.f32.xlu0 %v1873
        %v1875 = vpop.xlane.xlu0 %1874
        %v1876 = vmax.f32 %v1778, %v1780
        %1877 = vmax.xlane.f32.xlu0 %v1876
        %v1878 = vpop.xlane.xlu0 %1877
        %v1879 = vmax.f32 %v1782, %v1784
        %1880 = vmax.xlane.f32.xlu0 %v1879
        %v1881 = vpop.xlane.xlu0 %1880
        %v1882 = vsub.f32 %v1628, %v1788
        %v1883 = vsub.f32 %v1630, %v1788
        %v1884 = vsub.f32 %v1632, %v1791
        %v1885 = vsub.f32 %v1634, %v1791
        %v1886 = vsub.f32 %v1638, %v1794
        %v1887 = vsub.f32 %v1640, %v1794
        %v1888 = vsub.f32 %v1642, %v1797
        %v1889 = vsub.f32 %v1644, %v1797
        %v1890 = vsub.f32 %v1648, %v1800
        %v1891 = vsub.f32 %v1650, %v1800
        %v1892 = vsub.f32 %v1652, %v1803
        %v1893 = vsub.f32 %v1654, %v1803
        %v1894 = vsub.f32 %v1658, %v1806
        %v1895 = vsub.f32 %v1660, %v1806
        %v1896 = vsub.f32 %v1662, %v1809
        %v1897 = vsub.f32 %v1664, %v1809
        %v1898 = vsub.f32 %v1668, %v1812
        %v1899 = vsub.f32 %v1670, %v1812
        %v1900 = vsub.f32 %v1672, %v1815
        %v1901 = vsub.f32 %v1674, %v1815
        %v1902 = vsub.f32 %v1678, %v1818
        %v1903 = vsub.f32 %v1680, %v1818
        %v1904 = vsub.f32 %v1682, %v1821
        %v1905 = vsub.f32 %v1684, %v1821
        %v1906 = vsub.f32 %v1688, %v1824
        %v1907 = vsub.f32 %v1690, %v1824
        %v1908 = vsub.f32 %v1692, %v1827
        %v1909 = vsub.f32 %v1694, %v1827
        %v1910 = vsub.f32 %v1698, %v1830
        %v1911 = vsub.f32 %v1700, %v1830
        %v1912 = vsub.f32 %v1702, %v1833
        %v1913 = vsub.f32 %v1704, %v1833
        %v1914 = vsub.f32 %v1708, %v1836
        %v1915 = vsub.f32 %v1710, %v1836
        %v1916 = vsub.f32 %v1712, %v1839
        %v1917 = vsub.f32 %v1714, %v1839
        %v1918 = vsub.f32 %v1718, %v1842
        %v1919 = vsub.f32 %v1720, %v1842
        %v1920 = vsub.f32 %v1722, %v1845
        %v1921 = vsub.f32 %v1724, %v1845
        %v1922 = vsub.f32 %v1728, %v1848
        %v1923 = vsub.f32 %v1730, %v1848
        %v1924 = vsub.f32 %v1732, %v1851
        %v1925 = vsub.f32 %v1734, %v1851
        %v1926 = vsub.f32 %v1738, %v1854
        %v1927 = vsub.f32 %v1740, %v1854
        %v1928 = vsub.f32 %v1742, %v1857
        %v1929 = vsub.f32 %v1744, %v1857
        %v1930 = vsub.f32 %v1748, %v1860
        %v1931 = vsub.f32 %v1750, %v1860
        %v1932 = vsub.f32 %v1752, %v1863
        %v1933 = vsub.f32 %v1754, %v1863
        %v1934 = vsub.f32 %v1758, %v1866
        %v1935 = vsub.f32 %v1760, %v1866
        %v1936 = vsub.f32 %v1762, %v1869
        %v1937 = vsub.f32 %v1764, %v1869
        %v1938 = vsub.f32 %v1768, %v1872
        %v1939 = vsub.f32 %v1770, %v1872
        %v1940 = vsub.f32 %v1772, %v1875
        %v1941 = vsub.f32 %v1774, %v1875
        %v1942 = vsub.f32 %v1778, %v1878
        %v1943 = vsub.f32 %v1780, %v1878
        %v1944 = vsub.f32 %v1782, %v1881
        %v1945 = vsub.f32 %v1784, %v1881
        %v1946 = vmul.f32 %v1882, 1.442695
        %v1947 = vpow.pop %v1946
        %v1948 = vmul.f32 %v1883, 1.442695
        %v1949 = vpow.pop %v1948
        %v1950 = vmul.f32 %v1884, 1.442695
        %v1951 = vpow.pop %v1950
        %v1952 = vmul.f32 %v1885, 1.442695
        %v1953 = vpow.pop %v1952
        %v1954 = vmul.f32 %v1886, 1.442695
        %v1955 = vpow.pop %v1954
        %v1956 = vmul.f32 %v1887, 1.442695
        %v1957 = vpow.pop %v1956
        %v1958 = vmul.f32 %v1888, 1.442695
        %v1959 = vpow.pop %v1958
        %v1960 = vmul.f32 %v1889, 1.442695
        %v1961 = vpow.pop %v1960
        %v1962 = vmul.f32 %v1890, 1.442695
        %v1963 = vpow.pop %v1962
        %v1964 = vmul.f32 %v1891, 1.442695
        %v1965 = vpow.pop %v1964
        %v1966 = vmul.f32 %v1892, 1.442695
        %v1967 = vpow.pop %v1966
        %v1968 = vmul.f32 %v1893, 1.442695
        %v1969 = vpow.pop %v1968
        %v1970 = vmul.f32 %v1894, 1.442695
        %v1971 = vpow.pop %v1970
        %v1972 = vmul.f32 %v1895, 1.442695
        %v1973 = vpow.pop %v1972
        %v1974 = vmul.f32 %v1896, 1.442695
        %v1975 = vpow.pop %v1974
        %v1976 = vmul.f32 %v1897, 1.442695
        %v1977 = vpow.pop %v1976
        %v1978 = vmul.f32 %v1898, 1.442695
        %v1979 = vpow.pop %v1978
        %v1980 = vmul.f32 %v1899, 1.442695
        %v1981 = vpow.pop %v1980
        %v1982 = vmul.f32 %v1900, 1.442695
        %v1983 = vpow.pop %v1982
        %v1984 = vmul.f32 %v1901, 1.442695
        %v1985 = vpow.pop %v1984
        %v1986 = vmul.f32 %v1902, 1.442695
        %v1987 = vpow.pop %v1986
        %v1988 = vmul.f32 %v1903, 1.442695
        %v1989 = vpow.pop %v1988
        %v1990 = vmul.f32 %v1904, 1.442695
        %v1991 = vpow.pop %v1990
        %v1992 = vmul.f32 %v1905, 1.442695
        %v1993 = vpow.pop %v1992
        %v1994 = vmul.f32 %v1906, 1.442695
        %v1995 = vpow.pop %v1994
        %v1996 = vmul.f32 %v1907, 1.442695
        %v1997 = vpow.pop %v1996
        %v1998 = vmul.f32 %v1908, 1.442695
        %v1999 = vpow.pop %v1998
        %v2000 = vmul.f32 %v1909, 1.442695
        %v2001 = vpow.pop %v2000
        %v2002 = vmul.f32 %v1910, 1.442695
        %v2003 = vpow.pop %v2002
        %v2004 = vmul.f32 %v1911, 1.442695
        %v2005 = vpow.pop %v2004
        %v2006 = vmul.f32 %v1912, 1.442695
        %v2007 = vpow.pop %v2006
        %v2008 = vmul.f32 %v1913, 1.442695
        %v2009 = vpow.pop %v2008
        %v2010 = vmul.f32 %v1914, 1.442695
        %v2011 = vpow.pop %v2010
        %v2012 = vmul.f32 %v1915, 1.442695
        %v2013 = vpow.pop %v2012
        %v2014 = vmul.f32 %v1916, 1.442695
        %v2015 = vpow.pop %v2014
        %v2016 = vmul.f32 %v1917, 1.442695
        %v2017 = vpow.pop %v2016
        %v2018 = vmul.f32 %v1918, 1.442695
        %v2019 = vpow.pop %v2018
        %v2020 = vmul.f32 %v1919, 1.442695
        %v2021 = vpow.pop %v2020
        %v2022 = vmul.f32 %v1920, 1.442695
        %v2023 = vpow.pop %v2022
        %v2024 = vmul.f32 %v1921, 1.442695
        %v2025 = vpow.pop %v2024
        %v2026 = vmul.f32 %v1922, 1.442695
        %v2027 = vpow.pop %v2026
        %v2028 = vmul.f32 %v1923, 1.442695
        %v2029 = vpow.pop %v2028
        %v2030 = vmul.f32 %v1924, 1.442695
        %v2031 = vpow.pop %v2030
        %v2032 = vmul.f32 %v1925, 1.442695
        %v2033 = vpow.pop %v2032
        %v2034 = vmul.f32 %v1926, 1.442695
        %v2035 = vpow.pop %v2034
        %v2036 = vmul.f32 %v1927, 1.442695
        %v2037 = vpow.pop %v2036
        %v2038 = vmul.f32 %v1928, 1.442695
        %v2039 = vpow.pop %v2038
        %v2040 = vmul.f32 %v1929, 1.442695
        %v2041 = vpow.pop %v2040
        %v2042 = vmul.f32 %v1930, 1.442695
        %v2043 = vpow.pop %v2042
        %v2044 = vmul.f32 %v1931, 1.442695
        %v2045 = vpow.pop %v2044
        %v2046 = vmul.f32 %v1932, 1.442695
        %v2047 = vpow.pop %v2046
        %v2048 = vmul.f32 %v1933, 1.442695
        %v2049 = vpow.pop %v2048
        %v2050 = vmul.f32 %v1934, 1.442695
        %v2051 = vpow.pop %v2050
        %v2052 = vmul.f32 %v1935, 1.442695
        %v2053 = vpow.pop %v2052
        %v2054 = vmul.f32 %v1936, 1.442695
        %v2055 = vpow.pop %v2054
        %v2056 = vmul.f32 %v1937, 1.442695
        %v2057 = vpow.pop %v2056
        %v2058 = vmul.f32 %v1938, 1.442695
        %v2059 = vpow.pop %v2058
        %v2060 = vmul.f32 %v1939, 1.442695
        %v2061 = vpow.pop %v2060
        %v2062 = vmul.f32 %v1940, 1.442695
        %v2063 = vpow.pop %v2062
        %v2064 = vmul.f32 %v1941, 1.442695
        %v2065 = vpow.pop %v2064
        %v2066 = vmul.f32 %v1942, 1.442695
        %v2067 = vpow.pop %v2066
        %v2068 = vmul.f32 %v1943, 1.442695
        %v2069 = vpow.pop %v2068
        %v2070 = vmul.f32 %v1944, 1.442695
        %v2071 = vpow.pop %v2070
        %v2072 = vmul.f32 %v1945, 1.442695
        %v2073 = vpow.pop %v2072
        %v2074 = vadd.f32 %v1947, %v1949
        %2075 = vadd.xlane.f32.xlu0 %v2074
        %v2076 = vpop.xlane.xlu0 %2075
        %v2077 = vadd.f32 %v1951, %v1953
        %2078 = vadd.xlane.f32.xlu0 %v2077
        %v2079 = vpop.xlane.xlu0 %2078
        %v2080 = vadd.f32 %v1955, %v1957
        %2081 = vadd.xlane.f32.xlu0 %v2080
        %v2082 = vpop.xlane.xlu0 %2081
        %v2083 = vadd.f32 %v1959, %v1961
        %2084 = vadd.xlane.f32.xlu0 %v2083
        %v2085 = vpop.xlane.xlu0 %2084
        %v2086 = vadd.f32 %v1963, %v1965
        %2087 = vadd.xlane.f32.xlu0 %v2086
        %v2088 = vpop.xlane.xlu0 %2087
        %v2089 = vadd.f32 %v1967, %v1969
        %2090 = vadd.xlane.f32.xlu0 %v2089
        %v2091 = vpop.xlane.xlu0 %2090
        %v2092 = vadd.f32 %v1971, %v1973
        %2093 = vadd.xlane.f32.xlu0 %v2092
        %v2094 = vpop.xlane.xlu0 %2093
        %v2095 = vadd.f32 %v1975, %v1977
        %2096 = vadd.xlane.f32.xlu0 %v2095
        %v2097 = vpop.xlane.xlu0 %2096
        %v2098 = vadd.f32 %v1979, %v1981
        %2099 = vadd.xlane.f32.xlu0 %v2098
        %v2100 = vpop.xlane.xlu0 %2099
        %v2101 = vadd.f32 %v1983, %v1985
        %2102 = vadd.xlane.f32.xlu0 %v2101
        %v2103 = vpop.xlane.xlu0 %2102
        %v2104 = vadd.f32 %v1987, %v1989
        %2105 = vadd.xlane.f32.xlu0 %v2104
        %v2106 = vpop.xlane.xlu0 %2105
        %v2107 = vadd.f32 %v1991, %v1993
        %2108 = vadd.xlane.f32.xlu0 %v2107
        %v2109 = vpop.xlane.xlu0 %2108
        %v2110 = vadd.f32 %v1995, %v1997
        %2111 = vadd.xlane.f32.xlu0 %v2110
        %v2112 = vpop.xlane.xlu0 %2111
        %v2113 = vadd.f32 %v1999, %v2001
        %2114 = vadd.xlane.f32.xlu0 %v2113
        %v2115 = vpop.xlane.xlu0 %2114
        %v2116 = vadd.f32 %v2003, %v2005
        %2117 = vadd.xlane.f32.xlu0 %v2116
        %v2118 = vpop.xlane.xlu0 %2117
        %v2119 = vadd.f32 %v2007, %v2009
        %2120 = vadd.xlane.f32.xlu0 %v2119
        %v2121 = vpop.xlane.xlu0 %2120
        %v2122 = vadd.f32 %v2011, %v2013
        %2123 = vadd.xlane.f32.xlu0 %v2122
        %v2124 = vpop.xlane.xlu0 %2123
        %v2125 = vadd.f32 %v2015, %v2017
        %2126 = vadd.xlane.f32.xlu0 %v2125
        %v2127 = vpop.xlane.xlu0 %2126
        %v2128 = vadd.f32 %v2019, %v2021
        %2129 = vadd.xlane.f32.xlu0 %v2128
        %v2130 = vpop.xlane.xlu0 %2129
        %v2131 = vadd.f32 %v2023, %v2025
        %2132 = vadd.xlane.f32.xlu0 %v2131
        %v2133 = vpop.xlane.xlu0 %2132
        %v2134 = vadd.f32 %v2027, %v2029
        %2135 = vadd.xlane.f32.xlu0 %v2134
        %v2136 = vpop.xlane.xlu0 %2135
        %v2137 = vadd.f32 %v2031, %v2033
        %2138 = vadd.xlane.f32.xlu0 %v2137
        %v2139 = vpop.xlane.xlu0 %2138
        %v2140 = vadd.f32 %v2035, %v2037
        %2141 = vadd.xlane.f32.xlu0 %v2140
        %v2142 = vpop.xlane.xlu0 %2141
        %v2143 = vadd.f32 %v2039, %v2041
        %2144 = vadd.xlane.f32.xlu0 %v2143
        %v2145 = vpop.xlane.xlu0 %2144
        %v2146 = vadd.f32 %v2043, %v2045
        %2147 = vadd.xlane.f32.xlu0 %v2146
        %v2148 = vpop.xlane.xlu0 %2147
        %v2149 = vadd.f32 %v2047, %v2049
        %2150 = vadd.xlane.f32.xlu0 %v2149
        %v2151 = vpop.xlane.xlu0 %2150
        %v2152 = vadd.f32 %v2051, %v2053
        %2153 = vadd.xlane.f32.xlu0 %v2152
        %v2154 = vpop.xlane.xlu0 %2153
        %v2155 = vadd.f32 %v2055, %v2057
        %2156 = vadd.xlane.f32.xlu0 %v2155
        %v2157 = vpop.xlane.xlu0 %2156
        %v2158 = vadd.f32 %v2059, %v2061
        %2159 = vadd.xlane.f32.xlu0 %v2158
        %v2160 = vpop.xlane.xlu0 %2159
        %v2161 = vadd.f32 %v2063, %v2065
        %2162 = vadd.xlane.f32.xlu0 %v2161
        %v2163 = vpop.xlane.xlu0 %2162
        %v2164 = vadd.f32 %v2067, %v2069
        %2165 = vadd.xlane.f32.xlu0 %v2164
        %v2166 = vpop.xlane.xlu0 %2165
        %v2167 = vadd.f32 %v2071, %v2073
        %2168 = vadd.xlane.f32.xlu0 %v2167
        %v2169 = vpop.xlane.xlu0 %2168
        %v2170 = vrcp.pop %v2076
        %v2171 = vrcp.pop %v2079
        %v2172 = vrcp.pop %v2082
        %v2173 = vrcp.pop %v2085
        %v2174 = vrcp.pop %v2088
        %v2175 = vrcp.pop %v2091
        %v2176 = vrcp.pop %v2094
        %v2177 = vrcp.pop %v2097
        %v2178 = vrcp.pop %v2100
        %v2179 = vrcp.pop %v2103
        %v2180 = vrcp.pop %v2106
        %v2181 = vrcp.pop %v2109
        %v2182 = vrcp.pop %v2112
        %v2183 = vrcp.pop %v2115
        %v2184 = vrcp.pop %v2118
        %v2185 = vrcp.pop %v2121
        %v2186 = vrcp.pop %v2124
        %v2187 = vrcp.pop %v2127
        %v2188 = vrcp.pop %v2130
        %v2189 = vrcp.pop %v2133
        %v2190 = vrcp.pop %v2136
        %v2191 = vrcp.pop %v2139
        %v2192 = vrcp.pop %v2142
        %v2193 = vrcp.pop %v2145
        %v2194 = vrcp.pop %v2148
        %v2195 = vrcp.pop %v2151
        %v2196 = vrcp.pop %v2154
        %v2197 = vrcp.pop %v2157
        %v2198 = vrcp.pop %v2160
        %v2199 = vrcp.pop %v2163
        %v2200 = vrcp.pop %v2166
        %v2201 = vrcp.pop %v2169
        %v2202 = vmul.f32 %v1947, %v2170
        %v2203 = vmul.f32 %v1949, %v2170
        %v2204 = vmul.f32 %v1951, %v2171
        %v2205 = vmul.f32 %v1953, %v2171
        %v2206 = vmul.f32 %v1955, %v2172
        %v2207 = vmul.f32 %v1957, %v2172
        %v2208 = vmul.f32 %v1959, %v2173
        %v2209 = vmul.f32 %v1961, %v2173
        %v2210 = vmul.f32 %v1963, %v2174
        %v2211 = vmul.f32 %v1965, %v2174
        %v2212 = vmul.f32 %v1967, %v2175
        %v2213 = vmul.f32 %v1969, %v2175
        %v2214 = vmul.f32 %v1971, %v2176
        %v2215 = vmul.f32 %v1973, %v2176
        %v2216 = vmul.f32 %v1975, %v2177
        %v2217 = vmul.f32 %v1977, %v2177
        %v2218 = vmul.f32 %v1979, %v2178
        %v2219 = vmul.f32 %v1981, %v2178
        %v2220 = vmul.f32 %v1983, %v2179
        %v2221 = vmul.f32 %v1985, %v2179
        %v2222 = vmul.f32 %v1987, %v2180
        %v2223 = vmul.f32 %v1989, %v2180
        %v2224 = vmul.f32 %v1991, %v2181
        %v2225 = vmul.f32 %v1993, %v2181
        %v2226 = vmul.f32 %v1995, %v2182
        %v2227 = vmul.f32 %v1997, %v2182
        %v2228 = vmul.f32 %v1999, %v2183
        %v2229 = vmul.f32 %v2001, %v2183
        %v2230 = vmul.f32 %v2003, %v2184
        %v2231 = vmul.f32 %v2005, %v2184
        %v2232 = vmul.f32 %v2007, %v2185
        %v2233 = vmul.f32 %v2009, %v2185
        %v2234 = vmul.f32 %v2011, %v2186
        %v2235 = vmul.f32 %v2013, %v2186
        %v2236 = vmul.f32 %v2015, %v2187
        %v2237 = vmul.f32 %v2017, %v2187
        %v2238 = vmul.f32 %v2019, %v2188
        %v2239 = vmul.f32 %v2021, %v2188
        %v2240 = vmul.f32 %v2023, %v2189
        %v2241 = vmul.f32 %v2025, %v2189
        %v2242 = vmul.f32 %v2027, %v2190
        %v2243 = vmul.f32 %v2029, %v2190
        %v2244 = vmul.f32 %v2031, %v2191
        %v2245 = vmul.f32 %v2033, %v2191
        %v2246 = vmul.f32 %v2035, %v2192
        %v2247 = vmul.f32 %v2037, %v2192
        %v2248 = vmul.f32 %v2039, %v2193
        %v2249 = vmul.f32 %v2041, %v2193
        %v2250 = vmul.f32 %v2043, %v2194
        %v2251 = vmul.f32 %v2045, %v2194
        %v2252 = vmul.f32 %v2047, %v2195
        %v2253 = vmul.f32 %v2049, %v2195
        %v2254 = vmul.f32 %v2051, %v2196
        %v2255 = vmul.f32 %v2053, %v2196
        %v2256 = vmul.f32 %v2055, %v2197
        %v2257 = vmul.f32 %v2057, %v2197
        %v2258 = vmul.f32 %v2059, %v2198
        %v2259 = vmul.f32 %v2061, %v2198
        %v2260 = vmul.f32 %v2063, %v2199
        %v2261 = vmul.f32 %v2065, %v2199
        %v2262 = vmul.f32 %v2067, %v2200
        %v2263 = vmul.f32 %v2069, %v2200
        %v2264 = vmul.f32 %v2071, %v2201
        %v2265 = vmul.f32 %v2073, %v2201
        %v2266 = vpack.c.bf16 %v2204, %v2202
        %v2267 = vpack.c.bf16 %v2205, %v2203
        %v2268 = vpack.c.bf16 %v2208, %v2206
        %v2269 = vpack.c.bf16 %v2209, %v2207
        %v2270 = vpack.c.bf16 %v2212, %v2210
        %v2271 = vpack.c.bf16 %v2213, %v2211
        %v2272 = vpack.c.bf16 %v2216, %v2214
        %v2273 = vpack.c.bf16 %v2217, %v2215
        %v2274 = vpack.c.bf16 %v2220, %v2218
        %v2275 = vpack.c.bf16 %v2221, %v2219
        %v2276 = vpack.c.bf16 %v2224, %v2222
        %v2277 = vpack.c.bf16 %v2225, %v2223
        %v2278 = vpack.c.bf16 %v2228, %v2226
        %v2279 = vpack.c.bf16 %v2229, %v2227
        %v2280 = vpack.c.bf16 %v2232, %v2230
        %v2281 = vpack.c.bf16 %v2233, %v2231
        %v2282 = vpack.c.bf16 %v2236, %v2234
        %v2283 = vpack.c.bf16 %v2237, %v2235
        %v2284 = vpack.c.bf16 %v2240, %v2238
        %v2285 = vpack.c.bf16 %v2241, %v2239
        %v2286 = vpack.c.bf16 %v2244, %v2242
        %v2287 = vpack.c.bf16 %v2245, %v2243
        %v2288 = vpack.c.bf16 %v2248, %v2246
        %v2289 = vpack.c.bf16 %v2249, %v2247
        %v2290 = vpack.c.bf16 %v2252, %v2250
        %v2291 = vpack.c.bf16 %v2253, %v2251
        %v2292 = vpack.c.bf16 %v2256, %v2254
        %v2293 = vpack.c.bf16 %v2257, %v2255
        %v2294 = vpack.c.bf16 %v2260, %v2258
        %v2295 = vpack.c.bf16 %v2261, %v2259
        %v2296 = vpack.c.bf16 %v2264, %v2262
        %v2297 = vpack.c.bf16 %v2265, %v2263
        %v2298 = vpack.c.bf16 %v1438, %v1435
        %v2299 = vpack.c.bf16 %v1446, %v1443
        %v2300 = vpack.c.bf16 %v1454, %v1451
        %v2301 = vpack.c.bf16 %v1462, %v1459
        %v2302 = vpack.c.bf16 %v1470, %v1467
        %v2303 = vpack.c.bf16 %v1478, %v1475
        %v2304 = vpack.c.bf16 %v1486, %v1483
        %v2305 = vpack.c.bf16 %v1494, %v1491
        %v2306 = vpack.c.bf16 %v1502, %v1499
        %v2307 = vpack.c.bf16 %v1510, %v1507
        %v2308 = vpack.c.bf16 %v1518, %v1515
        %v2309 = vpack.c.bf16 %v1526, %v1523
        %v2310 = vpack.c.bf16 %v1534, %v1531
        %v2311 = vpack.c.bf16 %v1542, %v1539
        %v2312 = vpack.c.bf16 %v1550, %v1547
        %v2313 = vpack.c.bf16 %v1558, %v1555
        %2314 = vmatprep.subr.bf16.mxu0 0
        %2315 = vmatpush1.bf16.msra.mxu0 %v2298
        %2316 = vmatprep.subr.bf16.mxu0 0
        %2317 = vmatpush1.bf16.msra.mxu0 %v2299
        %2318 = vmatprep.subr.bf16.mxu0 0
        %2319 = vmatpush1.bf16.msra.mxu0 %v2300
        %2320 = vmatprep.subr.bf16.mxu0 0
        %2321 = vmatpush1.bf16.msra.mxu0 %v2301
        %2322 = vmatprep.subr.bf16.mxu0 0
        %2323 = vmatpush1.bf16.msra.mxu0 %v2302
        %2324 = vmatprep.subr.bf16.mxu0 0
        %2325 = vmatpush1.bf16.msra.mxu0 %v2303
        %2326 = vmatprep.subr.bf16.mxu0 0
        %2327 = vmatpush1.bf16.msra.mxu0 %v2304
        %2328 = vmatprep.subr.bf16.mxu0 0
        %2329 = vmatpush1.bf16.msra.mxu0 %v2305
        %2330 = vmatprep.subr.bf16.mxu0 0
        %2331 = vmatpush1.bf16.msra.mxu0 %v2306
        %2332 = vmatprep.subr.bf16.mxu0 0
        %2333 = vmatpush1.bf16.msra.mxu0 %v2307
        %2334 = vmatprep.subr.bf16.mxu0 0
        %2335 = vmatpush1.bf16.msra.mxu0 %v2308
        %2336 = vmatprep.subr.bf16.mxu0 0
        %2337 = vmatpush1.bf16.msra.mxu0 %v2309
        %2338 = vmatprep.subr.bf16.mxu0 0
        %2339 = vmatpush1.bf16.msra.mxu0 %v2310
        %2340 = vmatprep.subr.bf16.mxu0 0
        %2341 = vmatpush1.bf16.msra.mxu0 %v2311
        %2342 = vmatprep.subr.bf16.mxu0 0
        %2343 = vmatpush1.bf16.msra.mxu0 %v2312
        %2344 = vmatprep.subr.bf16.mxu0 0
        %2345 = vmatpush1.bf16.msra.mxu0 %v2313
        %2346 = vmatprep.mubr.bf16.mxu0 %v2267
        %2347 = vmatmul.mubr.bf16.gmra.mrb[0].mxu0 %v2266
        %v2348 = vpop.f32.mrb[0].mxu0
        %v2349 = vadd.f32 0.0, %v2348
        %v2350 = vpop.f32.mrb[0].mxu0
        %v2351 = vpop.f32.mrb[0].mxu0
        %v2352 = vadd.f32 0.0, %v2351
        %v2353 = vpop.f32.mrb[0].mxu0
        %2354 = vmatprep.mubr.bf16.mxu0 %v2269
        %2355 = vmatmul.mubr.bf16.gmra.mrb[0].mxu0 %v2268
        %v2356 = vpop.f32.mrb[0].mxu0
        %v2357 = vadd.f32 0.0, %v2356
        %v2358 = vpop.f32.mrb[0].mxu0
        %v2359 = vpop.f32.mrb[0].mxu0
        %v2360 = vadd.f32 0.0, %v2359
        %v2361 = vpop.f32.mrb[0].mxu0
        %2362 = vmatprep.mubr.bf16.mxu0 %v2271
        %2363 = vmatmul.mubr.bf16.gmra.mrb[0].mxu0 %v2270
        %v2364 = vpop.f32.mrb[0].mxu0
        %v2365 = vadd.f32 0.0, %v2364
        %v2366 = vpop.f32.mrb[0].mxu0
        %v2367 = vpop.f32.mrb[0].mxu0
        %v2368 = vadd.f32 0.0, %v2367
        %v2369 = vpop.f32.mrb[0].mxu0
        %2370 = vmatprep.mubr.bf16.mxu0 %v2273
        %2371 = vmatmul.mubr.bf16.gmra.mrb[0].mxu0 %v2272
        %v2372 = vpop.f32.mrb[0].mxu0
        %v2373 = vadd.f32 0.0, %v2372
        %v2374 = vpop.f32.mrb[0].mxu0
        %v2375 = vpop.f32.mrb[0].mxu0
        %v2376 = vadd.f32 0.0, %v2375
        %v2377 = vpop.f32.mrb[0].mxu0
        %2378 = vmatprep.mubr.bf16.mxu0 %v2275
        %2379 = vmatmul.mubr.bf16.gmra.mrb[0].mxu0 %v2274
        %v2380 = vpop.f32.mrb[0].mxu0
        %v2381 = vadd.f32 0.0, %v2380
        %v2382 = vpop.f32.mrb[0].mxu0
        %v2383 = vpop.f32.mrb[0].mxu0
        %v2384 = vadd.f32 0.0, %v2383
        %v2385 = vpop.f32.mrb[0].mxu0
        %2386 = vmatprep.mubr.bf16.mxu0 %v2277
        %2387 = vmatmul.mubr.bf16.gmra.mrb[0].mxu0 %v2276
        %v2388 = vpop.f32.mrb[0].mxu0
        %v2389 = vadd.f32 0.0, %v2388
        %v2390 = vpop.f32.mrb[0].mxu0
        %v2391 = vpop.f32.mrb[0].mxu0
        %v2392 = vadd.f32 0.0, %v2391
        %v2393 = vpop.f32.mrb[0].mxu0
        %2394 = vmatprep.mubr.bf16.mxu0 %v2279
        %2395 = vmatmul.mubr.bf16.gmra.mrb[0].mxu0 %v2278
        %v2396 = vpop.f32.mrb[0].mxu0
        %v2397 = vadd.f32 0.0, %v2396
        %v2398 = vpop.f32.mrb[0].mxu0
        %v2399 = vpop.f32.mrb[0].mxu0
        %v2400 = vadd.f32 0.0, %v2399
        %v2401 = vpop.f32.mrb[0].mxu0
        %2402 = vmatprep.mubr.bf16.mxu0 %v2281
        %2403 = vmatmul.mubr.bf16.gmra.mrb[0].mxu0 %v2280
        %v2404 = vpop.f32.mrb[0].mxu0
        %v2405 = vadd.f32 0.0, %v2404
        %v2406 = vpop.f32.mrb[0].mxu0
        %v2407 = vpop.f32.mrb[0].mxu0
        %v2408 = vadd.f32 0.0, %v2407
        %v2409 = vpop.f32.mrb[0].mxu0
        %2410 = vmatprep.mubr.bf16.mxu0 %v2283
        %2411 = vmatmul.mubr.bf16.gmra.mrb[0].mxu0 %v2282
        %v2412 = vpop.f32.mrb[0].mxu0
        %v2413 = vadd.f32 0.0, %v2412
        %v2414 = vpop.f32.mrb[0].mxu0
        %v2415 = vpop.f32.mrb[0].mxu0
        %v2416 = vadd.f32 0.0, %v2415
        %v2417 = vpop.f32.mrb[0].mxu0
        %2418 = vmatprep.mubr.bf16.mxu0 %v2285
        %2419 = vmatmul.mubr.bf16.gmra.mrb[0].mxu0 %v2284
        %v2420 = vpop.f32.mrb[0].mxu0
        %v2421 = vadd.f32 0.0, %v2420
        %v2422 = vpop.f32.mrb[0].mxu0
        %v2423 = vpop.f32.mrb[0].mxu0
        %v2424 = vadd.f32 0.0, %v2423
        %v2425 = vpop.f32.mrb[0].mxu0
        %2426 = vmatprep.mubr.bf16.mxu0 %v2287
        %2427 = vmatmul.mubr.bf16.gmra.mrb[0].mxu0 %v2286
        %v2428 = vpop.f32.mrb[0].mxu0
        %v2429 = vadd.f32 0.0, %v2428
        %v2430 = vpop.f32.mrb[0].mxu0
        %v2431 = vpop.f32.mrb[0].mxu0
        %v2432 = vadd.f32 0.0, %v2431
        %v2433 = vpop.f32.mrb[0].mxu0
        %2434 = vmatprep.mubr.bf16.mxu0 %v2289
        %2435 = vmatmul.mubr.bf16.gmra.mrb[0].mxu0 %v2288
        %v2436 = vpop.f32.mrb[0].mxu0
        %v2437 = vadd.f32 0.0, %v2436
        %v2438 = vpop.f32.mrb[0].mxu0
        %v2439 = vpop.f32.mrb[0].mxu0
        %v2440 = vadd.f32 0.0, %v2439
        %v2441 = vpop.f32.mrb[0].mxu0
        %2442 = vmatprep.mubr.bf16.mxu0 %v2291
        %2443 = vmatmul.mubr.bf16.gmra.mrb[0].mxu0 %v2290
        %v2444 = vpop.f32.mrb[0].mxu0
        %v2445 = vadd.f32 0.0, %v2444
        %v2446 = vpop.f32.mrb[0].mxu0
        %v2447 = vpop.f32.mrb[0].mxu0
        %v2448 = vadd.f32 0.0, %v2447
        %v2449 = vpop.f32.mrb[0].mxu0
        %2450 = vmatprep.mubr.bf16.mxu0 %v2293
        %2451 = vmatmul.mubr.bf16.gmra.mrb[0].mxu0 %v2292
        %v2452 = vpop.f32.mrb[0].mxu0
        %v2453 = vadd.f32 0.0, %v2452
        %v2454 = vpop.f32.mrb[0].mxu0
        %v2455 = vpop.f32.mrb[0].mxu0
        %v2456 = vadd.f32 0.0, %v2455
        %v2457 = vpop.f32.mrb[0].mxu0
        %2458 = vmatprep.mubr.bf16.mxu0 %v2295
        %2459 = vmatmul.mubr.bf16.gmra.mrb[0].mxu0 %v2294
        %v2460 = vpop.f32.mrb[0].mxu0
        %v2461 = vadd.f32 0.0, %v2460
        %v2462 = vpop.f32.mrb[0].mxu0
        %v2463 = vpop.f32.mrb[0].mxu0
        %v2464 = vadd.f32 0.0, %v2463
        %v2465 = vpop.f32.mrb[0].mxu0
        %2466 = vmatprep.mubr.bf16.mxu0 %v2297
        %2467 = vmatmul.mubr.bf16.gmra.mrb[0].mxu0 %v2296
        %v2468 = vpop.f32.mrb[0].mxu0
        %v2469 = vadd.f32 0.0, %v2468
        %v2470 = vpop.f32.mrb[0].mxu0
        %v2471 = vpop.f32.mrb[0].mxu0
        %v2472 = vadd.f32 0.0, %v2471
        %v2473 = vpop.f32.mrb[0].mxu0
        %2474 = vdwg.mxu0
        %v2475 = vpack.c.bf16 %v2352, %v2349
        %v2476 = vpack.c.bf16 %v2360, %v2357
        %v2477 = vpack.c.bf16 %v2368, %v2365
        %v2478 = vpack.c.bf16 %v2376, %v2373
        %v2479 = vpack.c.bf16 %v2384, %v2381
        %v2480 = vpack.c.bf16 %v2392, %v2389
        %v2481 = vpack.c.bf16 %v2400, %v2397
        %v2482 = vpack.c.bf16 %v2408, %v2405
        %v2483 = vpack.c.bf16 %v2416, %v2413
        %v2484 = vpack.c.bf16 %v2424, %v2421
        %v2485 = vpack.c.bf16 %v2432, %v2429
        %v2486 = vpack.c.bf16 %v2440, %v2437
        %v2487 = vpack.c.bf16 %v2448, %v2445
        %v2488 = vpack.c.bf16 %v2456, %v2453
        %v2489 = vpack.c.bf16 %v2464, %v2461
        %v2490 = vpack.c.bf16 %v2472, %v2469
        %s2491 = smul.u32 %s1059, 16
        %s2492 = smul.addr %s2491, 4
        %s2493 = scalar_lea.vmem %s665, %s2492
        %v2494 = vld [vmem:[%s2493] sm:$0xf]
        %v2495 = vld [vmem:[%s2493 + $0x4] sm:$0xf]
        %v2496 = vld [vmem:[%s2493 + $0x8] sm:$0xf]
        %v2497 = vld [vmem:[%s2493 + $0xc] sm:$0xf]
        %v2498 = vld [vmem:[%s2493 + $0x10] sm:$0xf]
        %v2499 = vld [vmem:[%s2493 + $0x14] sm:$0xf]
        %v2500 = vld [vmem:[%s2493 + $0x18] sm:$0xf]
        %v2501 = vld [vmem:[%s2493 + $0x1c] sm:$0xf]
        %v2502 = vld [vmem:[%s2493 + $0x20] sm:$0xf]
        %v2503 = vld [vmem:[%s2493 + $0x24] sm:$0xf]
        %v2504 = vld [vmem:[%s2493 + $0x28] sm:$0xf]
        %v2505 = vld [vmem:[%s2493 + $0x2c] sm:$0xf]
        %v2506 = vld [vmem:[%s2493 + $0x30] sm:$0xf]
        %v2507 = vld [vmem:[%s2493 + $0x34] sm:$0xf]
        %v2508 = vld [vmem:[%s2493 + $0x38] sm:$0xf]
        %v2509 = vld [vmem:[%s2493 + $0x3c] sm:$0xf]
        %v2526 = vunpack.c.l.b16 %v2494
        %v2527 = vunpack.c.l.b16 %v2495
        %v2528 = vunpack.c.l.b16 %v2496
        %v2529 = vunpack.c.l.b16 %v2497
        %v2530 = vunpack.c.l.b16 %v2498
        %v2531 = vunpack.c.l.b16 %v2499
        %v2532 = vunpack.c.l.b16 %v2500
        %v2533 = vunpack.c.l.b16 %v2501
        %v2534 = vunpack.c.l.b16 %v2502
        %v2535 = vunpack.c.l.b16 %v2503
        %v2536 = vunpack.c.l.b16 %v2504
        %v2537 = vunpack.c.l.b16 %v2505
        %v2538 = vunpack.c.l.b16 %v2506
        %v2539 = vunpack.c.l.b16 %v2507
        %v2540 = vunpack.c.l.b16 %v2508
        %v2541 = vunpack.c.l.b16 %v2509
        %v2542 = vpack.c.b16 %v2527, %v2526
        %v2543 = vpack.c.b16 %v2529, %v2528
        %v2544 = vpack.c.b16 %v2531, %v2530
        %v2545 = vpack.c.b16 %v2533, %v2532
        %v2546 = vpack.c.b16 %v2535, %v2534
        %v2547 = vpack.c.b16 %v2537, %v2536
        %v2548 = vpack.c.b16 %v2539, %v2538
        %v2549 = vpack.c.b16 %v2541, %v2540
        %2558 = vmatprep.subr.bf16.mxu0 0
        %2559 = vmatpush1.bf16.msra.mxu0 %v2542
        %2560 = vmatprep.subr.bf16.mxu0 0
        %2561 = vmatpush1.bf16.msra.mxu0 %v2543
        %2562 = vmatprep.subr.bf16.mxu0 0
        %2563 = vmatpush1.bf16.msra.mxu0 %v2544
        %2564 = vmatprep.subr.bf16.mxu0 0
        %2565 = vmatpush1.bf16.msra.mxu0 %v2545
        %2566 = vmatprep.subr.bf16.mxu0 0
        %2567 = vmatpush1.bf16.msra.mxu0 %v2546
        %2568 = vmatprep.subr.bf16.mxu0 0
        %2569 = vmatpush1.bf16.msra.mxu0 %v2547
        %2570 = vmatprep.subr.bf16.mxu0 0
        %2571 = vmatpush1.bf16.msra.mxu0 %v2548
        %2572 = vmatprep.subr.bf16.mxu0 0
        %2573 = vmatpush1.bf16.msra.mxu0 %v2549
        %2574 = vmatprep.subr.bf16.mxu0 0
        %2575 = vmatpush1.bf16.msra.mxu0 0
        %2576 = vmatprep.subr.bf16.mxu0 0
        %2577 = vmatpush1.bf16.msra.mxu0 0
        %2578 = vmatprep.subr.bf16.mxu0 0
        %2579 = vmatpush1.bf16.msra.mxu0 0
        %2580 = vmatprep.subr.bf16.mxu0 0
        %2581 = vmatpush1.bf16.msra.mxu0 0
        %2582 = vmatprep.subr.bf16.mxu0 0
        %2583 = vmatpush1.bf16.msra.mxu0 0
        %2584 = vmatprep.subr.bf16.mxu0 0
        %2585 = vmatpush1.bf16.msra.mxu0 0
        %2586 = vmatprep.subr.bf16.mxu0 0
        %2587 = vmatpush1.bf16.msra.mxu0 0
        %2588 = vmatprep.subr.bf16.mxu0 0
        %2589 = vmatpush1.bf16.msra.mxu0 0
        %2590 = vmatprep.mubr.bf16.mxu0 0
        %2591 = vmatmul.mubr.bf16.gmra.mrb[0].mxu0 %v2475
        %v2592 = vpop.f32.mrb[0].mxu0
        %v2593 = vadd.f32 0.0, %v2592
        %v2594 = vpop.f32.mrb[0].mxu0
        %v2595 = vpop.f32.mrb[0].mxu0
        %v2596 = vadd.f32 0.0, %v2595
        %v2597 = vpop.f32.mrb[0].mxu0
        %2598 = vmatprep.mubr.bf16.mxu0 0
        %2599 = vmatmul.mubr.bf16.gmra.mrb[0].mxu0 %v2476
        %v2600 = vpop.f32.mrb[0].mxu0
        %v2601 = vadd.f32 0.0, %v2600
        %v2602 = vpop.f32.mrb[0].mxu0
        %v2603 = vpop.f32.mrb[0].mxu0
        %v2604 = vadd.f32 0.0, %v2603
        %v2605 = vpop.f32.mrb[0].mxu0
        %2606 = vmatprep.mubr.bf16.mxu0 0
        %2607 = vmatmul.mubr.bf16.gmra.mrb[0].mxu0 %v2477
        %v2608 = vpop.f32.mrb[0].mxu0
        %v2609 = vadd.f32 0.0, %v2608
        %v2610 = vpop.f32.mrb[0].mxu0
        %v2611 = vpop.f32.mrb[0].mxu0
        %v2612 = vadd.f32 0.0, %v2611
        %v2613 = vpop.f32.mrb[0].mxu0
        %2614 = vmatprep.mubr.bf16.mxu0 0
        %2615 = vmatmul.mubr.bf16.gmra.mrb[0].mxu0 %v2478
        %v2616 = vpop.f32.mrb[0].mxu0
        %v2617 = vadd.f32 0.0, %v2616
        %v2618 = vpop.f32.mrb[0].mxu0
        %v2619 = vpop.f32.mrb[0].mxu0
        %v2620 = vadd.f32 0.0, %v2619
        %v2621 = vpop.f32.mrb[0].mxu0
        %2622 = vmatprep.mubr.bf16.mxu0 0
        %2623 = vmatmul.mubr.bf16.gmra.mrb[0].mxu0 %v2479
        %v2624 = vpop.f32.mrb[0].mxu0
        %v2625 = vadd.f32 0.0, %v2624
        %v2626 = vpop.f32.mrb[0].mxu0
        %v2627 = vpop.f32.mrb[0].mxu0
        %v2628 = vadd.f32 0.0, %v2627
        %v2629 = vpop.f32.mrb[0].mxu0
        %2630 = vmatprep.mubr.bf16.mxu0 0
        %2631 = vmatmul.mubr.bf16.gmra.mrb[0].mxu0 %v2480
        %v2632 = vpop.f32.mrb[0].mxu0
        %v2633 = vadd.f32 0.0, %v2632
        %v2634 = vpop.f32.mrb[0].mxu0
        %v2635 = vpop.f32.mrb[0].mxu0
        %v2636 = vadd.f32 0.0, %v2635
        %v2637 = vpop.f32.mrb[0].mxu0
        %2638 = vmatprep.mubr.bf16.mxu0 0
        %2639 = vmatmul.mubr.bf16.gmra.mrb[0].mxu0 %v2481
        %v2640 = vpop.f32.mrb[0].mxu0
        %v2641 = vadd.f32 0.0, %v2640
        %v2642 = vpop.f32.mrb[0].mxu0
        %v2643 = vpop.f32.mrb[0].mxu0
        %v2644 = vadd.f32 0.0, %v2643
        %v2645 = vpop.f32.mrb[0].mxu0
        %2646 = vmatprep.mubr.bf16.mxu0 0
        %2647 = vmatmul.mubr.bf16.gmra.mrb[0].mxu0 %v2482
        %v2648 = vpop.f32.mrb[0].mxu0
        %v2649 = vadd.f32 0.0, %v2648
        %v2650 = vpop.f32.mrb[0].mxu0
        %v2651 = vpop.f32.mrb[0].mxu0
        %v2652 = vadd.f32 0.0, %v2651
        %v2653 = vpop.f32.mrb[0].mxu0
        %2654 = vmatprep.mubr.bf16.mxu0 0
        %2655 = vmatmul.mubr.bf16.gmra.mrb[0].mxu0 %v2483
        %v2656 = vpop.f32.mrb[0].mxu0
        %v2657 = vadd.f32 0.0, %v2656
        %v2658 = vpop.f32.mrb[0].mxu0
        %v2659 = vpop.f32.mrb[0].mxu0
        %v2660 = vadd.f32 0.0, %v2659
        %v2661 = vpop.f32.mrb[0].mxu0
        %2662 = vmatprep.mubr.bf16.mxu0 0
        %2663 = vmatmul.mubr.bf16.gmra.mrb[0].mxu0 %v2484
        %v2664 = vpop.f32.mrb[0].mxu0
        %v2665 = vadd.f32 0.0, %v2664
        %v2666 = vpop.f32.mrb[0].mxu0
        %v2667 = vpop.f32.mrb[0].mxu0
        %v2668 = vadd.f32 0.0, %v2667
        %v2669 = vpop.f32.mrb[0].mxu0
        %2670 = vmatprep.mubr.bf16.mxu0 0
        %2671 = vmatmul.mubr.bf16.gmra.mrb[0].mxu0 %v2485
        %v2672 = vpop.f32.mrb[0].mxu0
        %v2673 = vadd.f32 0.0, %v2672
        %v2674 = vpop.f32.mrb[0].mxu0
        %v2675 = vpop.f32.mrb[0].mxu0
        %v2676 = vadd.f32 0.0, %v2675
        %v2677 = vpop.f32.mrb[0].mxu0
        %2678 = vmatprep.mubr.bf16.mxu0 0
        %2679 = vmatmul.mubr.bf16.gmra.mrb[0].mxu0 %v2486
        %v2680 = vpop.f32.mrb[0].mxu0
        %v2681 = vadd.f32 0.0, %v2680
        %v2682 = vpop.f32.mrb[0].mxu0
        %v2683 = vpop.f32.mrb[0].mxu0
        %v2684 = vadd.f32 0.0, %v2683
        %v2685 = vpop.f32.mrb[0].mxu0
        %2686 = vmatprep.mubr.bf16.mxu0 0
        %2687 = vmatmul.mubr.bf16.gmra.mrb[0].mxu0 %v2487
        %v2688 = vpop.f32.mrb[0].mxu0
        %v2689 = vadd.f32 0.0, %v2688
        %v2690 = vpop.f32.mrb[0].mxu0
        %v2691 = vpop.f32.mrb[0].mxu0
        %v2692 = vadd.f32 0.0, %v2691
        %v2693 = vpop.f32.mrb[0].mxu0
        %2694 = vmatprep.mubr.bf16.mxu0 0
        %2695 = vmatmul.mubr.bf16.gmra.mrb[0].mxu0 %v2488
        %v2696 = vpop.f32.mrb[0].mxu0
        %v2697 = vadd.f32 0.0, %v2696
        %v2698 = vpop.f32.mrb[0].mxu0
        %v2699 = vpop.f32.mrb[0].mxu0
        %v2700 = vadd.f32 0.0, %v2699
        %v2701 = vpop.f32.mrb[0].mxu0
        %2702 = vmatprep.mubr.bf16.mxu0 0
        %2703 = vmatmul.mubr.bf16.gmra.mrb[0].mxu0 %v2489
        %v2704 = vpop.f32.mrb[0].mxu0
        %v2705 = vadd.f32 0.0, %v2704
        %v2706 = vpop.f32.mrb[0].mxu0
        %v2707 = vpop.f32.mrb[0].mxu0
        %v2708 = vadd.f32 0.0, %v2707
        %v2709 = vpop.f32.mrb[0].mxu0
        %2710 = vmatprep.mubr.bf16.mxu0 0
        %2711 = vmatmul.mubr.bf16.gmra.mrb[0].mxu0 %v2490
        %v2712 = vpop.f32.mrb[0].mxu0
        %v2713 = vadd.f32 0.0, %v2712
        %v2714 = vpop.f32.mrb[0].mxu0
        %v2715 = vpop.f32.mrb[0].mxu0
        %v2716 = vadd.f32 0.0, %v2715
        %v2717 = vpop.f32.mrb[0].mxu0
        %2718 = vdwg.mxu0
        %v2719 = vadd.f32 %v1064, %v2593
        %v2720 = vadd.f32 %v1065, %v2596
        %v2721 = vadd.f32 %v1066, %v2601
        %v2722 = vadd.f32 %v1067, %v2604
        %v2723 = vadd.f32 %v1068, %v2609
        %v2724 = vadd.f32 %v1069, %v2612
        %v2725 = vadd.f32 %v1070, %v2617
        %v2726 = vadd.f32 %v1071, %v2620
        %v2727 = vadd.f32 %v1072, %v2625
        %v2728 = vadd.f32 %v1073, %v2628
        %v2729 = vadd.f32 %v1074, %v2633
        %v2730 = vadd.f32 %v1075, %v2636
        %v2731 = vadd.f32 %v1076, %v2641
        %v2732 = vadd.f32 %v1077, %v2644
        %v2733 = vadd.f32 %v1078, %v2649
        %v2734 = vadd.f32 %v1079, %v2652
        %v2735 = vadd.f32 %v1080, %v2657
        %v2736 = vadd.f32 %v1081, %v2660
        %v2737 = vadd.f32 %v1082, %v2665
        %v2738 = vadd.f32 %v1083, %v2668
        %v2739 = vadd.f32 %v1084, %v2673
        %v2740 = vadd.f32 %v1085, %v2676
        %v2741 = vadd.f32 %v1086, %v2681
        %v2742 = vadd.f32 %v1087, %v2684
        %v2743 = vadd.f32 %v1088, %v2689
        %v2744 = vadd.f32 %v1089, %v2692
        %v2745 = vadd.f32 %v1090, %v2697
        %v2746 = vadd.f32 %v1091, %v2700
        %v2747 = vadd.f32 %v1092, %v2705
        %v2748 = vadd.f32 %v1093, %v2708
        %v2749 = vadd.f32 %v1094, %v2713
        %v2750 = vadd.f32 %v1095, %v2716
      $region89: #{transformer_bridge_forward.1} parent=79 // loop_footer
        %s1063 = sadd.s32 1, %s1059
      $region90: #{transformer_bridge_forward.1} parent=79 // loop_footer_branch
        %1058 = sbr.rel target = $region86
      $region91: #{transformer_bridge_forward.1} parent=79 // loop_exit
        _
      %v2751 = vld [vmem:[%s668] sm:$0x1]
      %v2753 = vlaneseq
      %v2754 = vshrl.u32 %v2753, 7
      %v2755 = vsub.s32 0, %v2754
      %v2756 = vrot.slane %v2751, %v2755
      %v2758 = vadd.f32 %v1064, %v2756
      %v2759 = vadd.f32 %v1065, %v2756
      %v2760 = vadd.f32 %v1066, %v2756
      %v2761 = vadd.f32 %v1067, %v2756
      %v2762 = vadd.f32 %v1068, %v2756
      %v2763 = vadd.f32 %v1069, %v2756
      %v2764 = vadd.f32 %v1070, %v2756
      %v2765 = vadd.f32 %v1071, %v2756
      %v2766 = vadd.f32 %v1072, %v2756
      %v2767 = vadd.f32 %v1073, %v2756
      %v2768 = vadd.f32 %v1074, %v2756
      %v2769 = vadd.f32 %v1075, %v2756
      %v2770 = vadd.f32 %v1076, %v2756
      %v2771 = vadd.f32 %v1077, %v2756
      %v2772 = vadd.f32 %v1078, %v2756
      %v2773 = vadd.f32 %v1079, %v2756
      %v2774 = vadd.f32 %v1080, %v2756
      %v2775 = vadd.f32 %v1081, %v2756
      %v2776 = vadd.f32 %v1082, %v2756
      %v2777 = vadd.f32 %v1083, %v2756
      %v2778 = vadd.f32 %v1084, %v2756
      %v2779 = vadd.f32 %v1085, %v2756
      %v2780 = vadd.f32 %v1086, %v2756
      %v2781 = vadd.f32 %v1087, %v2756
      %v2782 = vadd.f32 %v1088, %v2756
      %v2783 = vadd.f32 %v1089, %v2756
      %v2784 = vadd.f32 %v1090, %v2756
      %v2785 = vadd.f32 %v1091, %v2756
      %v2786 = vadd.f32 %v1092, %v2756
      %v2787 = vadd.f32 %v1093, %v2756
      %v2788 = vadd.f32 %v1094, %v2756
      %v2789 = vadd.f32 %v1095, %v2756
      %v2790 = vadd.f32 %v1010, %v2758
      %v2791 = vadd.f32 %v1011, %v2759
      %v2792 = vadd.f32 %v1012, %v2760
      %v2793 = vadd.f32 %v1013, %v2761
      %v2794 = vadd.f32 %v1014, %v2762
      %v2795 = vadd.f32 %v1015, %v2763
      %v2796 = vadd.f32 %v1016, %v2764
      %v2797 = vadd.f32 %v1017, %v2765
      %v2798 = vadd.f32 %v1018, %v2766
      %v2799 = vadd.f32 %v1019, %v2767
      %v2800 = vadd.f32 %v1020, %v2768
      %v2801 = vadd.f32 %v1021, %v2769
      %v2802 = vadd.f32 %v1022, %v2770
      %v2803 = vadd.f32 %v1023, %v2771
      %v2804 = vadd.f32 %v1024, %v2772
      %v2805 = vadd.f32 %v1025, %v2773
      %v2806 = vadd.f32 %v1026, %v2774
      %v2807 = vadd.f32 %v1027, %v2775
      %v2808 = vadd.f32 %v1028, %v2776
      %v2809 = vadd.f32 %v1029, %v2777
      %v2810 = vadd.f32 %v1030, %v2778
      %v2811 = vadd.f32 %v1031, %v2779
      %v2812 = vadd.f32 %v1032, %v2780
      %v2813 = vadd.f32 %v1033, %v2781
      %v2814 = vadd.f32 %v1034, %v2782
      %v2815 = vadd.f32 %v1035, %v2783
      %v2816 = vadd.f32 %v1036, %v2784
      %v2817 = vadd.f32 %v1037, %v2785
      %v2818 = vadd.f32 %v1038, %v2786
      %v2819 = vadd.f32 %v1039, %v2787
      %v2820 = vadd.f32 %v1040, %v2788
      %v2821 = vadd.f32 %v1041, %v2789
      %vm2822 = vcmask 261120
      %v2823 = vsel %vm2822, %v2790, 0.0
      %2824 = vadd.xlane.f32.xlu0 %v2823
      %v2825 = vpop.xlane.xlu0 %2824
      %v2826 = vsel %vm2822, %v2791, 0.0
      %2827 = vadd.xlane.f32.xlu0 %v2826
      %v2828 = vpop.xlane.xlu0 %2827
      %v2829 = vsel %vm2822, %v2792, 0.0
      %2830 = vadd.xlane.f32.xlu0 %v2829
      %v2831 = vpop.xlane.xlu0 %2830
      %v2832 = vsel %vm2822, %v2793, 0.0
      %2833 = vadd.xlane.f32.xlu0 %v2832
      %v2834 = vpop.xlane.xlu0 %2833
      %v2835 = vsel %vm2822, %v2794, 0.0
      %2836 = vadd.xlane.f32.xlu0 %v2835
      %v2837 = vpop.xlane.xlu0 %2836
      %v2838 = vsel %vm2822, %v2795, 0.0
      %2839 = vadd.xlane.f32.xlu0 %v2838
      %v2840 = vpop.xlane.xlu0 %2839
      %v2841 = vsel %vm2822, %v2796, 0.0
      %2842 = vadd.xlane.f32.xlu0 %v2841
      %v2843 = vpop.xlane.xlu0 %2842
      %v2844 = vsel %vm2822, %v2797, 0.0
      %2845 = vadd.xlane.f32.xlu0 %v2844
      %v2846 = vpop.xlane.xlu0 %2845
      %v2847 = vsel %vm2822, %v2798, 0.0
      %2848 = vadd.xlane.f32.xlu0 %v2847
      %v2849 = vpop.xlane.xlu0 %2848
      %v2850 = vsel %vm2822, %v2799, 0.0
      %2851 = vadd.xlane.f32.xlu0 %v2850
      %v2852 = vpop.xlane.xlu0 %2851
      %v2853 = vsel %vm2822, %v2800, 0.0
      %2854 = vadd.xlane.f32.xlu0 %v2853
      %v2855 = vpop.xlane.xlu0 %2854
      %v2856 = vsel %vm2822, %v2801, 0.0
      %2857 = vadd.xlane.f32.xlu0 %v2856
      %v2858 = vpop.xlane.xlu0 %2857
      %v2859 = vsel %vm2822, %v2802, 0.0
      %2860 = vadd.xlane.f32.xlu0 %v2859
      %v2861 = vpop.xlane.xlu0 %2860
      %v2862 = vsel %vm2822, %v2803, 0.0
      %2863 = vadd.xlane.f32.xlu0 %v2862
      %v2864 = vpop.xlane.xlu0 %2863
      %v2865 = vsel %vm2822, %v2804, 0.0
      %2866 = vadd.xlane.f32.xlu0 %v2865
      %v2867 = vpop.xlane.xlu0 %2866
      %v2868 = vsel %vm2822, %v2805, 0.0
      %2869 = vadd.xlane.f32.xlu0 %v2868
      %v2870 = vpop.xlane.xlu0 %2869
      %v2871 = vsel %vm2822, %v2806, 0.0
      %2872 = vadd.xlane.f32.xlu0 %v2871
      %v2873 = vpop.xlane.xlu0 %2872
      %v2874 = vsel %vm2822, %v2807, 0.0
      %2875 = vadd.xlane.f32.xlu0 %v2874
      %v2876 = vpop.xlane.xlu0 %2875
      %v2877 = vsel %vm2822, %v2808, 0.0
      %2878 = vadd.xlane.f32.xlu0 %v2877
      %v2879 = vpop.xlane.xlu0 %2878
      %v2880 = vsel %vm2822, %v2809, 0.0
      %2881 = vadd.xlane.f32.xlu0 %v2880
      %v2882 = vpop.xlane.xlu0 %2881
      %v2883 = vsel %vm2822, %v2810, 0.0
      %2884 = vadd.xlane.f32.xlu0 %v2883
      %v2885 = vpop.xlane.xlu0 %2884
      %v2886 = vsel %vm2822, %v2811, 0.0
      %2887 = vadd.xlane.f32.xlu0 %v2886
      %v2888 = vpop.xlane.xlu0 %2887
      %v2889 = vsel %vm2822, %v2812, 0.0
      %2890 = vadd.xlane.f32.xlu0 %v2889
      %v2891 = vpop.xlane.xlu0 %2890
      %v2892 = vsel %vm2822, %v2813, 0.0
      %2893 = vadd.xlane.f32.xlu0 %v2892
      %v2894 = vpop.xlane.xlu0 %2893
      %v2895 = vsel %vm2822, %v2814, 0.0
      %2896 = vadd.xlane.f32.xlu0 %v2895
      %v2897 = vpop.xlane.xlu0 %2896
      %v2898 = vsel %vm2822, %v2815, 0.0
      %2899 = vadd.xlane.f32.xlu0 %v2898
      %v2900 = vpop.xlane.xlu0 %2899
      %v2901 = vsel %vm2822, %v2816, 0.0
      %2902 = vadd.xlane.f32.xlu0 %v2901
      %v2903 = vpop.xlane.xlu0 %2902
      %v2904 = vsel %vm2822, %v2817, 0.0
      %2905 = vadd.xlane.f32.xlu0 %v2904
      %v2906 = vpop.xlane.xlu0 %2905
      %v2907 = vsel %vm2822, %v2818, 0.0
      %2908 = vadd.xlane.f32.xlu0 %v2907
      %v2909 = vpop.xlane.xlu0 %2908
      %v2910 = vsel %vm2822, %v2819, 0.0
      %2911 = vadd.xlane.f32.xlu0 %v2910
      %v2912 = vpop.xlane.xlu0 %2911
      %v2913 = vsel %vm2822, %v2820, 0.0
      %2914 = vadd.xlane.f32.xlu0 %v2913
      %v2915 = vpop.xlane.xlu0 %2914
      %v2916 = vsel %vm2822, %v2821, 0.0
      %2917 = vadd.xlane.f32.xlu0 %v2916
      %v2918 = vpop.xlane.xlu0 %2917
      %v2919 = vrcp.pop 32.0
      %v2920 = vmul.f32 %v2825, %v2919
      %v2921 = vmul.f32 %v2828, %v2919
      %v2922 = vmul.f32 %v2831, %v2919
      %v2923 = vmul.f32 %v2834, %v2919
      %v2924 = vmul.f32 %v2837, %v2919
      %v2925 = vmul.f32 %v2840, %v2919
      %v2926 = vmul.f32 %v2843, %v2919
      %v2927 = vmul.f32 %v2846, %v2919
      %v2928 = vmul.f32 %v2849, %v2919
      %v2929 = vmul.f32 %v2852, %v2919
      %v2930 = vmul.f32 %v2855, %v2919
      %v2931 = vmul.f32 %v2858, %v2919
      %v2932 = vmul.f32 %v2861, %v2919
      %v2933 = vmul.f32 %v2864, %v2919
      %v2934 = vmul.f32 %v2867, %v2919
      %v2935 = vmul.f32 %v2870, %v2919
      %v2936 = vmul.f32 %v2873, %v2919
      %v2937 = vmul.f32 %v2876, %v2919
      %v2938 = vmul.f32 %v2879, %v2919
      %v2939 = vmul.f32 %v2882, %v2919
      %v2940 = vmul.f32 %v2885, %v2919
      %v2941 = vmul.f32 %v2888, %v2919
      %v2942 = vmul.f32 %v2891, %v2919
      %v2943 = vmul.f32 %v2894, %v2919
      %v2944 = vmul.f32 %v2897, %v2919
      %v2945 = vmul.f32 %v2900, %v2919
      %v2946 = vmul.f32 %v2903, %v2919
      %v2947 = vmul.f32 %v2906, %v2919
      %v2948 = vmul.f32 %v2909, %v2919
      %v2949 = vmul.f32 %v2912, %v2919
      %v2950 = vmul.f32 %v2915, %v2919
      %v2951 = vmul.f32 %v2918, %v2919
      %v2952 = vsub.f32 %v2790, %v2920
      %v2953 = vsub.f32 %v2791, %v2921
      %v2954 = vsub.f32 %v2792, %v2922
      %v2955 = vsub.f32 %v2793, %v2923
      %v2956 = vsub.f32 %v2794, %v2924
      %v2957 = vsub.f32 %v2795, %v2925
      %v2958 = vsub.f32 %v2796, %v2926
      %v2959 = vsub.f32 %v2797, %v2927
      %v2960 = vsub.f32 %v2798, %v2928
      %v2961 = vsub.f32 %v2799, %v2929
      %v2962 = vsub.f32 %v2800, %v2930
      %v2963 = vsub.f32 %v2801, %v2931
      %v2964 = vsub.f32 %v2802, %v2932
      %v2965 = vsub.f32 %v2803, %v2933
      %v2966 = vsub.f32 %v2804, %v2934
      %v2967 = vsub.f32 %v2805, %v2935
      %v2968 = vsub.f32 %v2806, %v2936
      %v2969 = vsub.f32 %v2807, %v2937
      %v2970 = vsub.f32 %v2808, %v2938
      %v2971 = vsub.f32 %v2809, %v2939
      %v2972 = vsub.f32 %v2810, %v2940
      %v2973 = vsub.f32 %v2811, %v2941
      %v2974 = vsub.f32 %v2812, %v2942
      %v2975 = vsub.f32 %v2813, %v2943
      %v2976 = vsub.f32 %v2814, %v2944
      %v2977 = vsub.f32 %v2815, %v2945
      %v2978 = vsub.f32 %v2816, %v2946
      %v2979 = vsub.f32 %v2817, %v2947
      %v2980 = vsub.f32 %v2818, %v2948
      %v2981 = vsub.f32 %v2819, %v2949
      %v2982 = vsub.f32 %v2820, %v2950
      %v2983 = vsub.f32 %v2821, %v2951
      %v2984 = vmul.f32 %v2952, %v2952
      %v2985 = vmul.f32 %v2953, %v2953
      %v2986 = vmul.f32 %v2954, %v2954
      %v2987 = vmul.f32 %v2955, %v2955
      %v2988 = vmul.f32 %v2956, %v2956
      %v2989 = vmul.f32 %v2957, %v2957
      %v2990 = vmul.f32 %v2958, %v2958
      %v2991 = vmul.f32 %v2959, %v2959
      %v2992 = vmul.f32 %v2960, %v2960
      %v2993 = vmul.f32 %v2961, %v2961
      %v2994 = vmul.f32 %v2962, %v2962
      %v2995 = vmul.f32 %v2963, %v2963
      %v2996 = vmul.f32 %v2964, %v2964
      %v2997 = vmul.f32 %v2965, %v2965
      %v2998 = vmul.f32 %v2966, %v2966
      %v2999 = vmul.f32 %v2967, %v2967
      %v3000 = vmul.f32 %v2968, %v2968
      %v3001 = vmul.f32 %v2969, %v2969
      %v3002 = vmul.f32 %v2970, %v2970
      %v3003 = vmul.f32 %v2971, %v2971
      %v3004 = vmul.f32 %v2972, %v2972
      %v3005 = vmul.f32 %v2973, %v2973
      %v3006 = vmul.f32 %v2974, %v2974
      %v3007 = vmul.f32 %v2975, %v2975
      %v3008 = vmul.f32 %v2976, %v2976
      %v3009 = vmul.f32 %v2977, %v2977
      %v3010 = vmul.f32 %v2978, %v2978
      %v3011 = vmul.f32 %v2979, %v2979
      %v3012 = vmul.f32 %v2980, %v2980
      %v3013 = vmul.f32 %v2981, %v2981
      %v3014 = vmul.f32 %v2982, %v2982
      %v3015 = vmul.f32 %v2983, %v2983
      %v3016 = vsel %vm2822, %v2984, 0.0
      %3017 = vadd.xlane.f32.xlu0 %v3016
      %v3018 = vpop.xlane.xlu0 %3017
      %v3019 = vsel %vm2822, %v2985, 0.0
      %3020 = vadd.xlane.f32.xlu0 %v3019
      %v3021 = vpop.xlane.xlu0 %3020
      %v3022 = vsel %vm2822, %v2986, 0.0
      %3023 = vadd.xlane.f32.xlu0 %v3022
      %v3024 = vpop.xlane.xlu0 %3023
      %v3025 = vsel %vm2822, %v2987, 0.0
      %3026 = vadd.xlane.f32.xlu0 %v3025
      %v3027 = vpop.xlane.xlu0 %3026
      %v3028 = vsel %vm2822, %v2988, 0.0
      %3029 = vadd.xlane.f32.xlu0 %v3028
      %v3030 = vpop.xlane.xlu0 %3029
      %v3031 = vsel %vm2822, %v2989, 0.0
      %3032 = vadd.xlane.f32.xlu0 %v3031
      %v3033 = vpop.xlane.xlu0 %3032
      %v3034 = vsel %vm2822, %v2990, 0.0
      %3035 = vadd.xlane.f32.xlu0 %v3034
      %v3036 = vpop.xlane.xlu0 %3035
      %v3037 = vsel %vm2822, %v2991, 0.0
      %3038 = vadd.xlane.f32.xlu0 %v3037
      %v3039 = vpop.xlane.xlu0 %3038
      %v3040 = vsel %vm2822, %v2992, 0.0
      %3041 = vadd.xlane.f32.xlu0 %v3040
      %v3042 = vpop.xlane.xlu0 %3041
      %v3043 = vsel %vm2822, %v2993, 0.0
      %3044 = vadd.xlane.f32.xlu0 %v3043
      %v3045 = vpop.xlane.xlu0 %3044
      %v3046 = vsel %vm2822, %v2994, 0.0
      %3047 = vadd.xlane.f32.xlu0 %v3046
      %v3048 = vpop.xlane.xlu0 %3047
      %v3049 = vsel %vm2822, %v2995, 0.0
      %3050 = vadd.xlane.f32.xlu0 %v3049
      %v3051 = vpop.xlane.xlu0 %3050
      %v3052 = vsel %vm2822, %v2996, 0.0
      %3053 = vadd.xlane.f32.xlu0 %v3052
      %v3054 = vpop.xlane.xlu0 %3053
      %v3055 = vsel %vm2822, %v2997, 0.0
      %3056 = vadd.xlane.f32.xlu0 %v3055
      %v3057 = vpop.xlane.xlu0 %3056
      %v3058 = vsel %vm2822, %v2998, 0.0
      %3059 = vadd.xlane.f32.xlu0 %v3058
      %v3060 = vpop.xlane.xlu0 %3059
      %v3061 = vsel %vm2822, %v2999, 0.0
      %3062 = vadd.xlane.f32.xlu0 %v3061
      %v3063 = vpop.xlane.xlu0 %3062
      %v3064 = vsel %vm2822, %v3000, 0.0
      %3065 = vadd.xlane.f32.xlu0 %v3064
      %v3066 = vpop.xlane.xlu0 %3065
      %v3067 = vsel %vm2822, %v3001, 0.0
      %3068 = vadd.xlane.f32.xlu0 %v3067
      %v3069 = vpop.xlane.xlu0 %3068
      %v3070 = vsel %vm2822, %v3002, 0.0
      %3071 = vadd.xlane.f32.xlu0 %v3070
      %v3072 = vpop.xlane.xlu0 %3071
      %v3073 = vsel %vm2822, %v3003, 0.0
      %3074 = vadd.xlane.f32.xlu0 %v3073
      %v3075 = vpop.xlane.xlu0 %3074
      %v3076 = vsel %vm2822, %v3004, 0.0
      %3077 = vadd.xlane.f32.xlu0 %v3076
      %v3078 = vpop.xlane.xlu0 %3077
      %v3079 = vsel %vm2822, %v3005, 0.0
      %3080 = vadd.xlane.f32.xlu0 %v3079
      %v3081 = vpop.xlane.xlu0 %3080
      %v3082 = vsel %vm2822, %v3006, 0.0
      %3083 = vadd.xlane.f32.xlu0 %v3082
      %v3084 = vpop.xlane.xlu0 %3083
      %v3085 = vsel %vm2822, %v3007, 0.0
      %3086 = vadd.xlane.f32.xlu0 %v3085
      %v3087 = vpop.xlane.xlu0 %3086
      %v3088 = vsel %vm2822, %v3008, 0.0
      %3089 = vadd.xlane.f32.xlu0 %v3088
      %v3090 = vpop.xlane.xlu0 %3089
      %v3091 = vsel %vm2822, %v3009, 0.0
      %3092 = vadd.xlane.f32.xlu0 %v3091
      %v3093 = vpop.xlane.xlu0 %3092
      %v3094 = vsel %vm2822, %v3010, 0.0
      %3095 = vadd.xlane.f32.xlu0 %v3094
      %v3096 = vpop.xlane.xlu0 %3095
      %v3097 = vsel %vm2822, %v3011, 0.0
      %3098 = vadd.xlane.f32.xlu0 %v3097
      %v3099 = vpop.xlane.xlu0 %3098
      %v3100 = vsel %vm2822, %v3012, 0.0
      %3101 = vadd.xlane.f32.xlu0 %v3100
      %v3102 = vpop.xlane.xlu0 %3101
      %v3103 = vsel %vm2822, %v3013, 0.0
      %3104 = vadd.xlane.f32.xlu0 %v3103
      %v3105 = vpop.xlane.xlu0 %3104
      %v3106 = vsel %vm2822, %v3014, 0.0
      %3107 = vadd.xlane.f32.xlu0 %v3106
      %v3108 = vpop.xlane.xlu0 %3107
      %v3109 = vsel %vm2822, %v3015, 0.0
      %3110 = vadd.xlane.f32.xlu0 %v3109
      %v3111 = vpop.xlane.xlu0 %3110
      %v3112 = vmul.f32 %v3018, %v2919
      %v3113 = vmul.f32 %v3021, %v2919
      %v3114 = vmul.f32 %v3024, %v2919
      %v3115 = vmul.f32 %v3027, %v2919
      %v3116 = vmul.f32 %v3030, %v2919
      %v3117 = vmul.f32 %v3033, %v2919
      %v3118 = vmul.f32 %v3036, %v2919
      %v3119 = vmul.f32 %v3039, %v2919
      %v3120 = vmul.f32 %v3042, %v2919
      %v3121 = vmul.f32 %v3045, %v2919
      %v3122 = vmul.f32 %v3048, %v2919
      %v3123 = vmul.f32 %v3051, %v2919
      %v3124 = vmul.f32 %v3054, %v2919
      %v3125 = vmul.f32 %v3057, %v2919
      %v3126 = vmul.f32 %v3060, %v2919
      %v3127 = vmul.f32 %v3063, %v2919
      %v3128 = vmul.f32 %v3066, %v2919
      %v3129 = vmul.f32 %v3069, %v2919
      %v3130 = vmul.f32 %v3072, %v2919
      %v3131 = vmul.f32 %v3075, %v2919
      %v3132 = vmul.f32 %v3078, %v2919
      %v3133 = vmul.f32 %v3081, %v2919
      %v3134 = vmul.f32 %v3084, %v2919
      %v3135 = vmul.f32 %v3087, %v2919
      %v3136 = vmul.f32 %v3090, %v2919
      %v3137 = vmul.f32 %v3093, %v2919
      %v3138 = vmul.f32 %v3096, %v2919
      %v3139 = vmul.f32 %v3099, %v2919
      %v3140 = vmul.f32 %v3102, %v2919
      %v3141 = vmul.f32 %v3105, %v2919
      %v3142 = vmul.f32 %v3108, %v2919
      %v3143 = vmul.f32 %v3111, %v2919
      %v3144 = vadd.f32 %v3112, 1e-05
      %v3145 = vadd.f32 %v3113, 1e-05
      %v3146 = vadd.f32 %v3114, 1e-05
      %v3147 = vadd.f32 %v3115, 1e-05
      %v3148 = vadd.f32 %v3116, 1e-05
      %v3149 = vadd.f32 %v3117, 1e-05
      %v3150 = vadd.f32 %v3118, 1e-05
      %v3151 = vadd.f32 %v3119, 1e-05
      %v3152 = vadd.f32 %v3120, 1e-05
      %v3153 = vadd.f32 %v3121, 1e-05
      %v3154 = vadd.f32 %v3122, 1e-05
      %v3155 = vadd.f32 %v3123, 1e-05
      %v3156 = vadd.f32 %v3124, 1e-05
      %v3157 = vadd.f32 %v3125, 1e-05
      %v3158 = vadd.f32 %v3126, 1e-05
      %v3159 = vadd.f32 %v3127, 1e-05
      %v3160 = vadd.f32 %v3128, 1e-05
      %v3161 = vadd.f32 %v3129, 1e-05
      %v3162 = vadd.f32 %v3130, 1e-05
      %v3163 = vadd.f32 %v3131, 1e-05
      %v3164 = vadd.f32 %v3132, 1e-05
      %v3165 = vadd.f32 %v3133, 1e-05
      %v3166 = vadd.f32 %v3134, 1e-05
      %v3167 = vadd.f32 %v3135, 1e-05
      %v3168 = vadd.f32 %v3136, 1e-05
      %v3169 = vadd.f32 %v3137, 1e-05
      %v3170 = vadd.f32 %v3138, 1e-05
      %v3171 = vadd.f32 %v3139, 1e-05
      %v3172 = vadd.f32 %v3140, 1e-05
      %v3173 = vadd.f32 %v3141, 1e-05
      %v3174 = vadd.f32 %v3142, 1e-05
      %v3175 = vadd.f32 %v3143, 1e-05
      %v3176 = vrsqrt.pop %v3144
      %v3177 = vrsqrt.pop %v3145
      %v3178 = vrsqrt.pop %v3146
      %v3179 = vrsqrt.pop %v3147
      %v3180 = vrsqrt.pop %v3148
      %v3181 = vrsqrt.pop %v3149
      %v3182 = vrsqrt.pop %v3150
      %v3183 = vrsqrt.pop %v3151
      %v3184 = vrsqrt.pop %v3152
      %v3185 = vrsqrt.pop %v3153
      %v3186 = vrsqrt.pop %v3154
      %v3187 = vrsqrt.pop %v3155
      %v3188 = vrsqrt.pop %v3156
      %v3189 = vrsqrt.pop %v3157
      %v3190 = vrsqrt.pop %v3158
      %v3191 = vrsqrt.pop %v3159
      %v3192 = vrsqrt.pop %v3160
      %v3193 = vrsqrt.pop %v3161
      %v3194 = vrsqrt.pop %v3162
      %v3195 = vrsqrt.pop %v3163
      %v3196 = vrsqrt.pop %v3164
      %v3197 = vrsqrt.pop %v3165
      %v3198 = vrsqrt.pop %v3166
      %v3199 = vrsqrt.pop %v3167
      %v3200 = vrsqrt.pop %v3168
      %v3201 = vrsqrt.pop %v3169
      %v3202 = vrsqrt.pop %v3170
      %v3203 = vrsqrt.pop %v3171
      %v3204 = vrsqrt.pop %v3172
      %v3205 = vrsqrt.pop %v3173
      %v3206 = vrsqrt.pop %v3174
      %v3207 = vrsqrt.pop %v3175
      %v3208 = vmul.f32 %v2952, %v3176
      %v3209 = vmul.f32 %v2953, %v3177
      %v3210 = vmul.f32 %v2954, %v3178
      %v3211 = vmul.f32 %v2955, %v3179
      %v3212 = vmul.f32 %v2956, %v3180
      %v3213 = vmul.f32 %v2957, %v3181
      %v3214 = vmul.f32 %v2958, %v3182
      %v3215 = vmul.f32 %v2959, %v3183
      %v3216 = vmul.f32 %v2960, %v3184
      %v3217 = vmul.f32 %v2961, %v3185
      %v3218 = vmul.f32 %v2962, %v3186
      %v3219 = vmul.f32 %v2963, %v3187
      %v3220 = vmul.f32 %v2964, %v3188
      %v3221 = vmul.f32 %v2965, %v3189
      %v3222 = vmul.f32 %v2966, %v3190
      %v3223 = vmul.f32 %v2967, %v3191
      %v3224 = vmul.f32 %v2968, %v3192
      %v3225 = vmul.f32 %v2969, %v3193
      %v3226 = vmul.f32 %v2970, %v3194
      %v3227 = vmul.f32 %v2971, %v3195
      %v3228 = vmul.f32 %v2972, %v3196
      %v3229 = vmul.f32 %v2973, %v3197
      %v3230 = vmul.f32 %v2974, %v3198
      %v3231 = vmul.f32 %v2975, %v3199
      %v3232 = vmul.f32 %v2976, %v3200
      %v3233 = vmul.f32 %v2977, %v3201
      %v3234 = vmul.f32 %v2978, %v3202
      %v3235 = vmul.f32 %v2979, %v3203
      %v3236 = vmul.f32 %v2980, %v3204
      %v3237 = vmul.f32 %v2981, %v3205
      %v3238 = vmul.f32 %v2982, %v3206
      %v3239 = vmul.f32 %v2983, %v3207
      %v3240 = vld [vmem:[%s671] sm:$0x1]
      %v3242 = vlaneseq
      %v3243 = vshrl.u32 %v3242, 7
      %v3244 = vsub.s32 0, %v3243
      %v3245 = vrot.slane %v3240, %v3244
      %v3247 = vmul.f32 %v3208, %v3245
      %v3248 = vmul.f32 %v3209, %v3245
      %v3249 = vmul.f32 %v3210, %v3245
      %v3250 = vmul.f32 %v3211, %v3245
      %v3251 = vmul.f32 %v3212, %v3245
      %v3252 = vmul.f32 %v3213, %v3245
      %v3253 = vmul.f32 %v3214, %v3245
      %v3254 = vmul.f32 %v3215, %v3245
      %v3255 = vmul.f32 %v3216, %v3245
      %v3256 = vmul.f32 %v3217, %v3245
      %v3257 = vmul.f32 %v3218, %v3245
      %v3258 = vmul.f32 %v3219, %v3245
      %v3259 = vmul.f32 %v3220, %v3245
      %v3260 = vmul.f32 %v3221, %v3245
      %v3261 = vmul.f32 %v3222, %v3245
      %v3262 = vmul.f32 %v3223, %v3245
      %v3263 = vmul.f32 %v3224, %v3245
      %v3264 = vmul.f32 %v3225, %v3245
      %v3265 = vmul.f32 %v3226, %v3245
      %v3266 = vmul.f32 %v3227, %v3245
      %v3267 = vmul.f32 %v3228, %v3245
      %v3268 = vmul.f32 %v3229, %v3245
      %v3269 = vmul.f32 %v3230, %v3245
      %v3270 = vmul.f32 %v3231, %v3245
      %v3271 = vmul.f32 %v3232, %v3245
      %v3272 = vmul.f32 %v3233, %v3245
      %v3273 = vmul.f32 %v3234, %v3245
      %v3274 = vmul.f32 %v3235, %v3245
      %v3275 = vmul.f32 %v3236, %v3245
      %v3276 = vmul.f32 %v3237, %v3245
      %v3277 = vmul.f32 %v3238, %v3245
      %v3278 = vmul.f32 %v3239, %v3245
      %v3279 = vld [vmem:[%s674] sm:$0x1]
      %v3281 = vlaneseq
      %v3282 = vshrl.u32 %v3281, 7
      %v3283 = vsub.s32 0, %v3282
      %v3284 = vrot.slane %v3279, %v3283
      %v3286 = vadd.f32 %v3247, %v3284
      %v3287 = vadd.f32 %v3248, %v3284
      %v3288 = vadd.f32 %v3249, %v3284
      %v3289 = vadd.f32 %v3250, %v3284
      %v3290 = vadd.f32 %v3251, %v3284
      %v3291 = vadd.f32 %v3252, %v3284
      %v3292 = vadd.f32 %v3253, %v3284
      %v3293 = vadd.f32 %v3254, %v3284
      %v3294 = vadd.f32 %v3255, %v3284
      %v3295 = vadd.f32 %v3256, %v3284
      %v3296 = vadd.f32 %v3257, %v3284
      %v3297 = vadd.f32 %v3258, %v3284
      %v3298 = vadd.f32 %v3259, %v3284
      %v3299 = vadd.f32 %v3260, %v3284
      %v3300 = vadd.f32 %v3261, %v3284
      %v3301 = vadd.f32 %v3262, %v3284
      %v3302 = vadd.f32 %v3263, %v3284
      %v3303 = vadd.f32 %v3264, %v3284
      %v3304 = vadd.f32 %v3265, %v3284
      %v3305 = vadd.f32 %v3266, %v3284
      %v3306 = vadd.f32 %v3267, %v3284
      %v3307 = vadd.f32 %v3268, %v3284
      %v3308 = vadd.f32 %v3269, %v3284
      %v3309 = vadd.f32 %v3270, %v3284
      %v3310 = vadd.f32 %v3271, %v3284
      %v3311 = vadd.f32 %v3272, %v3284
      %v3312 = vadd.f32 %v3273, %v3284
      %v3313 = vadd.f32 %v3274, %v3284
      %v3314 = vadd.f32 %v3275, %v3284
      %v3315 = vadd.f32 %v3276, %v3284
      %v3316 = vadd.f32 %v3277, %v3284
      %v3317 = vadd.f32 %v3278, %v3284
      %v3318 = vpack.c.bf16 %v3287, %v3286
      %v3319 = vpack.c.bf16 %v3289, %v3288
      %v3320 = vpack.c.bf16 %v3291, %v3290
      %v3321 = vpack.c.bf16 %v3293, %v3292
      %v3322 = vpack.c.bf16 %v3295, %v3294
      %v3323 = vpack.c.bf16 %v3297, %v3296
      %v3324 = vpack.c.bf16 %v3299, %v3298
      %v3325 = vpack.c.bf16 %v3301, %v3300
      %v3326 = vpack.c.bf16 %v3303, %v3302
      %v3327 = vpack.c.bf16 %v3305, %v3304
      %v3328 = vpack.c.bf16 %v3307, %v3306
      %v3329 = vpack.c.bf16 %v3309, %v3308
      %v3330 = vpack.c.bf16 %v3311, %v3310
      %v3331 = vpack.c.bf16 %v3313, %v3312
      %v3332 = vpack.c.bf16 %v3315, %v3314
      %v3333 = vpack.c.bf16 %v3317, %v3316
      %v3334 = vld [vmem:[%s679] sm:$0xf]
      %v3335 = vld [vmem:[%s679 + $0x4] sm:$0xf]
      %v3336 = vld [vmem:[%s679 + $0x8] sm:$0xf]
      %v3337 = vld [vmem:[%s679 + $0xc] sm:$0xf]
      %v3338 = vld [vmem:[%s682] sm:$0x1]
      %v3340 = vlaneseq
      %v3341 = vshrl.u32 %v3340, 7
      %v3342 = vsub.s32 0, %v3341
      %v3343 = vrot.slane %v3338, %v3342
      %v3349 = vunpack.c.l.b16 %v3334
      %v3350 = vunpack.c.l.b16 %v3335
      %v3351 = vunpack.c.l.b16 %v3336
      %v3352 = vunpack.c.l.b16 %v3337
      %v3353 = vpack.c.b16 %v3350, %v3349
      %v3354 = vpack.c.b16 %v3352, %v3351
      %v3358 = vsel %vm2822, %v3318, 0
      %v3361 = vsel %vm2822, %v3319, 0
      %v3364 = vsel %vm2822, %v3320, 0
      %v3367 = vsel %vm2822, %v3321, 0
      %v3370 = vsel %vm2822, %v3322, 0
      %v3373 = vsel %vm2822, %v3323, 0
      %v3376 = vsel %vm2822, %v3324, 0
      %v3379 = vsel %vm2822, %v3325, 0
      %v3382 = vsel %vm2822, %v3326, 0
      %v3385 = vsel %vm2822, %v3327, 0
      %v3388 = vsel %vm2822, %v3328, 0
      %v3391 = vsel %vm2822, %v3329, 0
      %v3394 = vsel %vm2822, %v3330, 0
      %v3397 = vsel %vm2822, %v3331, 0
      %v3400 = vsel %vm2822, %v3332, 0
      %v3403 = vsel %vm2822, %v3333, 0
      %3405 = vmatprep.subr.bf16.mxu0 0
      %3406 = vmatpush1.bf16.msra.mxu0 %v3353
      %3407 = vmatprep.subr.bf16.mxu0 0
      %3408 = vmatpush1.bf16.msra.mxu0 %v3354
      %3409 = vmatprep.subr.bf16.mxu0 0
      %3410 = vmatpush1.bf16.msra.mxu0 0
      %3411 = vmatprep.subr.bf16.mxu0 0
      %3412 = vmatpush1.bf16.msra.mxu0 0
      %3413 = vmatprep.subr.bf16.mxu0 0
      %3414 = vmatpush1.bf16.msra.mxu0 0
      %3415 = vmatprep.subr.bf16.mxu0 0
      %3416 = vmatpush1.bf16.msra.mxu0 0
      %3417 = vmatprep.subr.bf16.mxu0 0
      %3418 = vmatpush1.bf16.msra.mxu0 0
      %3419 = vmatprep.subr.bf16.mxu0 0
      %3420 = vmatpush1.bf16.msra.mxu0 0
      %3421 = vmatprep.subr.bf16.mxu0 0
      %3422 = vmatpush1.bf16.msra.mxu0 0
      %3423 = vmatprep.subr.bf16.mxu0 0
      %3424 = vmatpush1.bf16.msra.mxu0 0
      %3425 = vmatprep.subr.bf16.mxu0 0
      %3426 = vmatpush1.bf16.msra.mxu0 0
      %3427 = vmatprep.subr.bf16.mxu0 0
      %3428 = vmatpush1.bf16.msra.mxu0 0
      %3429 = vmatprep.subr.bf16.mxu0 0
      %3430 = vmatpush1.bf16.msra.mxu0 0
      %3431 = vmatprep.subr.bf16.mxu0 0
      %3432 = vmatpush1.bf16.msra.mxu0 0
      %3433 = vmatprep.subr.bf16.mxu0 0
      %3434 = vmatpush1.bf16.msra.mxu0 0
      %3435 = vmatprep.subr.bf16.mxu0 0
      %3436 = vmatpush1.bf16.msra.mxu0 0
      %3437 = vmatprep.mubr.bf16.mxu0 0
      %3438 = vmatmul.mubr.bf16.gmra.mrb[0].mxu0 %v3358
      %v3439 = vpop.f32.mrb[0].mxu0
      %v3440 = vadd.f32 %v3343, %v3439
      %v3441 = vpop.f32.mrb[0].mxu0
      %v3442 = vpop.f32.mrb[0].mxu0
      %v3443 = vadd.f32 %v3343, %v3442
      %v3444 = vpop.f32.mrb[0].mxu0
      %3445 = vmatprep.mubr.bf16.mxu0 0
      %3446 = vmatmul.mubr.bf16.gmra.mrb[0].mxu0 %v3361
      %v3447 = vpop.f32.mrb[0].mxu0
      %v3448 = vadd.f32 %v3343, %v3447
      %v3449 = vpop.f32.mrb[0].mxu0
      %v3450 = vpop.f32.mrb[0].mxu0
      %v3451 = vadd.f32 %v3343, %v3450
      %v3452 = vpop.f32.mrb[0].mxu0
      %3453 = vmatprep.mubr.bf16.mxu0 0
      %3454 = vmatmul.mubr.bf16.gmra.mrb[0].mxu0 %v3364
      %v3455 = vpop.f32.mrb[0].mxu0
      %v3456 = vadd.f32 %v3343, %v3455
      %v3457 = vpop.f32.mrb[0].mxu0
      %v3458 = vpop.f32.mrb[0].mxu0
      %v3459 = vadd.f32 %v3343, %v3458
      %v3460 = vpop.f32.mrb[0].mxu0
      %3461 = vmatprep.mubr.bf16.mxu0 0
      %3462 = vmatmul.mubr.bf16.gmra.mrb[0].mxu0 %v3367
      %v3463 = vpop.f32.mrb[0].mxu0
      %v3464 = vadd.f32 %v3343, %v3463
      %v3465 = vpop.f32.mrb[0].mxu0
      %v3466 = vpop.f32.mrb[0].mxu0
      %v3467 = vadd.f32 %v3343, %v3466
      %v3468 = vpop.f32.mrb[0].mxu0
      %3469 = vmatprep.mubr.bf16.mxu0 0
      %3470 = vmatmul.mubr.bf16.gmra.mrb[0].mxu0 %v3370
      %v3471 = vpop.f32.mrb[0].mxu0
      %v3472 = vadd.f32 %v3343, %v3471
      %v3473 = vpop.f32.mrb[0].mxu0
      %v3474 = vpop.f32.mrb[0].mxu0
      %v3475 = vadd.f32 %v3343, %v3474
      %v3476 = vpop.f32.mrb[0].mxu0
      %3477 = vmatprep.mubr.bf16.mxu0 0
      %3478 = vmatmul.mubr.bf16.gmra.mrb[0].mxu0 %v3373
      %v3479 = vpop.f32.mrb[0].mxu0
      %v3480 = vadd.f32 %v3343, %v3479
      %v3481 = vpop.f32.mrb[0].mxu0
      %v3482 = vpop.f32.mrb[0].mxu0
      %v3483 = vadd.f32 %v3343, %v3482
      %v3484 = vpop.f32.mrb[0].mxu0
      %3485 = vmatprep.mubr.bf16.mxu0 0
      %3486 = vmatmul.mubr.bf16.gmra.mrb[0].mxu0 %v3376
      %v3487 = vpop.f32.mrb[0].mxu0
      %v3488 = vadd.f32 %v3343, %v3487
      %v3489 = vpop.f32.mrb[0].mxu0
      %v3490 = vpop.f32.mrb[0].mxu0
      %v3491 = vadd.f32 %v3343, %v3490
      %v3492 = vpop.f32.mrb[0].mxu0
      %3493 = vmatprep.mubr.bf16.mxu0 0
      %3494 = vmatmul.mubr.bf16.gmra.mrb[0].mxu0 %v3379
      %v3495 = vpop.f32.mrb[0].mxu0
      %v3496 = vadd.f32 %v3343, %v3495
      %v3497 = vpop.f32.mrb[0].mxu0
      %v3498 = vpop.f32.mrb[0].mxu0
      %v3499 = vadd.f32 %v3343, %v3498
      %v3500 = vpop.f32.mrb[0].mxu0
      %3501 = vmatprep.mubr.bf16.mxu0 0
      %3502 = vmatmul.mubr.bf16.gmra.mrb[0].mxu0 %v3382
      %v3503 = vpop.f32.mrb[0].mxu0
      %v3504 = vadd.f32 %v3343, %v3503
      %v3505 = vpop.f32.mrb[0].mxu0
      %v3506 = vpop.f32.mrb[0].mxu0
      %v3507 = vadd.f32 %v3343, %v3506
      %v3508 = vpop.f32.mrb[0].mxu0
      %3509 = vmatprep.mubr.bf16.mxu0 0
      %3510 = vmatmul.mubr.bf16.gmra.mrb[0].mxu0 %v3385
      %v3511 = vpop.f32.mrb[0].mxu0
      %v3512 = vadd.f32 %v3343, %v3511
      %v3513 = vpop.f32.mrb[0].mxu0
      %v3514 = vpop.f32.mrb[0].mxu0
      %v3515 = vadd.f32 %v3343, %v3514
      %v3516 = vpop.f32.mrb[0].mxu0
      %3517 = vmatprep.mubr.bf16.mxu0 0
      %3518 = vmatmul.mubr.bf16.gmra.mrb[0].mxu0 %v3388
      %v3519 = vpop.f32.mrb[0].mxu0
      %v3520 = vadd.f32 %v3343, %v3519
      %v3521 = vpop.f32.mrb[0].mxu0
      %v3522 = vpop.f32.mrb[0].mxu0
      %v3523 = vadd.f32 %v3343, %v3522
      %v3524 = vpop.f32.mrb[0].mxu0
      %3525 = vmatprep.mubr.bf16.mxu0 0
      %3526 = vmatmul.mubr.bf16.gmra.mrb[0].mxu0 %v3391
      %v3527 = vpop.f32.mrb[0].mxu0
      %v3528 = vadd.f32 %v3343, %v3527
      %v3529 = vpop.f32.mrb[0].mxu0
      %v3530 = vpop.f32.mrb[0].mxu0
      %v3531 = vadd.f32 %v3343, %v3530
      %v3532 = vpop.f32.mrb[0].mxu0
      %3533 = vmatprep.mubr.bf16.mxu0 0
      %3534 = vmatmul.mubr.bf16.gmra.mrb[0].mxu0 %v3394
      %v3535 = vpop.f32.mrb[0].mxu0
      %v3536 = vadd.f32 %v3343, %v3535
      %v3537 = vpop.f32.mrb[0].mxu0
      %v3538 = vpop.f32.mrb[0].mxu0
      %v3539 = vadd.f32 %v3343, %v3538
      %v3540 = vpop.f32.mrb[0].mxu0
      %3541 = vmatprep.mubr.bf16.mxu0 0
      %3542 = vmatmul.mubr.bf16.gmra.mrb[0].mxu0 %v3397
      %v3543 = vpop.f32.mrb[0].mxu0
      %v3544 = vadd.f32 %v3343, %v3543
      %v3545 = vpop.f32.mrb[0].mxu0
      %v3546 = vpop.f32.mrb[0].mxu0
      %v3547 = vadd.f32 %v3343, %v3546
      %v3548 = vpop.f32.mrb[0].mxu0
      %3549 = vmatprep.mubr.bf16.mxu0 0
      %3550 = vmatmul.mubr.bf16.gmra.mrb[0].mxu0 %v3400
      %v3551 = vpop.f32.mrb[0].mxu0
      %v3552 = vadd.f32 %v3343, %v3551
      %v3553 = vpop.f32.mrb[0].mxu0
      %v3554 = vpop.f32.mrb[0].mxu0
      %v3555 = vadd.f32 %v3343, %v3554
      %v3556 = vpop.f32.mrb[0].mxu0
      %3557 = vmatprep.mubr.bf16.mxu0 0
      %3558 = vmatmul.mubr.bf16.gmra.mrb[0].mxu0 %v3403
      %v3559 = vpop.f32.mrb[0].mxu0
      %v3560 = vadd.f32 %v3343, %v3559
      %v3561 = vpop.f32.mrb[0].mxu0
      %v3562 = vpop.f32.mrb[0].mxu0
      %v3563 = vadd.f32 %v3343, %v3562
      %v3564 = vpop.f32.mrb[0].mxu0
      %3565 = vdwg.mxu0
      %v3566 = vmax.f32 %v3440, 0.0
      %v3567 = vmax.f32 %v3443, 0.0
      %v3568 = vmax.f32 %v3448, 0.0
      %v3569 = vmax.f32 %v3451, 0.0
      %v3570 = vmax.f32 %v3456, 0.0
      %v3571 = vmax.f32 %v3459, 0.0
      %v3572 = vmax.f32 %v3464, 0.0
      %v3573 = vmax.f32 %v3467, 0.0
      %v3574 = vmax.f32 %v3472, 0.0
      %v3575 = vmax.f32 %v3475, 0.0
      %v3576 = vmax.f32 %v3480, 0.0
      %v3577 = vmax.f32 %v3483, 0.0
      %v3578 = vmax.f32 %v3488, 0.0
      %v3579 = vmax.f32 %v3491, 0.0
      %v3580 = vmax.f32 %v3496, 0.0
      %v3581 = vmax.f32 %v3499, 0.0
      %v3582 = vmax.f32 %v3504, 0.0
      %v3583 = vmax.f32 %v3507, 0.0
      %v3584 = vmax.f32 %v3512, 0.0
      %v3585 = vmax.f32 %v3515, 0.0
      %v3586 = vmax.f32 %v3520, 0.0
      %v3587 = vmax.f32 %v3523, 0.0
      %v3588 = vmax.f32 %v3528, 0.0
      %v3589 = vmax.f32 %v3531, 0.0
      %v3590 = vmax.f32 %v3536, 0.0
      %v3591 = vmax.f32 %v3539, 0.0
      %v3592 = vmax.f32 %v3544, 0.0
      %v3593 = vmax.f32 %v3547, 0.0
      %v3594 = vmax.f32 %v3552, 0.0
      %v3595 = vmax.f32 %v3555, 0.0
      %v3596 = vmax.f32 %v3560, 0.0
      %v3597 = vmax.f32 %v3563, 0.0
      %v3598 = vpack.c.bf16 %v3567, %v3566
      %v3599 = vpack.c.bf16 %v3569, %v3568
      %v3600 = vpack.c.bf16 %v3571, %v3570
      %v3601 = vpack.c.bf16 %v3573, %v3572
      %v3602 = vpack.c.bf16 %v3575, %v3574
      %v3603 = vpack.c.bf16 %v3577, %v3576
      %v3604 = vpack.c.bf16 %v3579, %v3578
      %v3605 = vpack.c.bf16 %v3581, %v3580
      %v3606 = vpack.c.bf16 %v3583, %v3582
      %v3607 = vpack.c.bf16 %v3585, %v3584
      %v3608 = vpack.c.bf16 %v3587, %v3586
      %v3609 = vpack.c.bf16 %v3589, %v3588
      %v3610 = vpack.c.bf16 %v3591, %v3590
      %v3611 = vpack.c.bf16 %v3593, %v3592
      %v3612 = vpack.c.bf16 %v3595, %v3594
      %v3613 = vpack.c.bf16 %v3597, %v3596
      %v3614 = vld [vmem:[%s687] sm:$0xf]
      %v3615 = vld [vmem:[%s687 + $0x4] sm:$0xf]
      %v3616 = vld [vmem:[%s687 + $0x8] sm:$0xf]
      %v3617 = vld [vmem:[%s687 + $0xc] sm:$0xf]
      %v3618 = vld [vmem:[%s687 + $0x10] sm:$0xf]
      %v3619 = vld [vmem:[%s687 + $0x14] sm:$0xf]
      %v3620 = vld [vmem:[%s687 + $0x18] sm:$0xf]
      %v3621 = vld [vmem:[%s687 + $0x1c] sm:$0xf]
      %v3622 = vld [vmem:[%s690] sm:$0x1]
      %v3624 = vlaneseq
      %v3625 = vshrl.u32 %v3624, 7
      %v3626 = vsub.s32 0, %v3625
      %v3627 = vrot.slane %v3622, %v3626
      %v3637 = vunpack.c.l.b16 %v3614
      %v3638 = vunpack.c.l.b16 %v3615
      %v3639 = vunpack.c.l.b16 %v3616
      %v3640 = vunpack.c.l.b16 %v3617
      %v3641 = vunpack.c.l.b16 %v3618
      %v3642 = vunpack.c.l.b16 %v3619
      %v3643 = vunpack.c.l.b16 %v3620
      %v3644 = vunpack.c.l.b16 %v3621
      %v3645 = vpack.c.b16 %v3638, %v3637
      %v3646 = vpack.c.b16 %v3640, %v3639
      %v3647 = vpack.c.b16 %v3642, %v3641
      %v3648 = vpack.c.b16 %v3644, %v3643
      %vm3653 = vcmask 523264
      %v3655 = vsel %vm3653, %v3598, 0
      %v3658 = vsel %vm3653, %v3599, 0
      %v3661 = vsel %vm3653, %v3600, 0
      %v3664 = vsel %vm3653, %v3601, 0
      %v3667 = vsel %vm3653, %v3602, 0
      %v3670 = vsel %vm3653, %v3603, 0
      %v3673 = vsel %vm3653, %v3604, 0
      %v3676 = vsel %vm3653, %v3605, 0
      %v3679 = vsel %vm3653, %v3606, 0
      %v3682 = vsel %vm3653, %v3607, 0
      %v3685 = vsel %vm3653, %v3608, 0
      %v3688 = vsel %vm3653, %v3609, 0
      %v3691 = vsel %vm3653, %v3610, 0
      %v3694 = vsel %vm3653, %v3611, 0
      %v3697 = vsel %vm3653, %v3612, 0
      %v3700 = vsel %vm3653, %v3613, 0
      %3702 = vmatprep.subr.bf16.mxu0 0
      %3703 = vmatpush1.bf16.msra.mxu0 %v3645
      %3704 = vmatprep.subr.bf16.mxu0 0
      %3705 = vmatpush1.bf16.msra.mxu0 %v3646
      %3706 = vmatprep.subr.bf16.mxu0 0
      %3707 = vmatpush1.bf16.msra.mxu0 %v3647
      %3708 = vmatprep.subr.bf16.mxu0 0
      %3709 = vmatpush1.bf16.msra.mxu0 %v3648
      %3710 = vmatprep.subr.bf16.mxu0 0
      %3711 = vmatpush1.bf16.msra.mxu0 0
      %3712 = vmatprep.subr.bf16.mxu0 0
      %3713 = vmatpush1.bf16.msra.mxu0 0
      %3714 = vmatprep.subr.bf16.mxu0 0
      %3715 = vmatpush1.bf16.msra.mxu0 0
      %3716 = vmatprep.subr.bf16.mxu0 0
      %3717 = vmatpush1.bf16.msra.mxu0 0
      %3718 = vmatprep.subr.bf16.mxu0 0
      %3719 = vmatpush1.bf16.msra.mxu0 0
      %3720 = vmatprep.subr.bf16.mxu0 0
      %3721 = vmatpush1.bf16.msra.mxu0 0
      %3722 = vmatprep.subr.bf16.mxu0 0
      %3723 = vmatpush1.bf16.msra.mxu0 0
      %3724 = vmatprep.subr.bf16.mxu0 0
      %3725 = vmatpush1.bf16.msra.mxu0 0
      %3726 = vmatprep.subr.bf16.mxu0 0
      %3727 = vmatpush1.bf16.msra.mxu0 0
      %3728 = vmatprep.subr.bf16.mxu0 0
      %3729 = vmatpush1.bf16.msra.mxu0 0
      %3730 = vmatprep.subr.bf16.mxu0 0
      %3731 = vmatpush1.bf16.msra.mxu0 0
      %3732 = vmatprep.subr.bf16.mxu0 0
      %3733 = vmatpush1.bf16.msra.mxu0 0
      %3734 = vmatprep.mubr.bf16.mxu0 0
      %3735 = vmatmul.mubr.bf16.gmra.mrb[0].mxu0 %v3655
      %v3736 = vpop.f32.mrb[0].mxu0
      %v3737 = vadd.f32 %v3627, %v3736
      %v3738 = vpop.f32.mrb[0].mxu0
      %v3739 = vpop.f32.mrb[0].mxu0
      %v3740 = vadd.f32 %v3627, %v3739
      %v3741 = vpop.f32.mrb[0].mxu0
      %3742 = vmatprep.mubr.bf16.mxu0 0
      %3743 = vmatmul.mubr.bf16.gmra.mrb[0].mxu0 %v3658
      %v3744 = vpop.f32.mrb[0].mxu0
      %v3745 = vadd.f32 %v3627, %v3744
      %v3746 = vpop.f32.mrb[0].mxu0
      %v3747 = vpop.f32.mrb[0].mxu0
      %v3748 = vadd.f32 %v3627, %v3747
      %v3749 = vpop.f32.mrb[0].mxu0
      %3750 = vmatprep.mubr.bf16.mxu0 0
      %3751 = vmatmul.mubr.bf16.gmra.mrb[0].mxu0 %v3661
      %v3752 = vpop.f32.mrb[0].mxu0
      %v3753 = vadd.f32 %v3627, %v3752
      %v3754 = vpop.f32.mrb[0].mxu0
      %v3755 = vpop.f32.mrb[0].mxu0
      %v3756 = vadd.f32 %v3627, %v3755
      %v3757 = vpop.f32.mrb[0].mxu0
      %3758 = vmatprep.mubr.bf16.mxu0 0
      %3759 = vmatmul.mubr.bf16.gmra.mrb[0].mxu0 %v3664
      %v3760 = vpop.f32.mrb[0].mxu0
      %v3761 = vadd.f32 %v3627, %v3760
      %v3762 = vpop.f32.mrb[0].mxu0
      %v3763 = vpop.f32.mrb[0].mxu0
      %v3764 = vadd.f32 %v3627, %v3763
      %v3765 = vpop.f32.mrb[0].mxu0
      %3766 = vmatprep.mubr.bf16.mxu0 0
      %3767 = vmatmul.mubr.bf16.gmra.mrb[0].mxu0 %v3667
      %v3768 = vpop.f32.mrb[0].mxu0
      %v3769 = vadd.f32 %v3627, %v3768
      %v3770 = vpop.f32.mrb[0].mxu0
      %v3771 = vpop.f32.mrb[0].mxu0
      %v3772 = vadd.f32 %v3627, %v3771
      %v3773 = vpop.f32.mrb[0].mxu0
      %3774 = vmatprep.mubr.bf16.mxu0 0
      %3775 = vmatmul.mubr.bf16.gmra.mrb[0].mxu0 %v3670
      %v3776 = vpop.f32.mrb[0].mxu0
      %v3777 = vadd.f32 %v3627, %v3776
      %v3778 = vpop.f32.mrb[0].mxu0
      %v3779 = vpop.f32.mrb[0].mxu0
      %v3780 = vadd.f32 %v3627, %v3779
      %v3781 = vpop.f32.mrb[0].mxu0
      %3782 = vmatprep.mubr.bf16.mxu0 0
      %3783 = vmatmul.mubr.bf16.gmra.mrb[0].mxu0 %v3673
      %v3784 = vpop.f32.mrb[0].mxu0
      %v3785 = vadd.f32 %v3627, %v3784
      %v3786 = vpop.f32.mrb[0].mxu0
      %v3787 = vpop.f32.mrb[0].mxu0
      %v3788 = vadd.f32 %v3627, %v3787
      %v3789 = vpop.f32.mrb[0].mxu0
      %3790 = vmatprep.mubr.bf16.mxu0 0
      %3791 = vmatmul.mubr.bf16.gmra.mrb[0].mxu0 %v3676
      %v3792 = vpop.f32.mrb[0].mxu0
      %v3793 = vadd.f32 %v3627, %v3792
      %v3794 = vpop.f32.mrb[0].mxu0
      %v3795 = vpop.f32.mrb[0].mxu0
      %v3796 = vadd.f32 %v3627, %v3795
      %v3797 = vpop.f32.mrb[0].mxu0
      %3798 = vmatprep.mubr.bf16.mxu0 0
      %3799 = vmatmul.mubr.bf16.gmra.mrb[0].mxu0 %v3679
      %v3800 = vpop.f32.mrb[0].mxu0
      %v3801 = vadd.f32 %v3627, %v3800
      %v3802 = vpop.f32.mrb[0].mxu0
      %v3803 = vpop.f32.mrb[0].mxu0
      %v3804 = vadd.f32 %v3627, %v3803
      %v3805 = vpop.f32.mrb[0].mxu0
      %3806 = vmatprep.mubr.bf16.mxu0 0
      %3807 = vmatmul.mubr.bf16.gmra.mrb[0].mxu0 %v3682
      %v3808 = vpop.f32.mrb[0].mxu0
      %v3809 = vadd.f32 %v3627, %v3808
      %v3810 = vpop.f32.mrb[0].mxu0
      %v3811 = vpop.f32.mrb[0].mxu0
      %v3812 = vadd.f32 %v3627, %v3811
      %v3813 = vpop.f32.mrb[0].mxu0
      %3814 = vmatprep.mubr.bf16.mxu0 0
      %3815 = vmatmul.mubr.bf16.gmra.mrb[0].mxu0 %v3685
      %v3816 = vpop.f32.mrb[0].mxu0
      %v3817 = vadd.f32 %v3627, %v3816
      %v3818 = vpop.f32.mrb[0].mxu0
      %v3819 = vpop.f32.mrb[0].mxu0
      %v3820 = vadd.f32 %v3627, %v3819
      %v3821 = vpop.f32.mrb[0].mxu0
      %3822 = vmatprep.mubr.bf16.mxu0 0
      %3823 = vmatmul.mubr.bf16.gmra.mrb[0].mxu0 %v3688
      %v3824 = vpop.f32.mrb[0].mxu0
      %v3825 = vadd.f32 %v3627, %v3824
      %v3826 = vpop.f32.mrb[0].mxu0
      %v3827 = vpop.f32.mrb[0].mxu0
      %v3828 = vadd.f32 %v3627, %v3827
      %v3829 = vpop.f32.mrb[0].mxu0
      %3830 = vmatprep.mubr.bf16.mxu0 0
      %3831 = vmatmul.mubr.bf16.gmra.mrb[0].mxu0 %v3691
      %v3832 = vpop.f32.mrb[0].mxu0
      %v3833 = vadd.f32 %v3627, %v3832
      %v3834 = vpop.f32.mrb[0].mxu0
      %v3835 = vpop.f32.mrb[0].mxu0
      %v3836 = vadd.f32 %v3627, %v3835
      %v3837 = vpop.f32.mrb[0].mxu0
      %3838 = vmatprep.mubr.bf16.mxu0 0
      %3839 = vmatmul.mubr.bf16.gmra.mrb[0].mxu0 %v3694
      %v3840 = vpop.f32.mrb[0].mxu0
      %v3841 = vadd.f32 %v3627, %v3840
      %v3842 = vpop.f32.mrb[0].mxu0
      %v3843 = vpop.f32.mrb[0].mxu0
      %v3844 = vadd.f32 %v3627, %v3843
      %v3845 = vpop.f32.mrb[0].mxu0
      %3846 = vmatprep.mubr.bf16.mxu0 0
      %3847 = vmatmul.mubr.bf16.gmra.mrb[0].mxu0 %v3697
      %v3848 = vpop.f32.mrb[0].mxu0
      %v3849 = vadd.f32 %v3627, %v3848
      %v3850 = vpop.f32.mrb[0].mxu0
      %v3851 = vpop.f32.mrb[0].mxu0
      %v3852 = vadd.f32 %v3627, %v3851
      %v3853 = vpop.f32.mrb[0].mxu0
      %3854 = vmatprep.mubr.bf16.mxu0 0
      %3855 = vmatmul.mubr.bf16.gmra.mrb[0].mxu0 %v3700
      %v3856 = vpop.f32.mrb[0].mxu0
      %v3857 = vadd.f32 %v3627, %v3856
      %v3858 = vpop.f32.mrb[0].mxu0
      %v3859 = vpop.f32.mrb[0].mxu0
      %v3860 = vadd.f32 %v3627, %v3859
      %v3861 = vpop.f32.mrb[0].mxu0
      %3862 = vdwg.mxu0
      %v3863 = vadd.f32 %v3286, %v3737
      %v3864 = vadd.f32 %v3287, %v3740
      %v3865 = vadd.f32 %v3288, %v3745
      %v3866 = vadd.f32 %v3289, %v3748
      %v3867 = vadd.f32 %v3290, %v3753
      %v3868 = vadd.f32 %v3291, %v3756
      %v3869 = vadd.f32 %v3292, %v3761
      %v3870 = vadd.f32 %v3293, %v3764
      %v3871 = vadd.f32 %v3294, %v3769
      %v3872 = vadd.f32 %v3295, %v3772
      %v3873 = vadd.f32 %v3296, %v3777
      %v3874 = vadd.f32 %v3297, %v3780
      %v3875 = vadd.f32 %v3298, %v3785
      %v3876 = vadd.f32 %v3299, %v3788
      %v3877 = vadd.f32 %v3300, %v3793
      %v3878 = vadd.f32 %v3301, %v3796
      %v3879 = vadd.f32 %v3302, %v3801
      %v3880 = vadd.f32 %v3303, %v3804
      %v3881 = vadd.f32 %v3304, %v3809
      %v3882 = vadd.f32 %v3305, %v3812
      %v3883 = vadd.f32 %v3306, %v3817
      %v3884 = vadd.f32 %v3307, %v3820
      %v3885 = vadd.f32 %v3308, %v3825
      %v3886 = vadd.f32 %v3309, %v3828
      %v3887 = vadd.f32 %v3310, %v3833
      %v3888 = vadd.f32 %v3311, %v3836
      %v3889 = vadd.f32 %v3312, %v3841
      %v3890 = vadd.f32 %v3313, %v3844
      %v3891 = vadd.f32 %v3314, %v3849
      %v3892 = vadd.f32 %v3315, %v3852
      %v3893 = vadd.f32 %v3316, %v3857
      %v3894 = vadd.f32 %v3317, %v3860
      %v3895 = vsel %vm2822, %v3863, 0.0
      %3896 = vadd.xlane.f32.xlu0 %v3895
      %v3897 = vpop.xlane.xlu0 %3896
      %v3898 = vsel %vm2822, %v3864, 0.0
      %3899 = vadd.xlane.f32.xlu0 %v3898
      %v3900 = vpop.xlane.xlu0 %3899
      %v3901 = vsel %vm2822, %v3865, 0.0
      %3902 = vadd.xlane.f32.xlu0 %v3901
      %v3903 = vpop.xlane.xlu0 %3902
      %v3904 = vsel %vm2822, %v3866, 0.0
      %3905 = vadd.xlane.f32.xlu0 %v3904
      %v3906 = vpop.xlane.xlu0 %3905
      %v3907 = vsel %vm2822, %v3867, 0.0
      %3908 = vadd.xlane.f32.xlu0 %v3907
      %v3909 = vpop.xlane.xlu0 %3908
      %v3910 = vsel %vm2822, %v3868, 0.0
      %3911 = vadd.xlane.f32.xlu0 %v3910
      %v3912 = vpop.xlane.xlu0 %3911
      %v3913 = vsel %vm2822, %v3869, 0.0
      %3914 = vadd.xlane.f32.xlu0 %v3913
      %v3915 = vpop.xlane.xlu0 %3914
      %v3916 = vsel %vm2822, %v3870, 0.0
      %3917 = vadd.xlane.f32.xlu0 %v3916
      %v3918 = vpop.xlane.xlu0 %3917
      %v3919 = vsel %vm2822, %v3871, 0.0
      %3920 = vadd.xlane.f32.xlu0 %v3919
      %v3921 = vpop.xlane.xlu0 %3920
      %v3922 = vsel %vm2822, %v3872, 0.0
      %3923 = vadd.xlane.f32.xlu0 %v3922
      %v3924 = vpop.xlane.xlu0 %3923
      %v3925 = vsel %vm2822, %v3873, 0.0
      %3926 = vadd.xlane.f32.xlu0 %v3925
      %v3927 = vpop.xlane.xlu0 %3926
      %v3928 = vsel %vm2822, %v3874, 0.0
      %3929 = vadd.xlane.f32.xlu0 %v3928
      %v3930 = vpop.xlane.xlu0 %3929
      %v3931 = vsel %vm2822, %v3875, 0.0
      %3932 = vadd.xlane.f32.xlu0 %v3931
      %v3933 = vpop.xlane.xlu0 %3932
      %v3934 = vsel %vm2822, %v3876, 0.0
      %3935 = vadd.xlane.f32.xlu0 %v3934
      %v3936 = vpop.xlane.xlu0 %3935
      %v3937 = vsel %vm2822, %v3877, 0.0
      %3938 = vadd.xlane.f32.xlu0 %v3937
      %v3939 = vpop.xlane.xlu0 %3938
      %v3940 = vsel %vm2822, %v3878, 0.0
      %3941 = vadd.xlane.f32.xlu0 %v3940
      %v3942 = vpop.xlane.xlu0 %3941
      %v3943 = vsel %vm2822, %v3879, 0.0
      %3944 = vadd.xlane.f32.xlu0 %v3943
      %v3945 = vpop.xlane.xlu0 %3944
      %v3946 = vsel %vm2822, %v3880, 0.0
      %3947 = vadd.xlane.f32.xlu0 %v3946
      %v3948 = vpop.xlane.xlu0 %3947
      %v3949 = vsel %vm2822, %v3881, 0.0
      %3950 = vadd.xlane.f32.xlu0 %v3949
      %v3951 = vpop.xlane.xlu0 %3950
      %v3952 = vsel %vm2822, %v3882, 0.0
      %3953 = vadd.xlane.f32.xlu0 %v3952
      %v3954 = vpop.xlane.xlu0 %3953
      %v3955 = vsel %vm2822, %v3883, 0.0
      %3956 = vadd.xlane.f32.xlu0 %v3955
      %v3957 = vpop.xlane.xlu0 %3956
      %v3958 = vsel %vm2822, %v3884, 0.0
      %3959 = vadd.xlane.f32.xlu0 %v3958
      %v3960 = vpop.xlane.xlu0 %3959
      %v3961 = vsel %vm2822, %v3885, 0.0
      %3962 = vadd.xlane.f32.xlu0 %v3961
      %v3963 = vpop.xlane.xlu0 %3962
      %v3964 = vsel %vm2822, %v3886, 0.0
      %3965 = vadd.xlane.f32.xlu0 %v3964
      %v3966 = vpop.xlane.xlu0 %3965
      %v3967 = vsel %vm2822, %v3887, 0.0
      %3968 = vadd.xlane.f32.xlu0 %v3967
      %v3969 = vpop.xlane.xlu0 %3968
      %v3970 = vsel %vm2822, %v3888, 0.0
      %3971 = vadd.xlane.f32.xlu0 %v3970
      %v3972 = vpop.xlane.xlu0 %3971
      %v3973 = vsel %vm2822, %v3889, 0.0
      %3974 = vadd.xlane.f32.xlu0 %v3973
      %v3975 = vpop.xlane.xlu0 %3974
      %v3976 = vsel %vm2822, %v3890, 0.0
      %3977 = vadd.xlane.f32.xlu0 %v3976
      %v3978 = vpop.xlane.xlu0 %3977
      %v3979 = vsel %vm2822, %v3891, 0.0
      %3980 = vadd.xlane.f32.xlu0 %v3979
      %v3981 = vpop.xlane.xlu0 %3980
      %v3982 = vsel %vm2822, %v3892, 0.0
      %3983 = vadd.xlane.f32.xlu0 %v3982
      %v3984 = vpop.xlane.xlu0 %3983
      %v3985 = vsel %vm2822, %v3893, 0.0
      %3986 = vadd.xlane.f32.xlu0 %v3985
      %v3987 = vpop.xlane.xlu0 %3986
      %v3988 = vsel %vm2822, %v3894, 0.0
      %3989 = vadd.xlane.f32.xlu0 %v3988
      %v3990 = vpop.xlane.xlu0 %3989
      %v3991 = vmul.f32 %v3897, %v2919
      %v3992 = vmul.f32 %v3900, %v2919
      %v3993 = vmul.f32 %v3903, %v2919
      %v3994 = vmul.f32 %v3906, %v2919
      %v3995 = vmul.f32 %v3909, %v2919
      %v3996 = vmul.f32 %v3912, %v2919
      %v3997 = vmul.f32 %v3915, %v2919
      %v3998 = vmul.f32 %v3918, %v2919
      %v3999 = vmul.f32 %v3921, %v2919
      %v4000 = vmul.f32 %v3924, %v2919
      %v4001 = vmul.f32 %v3927, %v2919
      %v4002 = vmul.f32 %v3930, %v2919
      %v4003 = vmul.f32 %v3933, %v2919
      %v4004 = vmul.f32 %v3936, %v2919
      %v4005 = vmul.f32 %v3939, %v2919
      %v4006 = vmul.f32 %v3942, %v2919
      %v4007 = vmul.f32 %v3945, %v2919
      %v4008 = vmul.f32 %v3948, %v2919
      %v4009 = vmul.f32 %v3951, %v2919
      %v4010 = vmul.f32 %v3954, %v2919
      %v4011 = vmul.f32 %v3957, %v2919
      %v4012 = vmul.f32 %v3960, %v2919
      %v4013 = vmul.f32 %v3963, %v2919
      %v4014 = vmul.f32 %v3966, %v2919
      %v4015 = vmul.f32 %v3969, %v2919
      %v4016 = vmul.f32 %v3972, %v2919
      %v4017 = vmul.f32 %v3975, %v2919
      %v4018 = vmul.f32 %v3978, %v2919
      %v4019 = vmul.f32 %v3981, %v2919
      %v4020 = vmul.f32 %v3984, %v2919
      %v4021 = vmul.f32 %v3987, %v2919
      %v4022 = vmul.f32 %v3990, %v2919
      %v4023 = vsub.f32 %v3863, %v3991
      %v4024 = vsub.f32 %v3864, %v3992
      %v4025 = vsub.f32 %v3865, %v3993
      %v4026 = vsub.f32 %v3866, %v3994
      %v4027 = vsub.f32 %v3867, %v3995
      %v4028 = vsub.f32 %v3868, %v3996
      %v4029 = vsub.f32 %v3869, %v3997
      %v4030 = vsub.f32 %v3870, %v3998
      %v4031 = vsub.f32 %v3871, %v3999
      %v4032 = vsub.f32 %v3872, %v4000
      %v4033 = vsub.f32 %v3873, %v4001
      %v4034 = vsub.f32 %v3874, %v4002
      %v4035 = vsub.f32 %v3875, %v4003
      %v4036 = vsub.f32 %v3876, %v4004
      %v4037 = vsub.f32 %v3877, %v4005
      %v4038 = vsub.f32 %v3878, %v4006
      %v4039 = vsub.f32 %v3879, %v4007
      %v4040 = vsub.f32 %v3880, %v4008
      %v4041 = vsub.f32 %v3881, %v4009
      %v4042 = vsub.f32 %v3882, %v4010
      %v4043 = vsub.f32 %v3883, %v4011
      %v4044 = vsub.f32 %v3884, %v4012
      %v4045 = vsub.f32 %v3885, %v4013
      %v4046 = vsub.f32 %v3886, %v4014
      %v4047 = vsub.f32 %v3887, %v4015
      %v4048 = vsub.f32 %v3888, %v4016
      %v4049 = vsub.f32 %v3889, %v4017
      %v4050 = vsub.f32 %v3890, %v4018
      %v4051 = vsub.f32 %v3891, %v4019
      %v4052 = vsub.f32 %v3892, %v4020
      %v4053 = vsub.f32 %v3893, %v4021
      %v4054 = vsub.f32 %v3894, %v4022
      %v4055 = vmul.f32 %v4023, %v4023
      %v4056 = vmul.f32 %v4024, %v4024
      %v4057 = vmul.f32 %v4025, %v4025
      %v4058 = vmul.f32 %v4026, %v4026
      %v4059 = vmul.f32 %v4027, %v4027
      %v4060 = vmul.f32 %v4028, %v4028
      %v4061 = vmul.f32 %v4029, %v4029
      %v4062 = vmul.f32 %v4030, %v4030
      %v4063 = vmul.f32 %v4031, %v4031
      %v4064 = vmul.f32 %v4032, %v4032
      %v4065 = vmul.f32 %v4033, %v4033
      %v4066 = vmul.f32 %v4034, %v4034
      %v4067 = vmul.f32 %v4035, %v4035
      %v4068 = vmul.f32 %v4036, %v4036
      %v4069 = vmul.f32 %v4037, %v4037
      %v4070 = vmul.f32 %v4038, %v4038
      %v4071 = vmul.f32 %v4039, %v4039
      %v4072 = vmul.f32 %v4040, %v4040
      %v4073 = vmul.f32 %v4041, %v4041
      %v4074 = vmul.f32 %v4042, %v4042
      %v4075 = vmul.f32 %v4043, %v4043
      %v4076 = vmul.f32 %v4044, %v4044
      %v4077 = vmul.f32 %v4045, %v4045
      %v4078 = vmul.f32 %v4046, %v4046
      %v4079 = vmul.f32 %v4047, %v4047
      %v4080 = vmul.f32 %v4048, %v4048
      %v4081 = vmul.f32 %v4049, %v4049
      %v4082 = vmul.f32 %v4050, %v4050
      %v4083 = vmul.f32 %v4051, %v4051
      %v4084 = vmul.f32 %v4052, %v4052
      %v4085 = vmul.f32 %v4053, %v4053
      %v4086 = vmul.f32 %v4054, %v4054
      %v4087 = vsel %vm2822, %v4055, 0.0
      %4088 = vadd.xlane.f32.xlu0 %v4087
      %v4089 = vpop.xlane.xlu0 %4088
      %v4090 = vsel %vm2822, %v4056, 0.0
      %4091 = vadd.xlane.f32.xlu0 %v4090
      %v4092 = vpop.xlane.xlu0 %4091
      %v4093 = vsel %vm2822, %v4057, 0.0
      %4094 = vadd.xlane.f32.xlu0 %v4093
      %v4095 = vpop.xlane.xlu0 %4094
      %v4096 = vsel %vm2822, %v4058, 0.0
      %4097 = vadd.xlane.f32.xlu0 %v4096
      %v4098 = vpop.xlane.xlu0 %4097
      %v4099 = vsel %vm2822, %v4059, 0.0
      %4100 = vadd.xlane.f32.xlu0 %v4099
      %v4101 = vpop.xlane.xlu0 %4100
      %v4102 = vsel %vm2822, %v4060, 0.0
      %4103 = vadd.xlane.f32.xlu0 %v4102
      %v4104 = vpop.xlane.xlu0 %4103
      %v4105 = vsel %vm2822, %v4061, 0.0
      %4106 = vadd.xlane.f32.xlu0 %v4105
      %v4107 = vpop.xlane.xlu0 %4106
      %v4108 = vsel %vm2822, %v4062, 0.0
      %4109 = vadd.xlane.f32.xlu0 %v4108
      %v4110 = vpop.xlane.xlu0 %4109
      %v4111 = vsel %vm2822, %v4063, 0.0
      %4112 = vadd.xlane.f32.xlu0 %v4111
      %v4113 = vpop.xlane.xlu0 %4112
      %v4114 = vsel %vm2822, %v4064, 0.0
      %4115 = vadd.xlane.f32.xlu0 %v4114
      %v4116 = vpop.xlane.xlu0 %4115
      %v4117 = vsel %vm2822, %v4065, 0.0
      %4118 = vadd.xlane.f32.xlu0 %v4117
      %v4119 = vpop.xlane.xlu0 %4118
      %v4120 = vsel %vm2822, %v4066, 0.0
      %4121 = vadd.xlane.f32.xlu0 %v4120
      %v4122 = vpop.xlane.xlu0 %4121
      %v4123 = vsel %vm2822, %v4067, 0.0
      %4124 = vadd.xlane.f32.xlu0 %v4123
      %v4125 = vpop.xlane.xlu0 %4124
      %v4126 = vsel %vm2822, %v4068, 0.0
      %4127 = vadd.xlane.f32.xlu0 %v4126
      %v4128 = vpop.xlane.xlu0 %4127
      %v4129 = vsel %vm2822, %v4069, 0.0
      %4130 = vadd.xlane.f32.xlu0 %v4129
      %v4131 = vpop.xlane.xlu0 %4130
      %v4132 = vsel %vm2822, %v4070, 0.0
      %4133 = vadd.xlane.f32.xlu0 %v4132
      %v4134 = vpop.xlane.xlu0 %4133
      %v4135 = vsel %vm2822, %v4071, 0.0
      %4136 = vadd.xlane.f32.xlu0 %v4135
      %v4137 = vpop.xlane.xlu0 %4136
      %v4138 = vsel %vm2822, %v4072, 0.0
      %4139 = vadd.xlane.f32.xlu0 %v4138
      %v4140 = vpop.xlane.xlu0 %4139
      %v4141 = vsel %vm2822, %v4073, 0.0
      %4142 = vadd.xlane.f32.xlu0 %v4141
      %v4143 = vpop.xlane.xlu0 %4142
      %v4144 = vsel %vm2822, %v4074, 0.0
      %4145 = vadd.xlane.f32.xlu0 %v4144
      %v4146 = vpop.xlane.xlu0 %4145
      %v4147 = vsel %vm2822, %v4075, 0.0
      %4148 = vadd.xlane.f32.xlu0 %v4147
      %v4149 = vpop.xlane.xlu0 %4148
      %v4150 = vsel %vm2822, %v4076, 0.0
      %4151 = vadd.xlane.f32.xlu0 %v4150
      %v4152 = vpop.xlane.xlu0 %4151
      %v4153 = vsel %vm2822, %v4077, 0.0
      %4154 = vadd.xlane.f32.xlu0 %v4153
      %v4155 = vpop.xlane.xlu0 %4154
      %v4156 = vsel %vm2822, %v4078, 0.0
      %4157 = vadd.xlane.f32.xlu0 %v4156
      %v4158 = vpop.xlane.xlu0 %4157
      %v4159 = vsel %vm2822, %v4079, 0.0
      %4160 = vadd.xlane.f32.xlu0 %v4159
      %v4161 = vpop.xlane.xlu0 %4160
      %v4162 = vsel %vm2822, %v4080, 0.0
      %4163 = vadd.xlane.f32.xlu0 %v4162
      %v4164 = vpop.xlane.xlu0 %4163
      %v4165 = vsel %vm2822, %v4081, 0.0
      %4166 = vadd.xlane.f32.xlu0 %v4165
      %v4167 = vpop.xlane.xlu0 %4166
      %v4168 = vsel %vm2822, %v4082, 0.0
      %4169 = vadd.xlane.f32.xlu0 %v4168
      %v4170 = vpop.xlane.xlu0 %4169
      %v4171 = vsel %vm2822, %v4083, 0.0
      %4172 = vadd.xlane.f32.xlu0 %v4171
      %v4173 = vpop.xlane.xlu0 %4172
      %v4174 = vsel %vm2822, %v4084, 0.0
      %4175 = vadd.xlane.f32.xlu0 %v4174
      %v4176 = vpop.xlane.xlu0 %4175
      %v4177 = vsel %vm2822, %v4085, 0.0
      %4178 = vadd.xlane.f32.xlu0 %v4177
      %v4179 = vpop.xlane.xlu0 %4178
      %v4180 = vsel %vm2822, %v4086, 0.0
      %4181 = vadd.xlane.f32.xlu0 %v4180
      %v4182 = vpop.xlane.xlu0 %4181
      %v4183 = vmul.f32 %v4089, %v2919
      %v4184 = vmul.f32 %v4092, %v2919
      %v4185 = vmul.f32 %v4095, %v2919
      %v4186 = vmul.f32 %v4098, %v2919
      %v4187 = vmul.f32 %v4101, %v2919
      %v4188 = vmul.f32 %v4104, %v2919
      %v4189 = vmul.f32 %v4107, %v2919
      %v4190 = vmul.f32 %v4110, %v2919
      %v4191 = vmul.f32 %v4113, %v2919
      %v4192 = vmul.f32 %v4116, %v2919
      %v4193 = vmul.f32 %v4119, %v2919
      %v4194 = vmul.f32 %v4122, %v2919
      %v4195 = vmul.f32 %v4125, %v2919
      %v4196 = vmul.f32 %v4128, %v2919
      %v4197 = vmul.f32 %v4131, %v2919
      %v4198 = vmul.f32 %v4134, %v2919
      %v4199 = vmul.f32 %v4137, %v2919
      %v4200 = vmul.f32 %v4140, %v2919
      %v4201 = vmul.f32 %v4143, %v2919
      %v4202 = vmul.f32 %v4146, %v2919
      %v4203 = vmul.f32 %v4149, %v2919
      %v4204 = vmul.f32 %v4152, %v2919
      %v4205 = vmul.f32 %v4155, %v2919
      %v4206 = vmul.f32 %v4158, %v2919
      %v4207 = vmul.f32 %v4161, %v2919
      %v4208 = vmul.f32 %v4164, %v2919
      %v4209 = vmul.f32 %v4167, %v2919
      %v4210 = vmul.f32 %v4170, %v2919
      %v4211 = vmul.f32 %v4173, %v2919
      %v4212 = vmul.f32 %v4176, %v2919
      %v4213 = vmul.f32 %v4179, %v2919
      %v4214 = vmul.f32 %v4182, %v2919
      %v4215 = vadd.f32 %v4183, 1e-05
      %v4216 = vadd.f32 %v4184, 1e-05
      %v4217 = vadd.f32 %v4185, 1e-05
      %v4218 = vadd.f32 %v4186, 1e-05
      %v4219 = vadd.f32 %v4187, 1e-05
      %v4220 = vadd.f32 %v4188, 1e-05
      %v4221 = vadd.f32 %v4189, 1e-05
      %v4222 = vadd.f32 %v4190, 1e-05
      %v4223 = vadd.f32 %v4191, 1e-05
      %v4224 = vadd.f32 %v4192, 1e-05
      %v4225 = vadd.f32 %v4193, 1e-05
      %v4226 = vadd.f32 %v4194, 1e-05
      %v4227 = vadd.f32 %v4195, 1e-05
      %v4228 = vadd.f32 %v4196, 1e-05
      %v4229 = vadd.f32 %v4197, 1e-05
      %v4230 = vadd.f32 %v4198, 1e-05
      %v4231 = vadd.f32 %v4199, 1e-05
      %v4232 = vadd.f32 %v4200, 1e-05
      %v4233 = vadd.f32 %v4201, 1e-05
      %v4234 = vadd.f32 %v4202, 1e-05
      %v4235 = vadd.f32 %v4203, 1e-05
      %v4236 = vadd.f32 %v4204, 1e-05
      %v4237 = vadd.f32 %v4205, 1e-05
      %v4238 = vadd.f32 %v4206, 1e-05
      %v4239 = vadd.f32 %v4207, 1e-05
      %v4240 = vadd.f32 %v4208, 1e-05
      %v4241 = vadd.f32 %v4209, 1e-05
      %v4242 = vadd.f32 %v4210, 1e-05
      %v4243 = vadd.f32 %v4211, 1e-05
      %v4244 = vadd.f32 %v4212, 1e-05
      %v4245 = vadd.f32 %v4213, 1e-05
      %v4246 = vadd.f32 %v4214, 1e-05
      %v4247 = vrsqrt.pop %v4215
      %v4248 = vrsqrt.pop %v4216
      %v4249 = vrsqrt.pop %v4217
      %v4250 = vrsqrt.pop %v4218
      %v4251 = vrsqrt.pop %v4219
      %v4252 = vrsqrt.pop %v4220
      %v4253 = vrsqrt.pop %v4221
      %v4254 = vrsqrt.pop %v4222
      %v4255 = vrsqrt.pop %v4223
      %v4256 = vrsqrt.pop %v4224
      %v4257 = vrsqrt.pop %v4225
      %v4258 = vrsqrt.pop %v4226
      %v4259 = vrsqrt.pop %v4227
      %v4260 = vrsqrt.pop %v4228
      %v4261 = vrsqrt.pop %v4229
      %v4262 = vrsqrt.pop %v4230
      %v4263 = vrsqrt.pop %v4231
      %v4264 = vrsqrt.pop %v4232
      %v4265 = vrsqrt.pop %v4233
      %v4266 = vrsqrt.pop %v4234
      %v4267 = vrsqrt.pop %v4235
      %v4268 = vrsqrt.pop %v4236
      %v4269 = vrsqrt.pop %v4237
      %v4270 = vrsqrt.pop %v4238
      %v4271 = vrsqrt.pop %v4239
      %v4272 = vrsqrt.pop %v4240
      %v4273 = vrsqrt.pop %v4241
      %v4274 = vrsqrt.pop %v4242
      %v4275 = vrsqrt.pop %v4243
      %v4276 = vrsqrt.pop %v4244
      %v4277 = vrsqrt.pop %v4245
      %v4278 = vrsqrt.pop %v4246
      %v4279 = vmul.f32 %v4023, %v4247
      %v4280 = vmul.f32 %v4024, %v4248
      %v4281 = vmul.f32 %v4025, %v4249
      %v4282 = vmul.f32 %v4026, %v4250
      %v4283 = vmul.f32 %v4027, %v4251
      %v4284 = vmul.f32 %v4028, %v4252
      %v4285 = vmul.f32 %v4029, %v4253
      %v4286 = vmul.f32 %v4030, %v4254
      %v4287 = vmul.f32 %v4031, %v4255
      %v4288 = vmul.f32 %v4032, %v4256
      %v4289 = vmul.f32 %v4033, %v4257
      %v4290 = vmul.f32 %v4034, %v4258
      %v4291 = vmul.f32 %v4035, %v4259
      %v4292 = vmul.f32 %v4036, %v4260
      %v4293 = vmul.f32 %v4037, %v4261
      %v4294 = vmul.f32 %v4038, %v4262
      %v4295 = vmul.f32 %v4039, %v4263
      %v4296 = vmul.f32 %v4040, %v4264
      %v4297 = vmul.f32 %v4041, %v4265
      %v4298 = vmul.f32 %v4042, %v4266
      %v4299 = vmul.f32 %v4043, %v4267
      %v4300 = vmul.f32 %v4044, %v4268
      %v4301 = vmul.f32 %v4045, %v4269
      %v4302 = vmul.f32 %v4046, %v4270
      %v4303 = vmul.f32 %v4047, %v4271
      %v4304 = vmul.f32 %v4048, %v4272
      %v4305 = vmul.f32 %v4049, %v4273
      %v4306 = vmul.f32 %v4050, %v4274
      %v4307 = vmul.f32 %v4051, %v4275
      %v4308 = vmul.f32 %v4052, %v4276
      %v4309 = vmul.f32 %v4053, %v4277
      %v4310 = vmul.f32 %v4054, %v4278
      %v4311 = vld [vmem:[%s693] sm:$0x1]
      %v4313 = vlaneseq
      %v4314 = vshrl.u32 %v4313, 7
      %v4315 = vsub.s32 0, %v4314
      %v4316 = vrot.slane %v4311, %v4315
      %v4318 = vmul.f32 %v4279, %v4316
      %v4319 = vmul.f32 %v4280, %v4316
      %v4320 = vmul.f32 %v4281, %v4316
      %v4321 = vmul.f32 %v4282, %v4316
      %v4322 = vmul.f32 %v4283, %v4316
      %v4323 = vmul.f32 %v4284, %v4316
      %v4324 = vmul.f32 %v4285, %v4316
      %v4325 = vmul.f32 %v4286, %v4316
      %v4326 = vmul.f32 %v4287, %v4316
      %v4327 = vmul.f32 %v4288, %v4316
      %v4328 = vmul.f32 %v4289, %v4316
      %v4329 = vmul.f32 %v4290, %v4316
      %v4330 = vmul.f32 %v4291, %v4316
      %v4331 = vmul.f32 %v4292, %v4316
      %v4332 = vmul.f32 %v4293, %v4316
      %v4333 = vmul.f32 %v4294, %v4316
      %v4334 = vmul.f32 %v4295, %v4316
      %v4335 = vmul.f32 %v4296, %v4316
      %v4336 = vmul.f32 %v4297, %v4316
      %v4337 = vmul.f32 %v4298, %v4316
      %v4338 = vmul.f32 %v4299, %v4316
      %v4339 = vmul.f32 %v4300, %v4316
      %v4340 = vmul.f32 %v4301, %v4316
      %v4341 = vmul.f32 %v4302, %v4316
      %v4342 = vmul.f32 %v4303, %v4316
      %v4343 = vmul.f32 %v4304, %v4316
      %v4344 = vmul.f32 %v4305, %v4316
      %v4345 = vmul.f32 %v4306, %v4316
      %v4346 = vmul.f32 %v4307, %v4316
      %v4347 = vmul.f32 %v4308, %v4316
      %v4348 = vmul.f32 %v4309, %v4316
      %v4349 = vmul.f32 %v4310, %v4316
      %v4350 = vld [vmem:[%s696] sm:$0x1]
      %v4352 = vlaneseq
      %v4353 = vshrl.u32 %v4352, 7
      %v4354 = vsub.s32 0, %v4353
      %v4355 = vrot.slane %v4350, %v4354
      %v4357 = vadd.f32 %v4318, %v4355
      %v4358 = vadd.f32 %v4319, %v4355
      %v4359 = vadd.f32 %v4320, %v4355
      %v4360 = vadd.f32 %v4321, %v4355
      %v4361 = vadd.f32 %v4322, %v4355
      %v4362 = vadd.f32 %v4323, %v4355
      %v4363 = vadd.f32 %v4324, %v4355
      %v4364 = vadd.f32 %v4325, %v4355
      %v4365 = vadd.f32 %v4326, %v4355
      %v4366 = vadd.f32 %v4327, %v4355
      %v4367 = vadd.f32 %v4328, %v4355
      %v4368 = vadd.f32 %v4329, %v4355
      %v4369 = vadd.f32 %v4330, %v4355
      %v4370 = vadd.f32 %v4331, %v4355
      %v4371 = vadd.f32 %v4332, %v4355
      %v4372 = vadd.f32 %v4333, %v4355
      %v4373 = vadd.f32 %v4334, %v4355
      %v4374 = vadd.f32 %v4335, %v4355
      %v4375 = vadd.f32 %v4336, %v4355
      %v4376 = vadd.f32 %v4337, %v4355
      %v4377 = vadd.f32 %v4338, %v4355
      %v4378 = vadd.f32 %v4339, %v4355
      %v4379 = vadd.f32 %v4340, %v4355
      %v4380 = vadd.f32 %v4341, %v4355
      %v4381 = vadd.f32 %v4342, %v4355
      %v4382 = vadd.f32 %v4343, %v4355
      %v4383 = vadd.f32 %v4344, %v4355
      %v4384 = vadd.f32 %v4345, %v4355
      %v4385 = vadd.f32 %v4346, %v4355
      %v4386 = vadd.f32 %v4347, %v4355
      %v4387 = vadd.f32 %v4348, %v4355
      %v4388 = vadd.f32 %v4349, %v4355
      %4389 = vst.msk [vmem:[#allocation2] sm:$0xff] %vm2822, %v4357
      %4390 = vst.msk [vmem:[#allocation2 + $0x8] sm:$0xff] %vm2822, %v4358
      %4391 = vst.msk [vmem:[#allocation2 + $0x10] sm:$0xff] %vm2822, %v4359
      %4392 = vst.msk [vmem:[#allocation2 + $0x18] sm:$0xff] %vm2822, %v4360
      %4393 = vst.msk [vmem:[#allocation2 + $0x20] sm:$0xff] %vm2822, %v4361
      %4394 = vst.msk [vmem:[#allocation2 + $0x28] sm:$0xff] %vm2822, %v4362
      %4395 = vst.msk [vmem:[#allocation2 + $0x30] sm:$0xff] %vm2822, %v4363
      %4396 = vst.msk [vmem:[#allocation2 + $0x38] sm:$0xff] %vm2822, %v4364
      %4397 = vst.msk [vmem:[#allocation2 + $0x40] sm:$0xff] %vm2822, %v4365
      %4398 = vst.msk [vmem:[#allocation2 + $0x48] sm:$0xff] %vm2822, %v4366
      %4399 = vst.msk [vmem:[#allocation2 + $0x50] sm:$0xff] %vm2822, %v4367
      %4400 = vst.msk [vmem:[#allocation2 + $0x58] sm:$0xff] %vm2822, %v4368
      %4401 = vst.msk [vmem:[#allocation2 + $0x60] sm:$0xff] %vm2822, %v4369
      %4402 = vst.msk [vmem:[#allocation2 + $0x68] sm:$0xff] %vm2822, %v4370
      %4403 = vst.msk [vmem:[#allocation2 + $0x70] sm:$0xff] %vm2822, %v4371
      %4404 = vst.msk [vmem:[#allocation2 + $0x78] sm:$0xff] %vm2822, %v4372
      %4405 = vst.msk [vmem:[#allocation2 + $0x80] sm:$0xff] %vm2822, %v4373
      %4406 = vst.msk [vmem:[#allocation2 + $0x88] sm:$0xff] %vm2822, %v4374
      %4407 = vst.msk [vmem:[#allocation2 + $0x90] sm:$0xff] %vm2822, %v4375
      %4408 = vst.msk [vmem:[#allocation2 + $0x98] sm:$0xff] %vm2822, %v4376
      %4409 = vst.msk [vmem:[#allocation2 + $0xa0] sm:$0xff] %vm2822, %v4377
      %4410 = vst.msk [vmem:[#allocation2 + $0xa8] sm:$0xff] %vm2822, %v4378
      %4411 = vst.msk [vmem:[#allocation2 + $0xb0] sm:$0xff] %vm2822, %v4379
      %4412 = vst.msk [vmem:[#allocation2 + $0xb8] sm:$0xff] %vm2822, %v4380
      %4413 = vst.msk [vmem:[#allocation2 + $0xc0] sm:$0xff] %vm2822, %v4381
      %4414 = vst.msk [vmem:[#allocation2 + $0xc8] sm:$0xff] %vm2822, %v4382
      %4415 = vst.msk [vmem:[#allocation2 + $0xd0] sm:$0xff] %vm2822, %v4383
      %4416 = vst.msk [vmem:[#allocation2 + $0xd8] sm:$0xff] %vm2822, %v4384
      %4417 = vst.msk [vmem:[#allocation2 + $0xe0] sm:$0xff] %vm2822, %v4385
      %4418 = vst.msk [vmem:[#allocation2 + $0xe8] sm:$0xff] %vm2822, %v4386
      %4419 = vst.msk [vmem:[#allocation2 + $0xf0] sm:$0xff] %vm2822, %v4387
      %4420 = vst.msk [vmem:[#allocation2 + $0xf8] sm:$0xff] %vm2822, %v4388
      %p4421 = scmp.eq.s32.totalorder %s31, 1
      // Predicated region
      $region92: #{transformer_bridge_forward.1} parent=79 // pred_check
        %p4422 = pneg %p4421
      $region93: #{transformer_bridge_forward.1} parent=79 // pred_check_branch
        %4424 = sbr.rel (%p4422) target = $region95
      $region94: #{transformer_bridge_forward.1} parent=79 // pred_region
        %v4425 = vsel %vm2822, %v4357, 0.0
        %v4426 = vsel %vm2822, %v4358, 0.0
        %v4427 = vadd.f32 %v4425, %v4426
        %v4428 = vsel %vm2822, %v4359, 0.0
        %v4429 = vadd.f32 %v4427, %v4428
        %v4430 = vsel %vm2822, %v4360, 0.0
        %v4431 = vadd.f32 %v4429, %v4430
        %v4432 = vsel %vm2822, %v4361, 0.0
        %v4433 = vadd.f32 %v4431, %v4432
        %v4434 = vsel %vm2822, %v4362, 0.0
        %v4435 = vadd.f32 %v4433, %v4434
        %v4436 = vsel %vm2822, %v4363, 0.0
        %v4437 = vadd.f32 %v4435, %v4436
        %v4438 = vsel %vm2822, %v4364, 0.0
        %v4439 = vadd.f32 %v4437, %v4438
        %v4440 = vsel %vm2822, %v4365, 0.0
        %v4441 = vadd.f32 %v4439, %v4440
        %v4442 = vsel %vm2822, %v4366, 0.0
        %v4443 = vadd.f32 %v4441, %v4442
        %v4444 = vsel %vm2822, %v4367, 0.0
        %v4445 = vadd.f32 %v4443, %v4444
        %v4446 = vsel %vm2822, %v4368, 0.0
        %v4447 = vadd.f32 %v4445, %v4446
        %v4448 = vsel %vm2822, %v4369, 0.0
        %v4449 = vadd.f32 %v4447, %v4448
        %v4450 = vsel %vm2822, %v4370, 0.0
        %v4451 = vadd.f32 %v4449, %v4450
        %v4452 = vsel %vm2822, %v4371, 0.0
        %v4453 = vadd.f32 %v4451, %v4452
        %v4454 = vsel %vm2822, %v4372, 0.0
        %v4455 = vadd.f32 %v4453, %v4454
        %v4456 = vsel %vm2822, %v4373, 0.0
        %v4457 = vadd.f32 %v4455, %v4456
        %v4458 = vsel %vm2822, %v4374, 0.0
        %v4459 = vadd.f32 %v4457, %v4458
        %v4460 = vsel %vm2822, %v4375, 0.0
        %v4461 = vadd.f32 %v4459, %v4460
        %v4462 = vsel %vm2822, %v4376, 0.0
        %v4463 = vadd.f32 %v4461, %v4462
        %v4464 = vsel %vm2822, %v4377, 0.0
        %v4465 = vadd.f32 %v4463, %v4464
        %v4466 = vsel %vm2822, %v4378, 0.0
        %v4467 = vadd.f32 %v4465, %v4466
        %v4468 = vsel %vm2822, %v4379, 0.0
        %v4469 = vadd.f32 %v4467, %v4468
        %v4470 = vsel %vm2822, %v4380, 0.0
        %v4471 = vadd.f32 %v4469, %v4470
        %v4472 = vsel %vm2822, %v4381, 0.0
        %v4473 = vadd.f32 %v4471, %v4472
        %v4474 = vsel %vm2822, %v4382, 0.0
        %v4475 = vadd.f32 %v4473, %v4474
        %v4476 = vsel %vm2822, %v4383, 0.0
        %v4477 = vadd.f32 %v4475, %v4476
        %v4478 = vsel %vm2822, %v4384, 0.0
        %v4479 = vadd.f32 %v4477, %v4478
        %v4480 = vsel %vm2822, %v4385, 0.0
        %v4481 = vadd.f32 %v4479, %v4480
        %v4482 = vsel %vm2822, %v4386, 0.0
        %v4483 = vadd.f32 %v4481, %v4482
        %v4484 = vsel %vm2822, %v4387, 0.0
        %v4485 = vadd.f32 %v4483, %v4484
        %v4486 = vsel %vm2822, %v4388, 0.0
        %v4487 = vadd.f32 %v4485, %v4486
        %v4488 = vrot.slane %v4487, 4
        %v4489 = vadd.f32 %v4487, %v4488
        %v4490 = vrot.slane %v4489, 2
        %v4491 = vadd.f32 %v4489, %v4490
        %v4492 = vrot.slane %v4491, 1
        %v4493 = vadd.f32 %v4491, %v4492
        %v4494 = vrcp.pop 256.0
        %v4495 = vmul.f32 %v4493, %v4494
        %v4496 = vsub.f32 %v4357, %v4495
        %v4497 = vsub.f32 %v4358, %v4495
        %v4498 = vsub.f32 %v4359, %v4495
        %v4499 = vsub.f32 %v4360, %v4495
        %v4500 = vsub.f32 %v4361, %v4495
        %v4501 = vsub.f32 %v4362, %v4495
        %v4502 = vsub.f32 %v4363, %v4495
        %v4503 = vsub.f32 %v4364, %v4495
        %v4504 = vsub.f32 %v4365, %v4495
        %v4505 = vsub.f32 %v4366, %v4495
        %v4506 = vsub.f32 %v4367, %v4495
        %v4507 = vsub.f32 %v4368, %v4495
        %v4508 = vsub.f32 %v4369, %v4495
        %v4509 = vsub.f32 %v4370, %v4495
        %v4510 = vsub.f32 %v4371, %v4495
        %v4511 = vsub.f32 %v4372, %v4495
        %v4512 = vsub.f32 %v4373, %v4495
        %v4513 = vsub.f32 %v4374, %v4495
        %v4514 = vsub.f32 %v4375, %v4495
        %v4515 = vsub.f32 %v4376, %v4495
        %v4516 = vsub.f32 %v4377, %v4495
        %v4517 = vsub.f32 %v4378, %v4495
        %v4518 = vsub.f32 %v4379, %v4495
        %v4519 = vsub.f32 %v4380, %v4495
        %v4520 = vsub.f32 %v4381, %v4495
        %v4521 = vsub.f32 %v4382, %v4495
        %v4522 = vsub.f32 %v4383, %v4495
        %v4523 = vsub.f32 %v4384, %v4495
        %v4524 = vsub.f32 %v4385, %v4495
        %v4525 = vsub.f32 %v4386, %v4495
        %v4526 = vsub.f32 %v4387, %v4495
        %v4527 = vsub.f32 %v4388, %v4495
        %v4528 = vmul.f32 %v4496, %v4496
        %v4529 = vmul.f32 %v4497, %v4497
        %v4530 = vmul.f32 %v4498, %v4498
        %v4531 = vmul.f32 %v4499, %v4499
        %v4532 = vmul.f32 %v4500, %v4500
        %v4533 = vmul.f32 %v4501, %v4501
        %v4534 = vmul.f32 %v4502, %v4502
        %v4535 = vmul.f32 %v4503, %v4503
        %v4536 = vmul.f32 %v4504, %v4504
        %v4537 = vmul.f32 %v4505, %v4505
        %v4538 = vmul.f32 %v4506, %v4506
        %v4539 = vmul.f32 %v4507, %v4507
        %v4540 = vmul.f32 %v4508, %v4508
        %v4541 = vmul.f32 %v4509, %v4509
        %v4542 = vmul.f32 %v4510, %v4510
        %v4543 = vmul.f32 %v4511, %v4511
        %v4544 = vmul.f32 %v4512, %v4512
        %v4545 = vmul.f32 %v4513, %v4513
        %v4546 = vmul.f32 %v4514, %v4514
        %v4547 = vmul.f32 %v4515, %v4515
        %v4548 = vmul.f32 %v4516, %v4516
        %v4549 = vmul.f32 %v4517, %v4517
        %v4550 = vmul.f32 %v4518, %v4518
        %v4551 = vmul.f32 %v4519, %v4519
        %v4552 = vmul.f32 %v4520, %v4520
        %v4553 = vmul.f32 %v4521, %v4521
        %v4554 = vmul.f32 %v4522, %v4522
        %v4555 = vmul.f32 %v4523, %v4523
        %v4556 = vmul.f32 %v4524, %v4524
        %v4557 = vmul.f32 %v4525, %v4525
        %v4558 = vmul.f32 %v4526, %v4526
        %v4559 = vmul.f32 %v4527, %v4527
        %v4560 = vsel %vm2822, %v4528, 0.0
        %v4561 = vsel %vm2822, %v4529, 0.0
        %v4562 = vadd.f32 %v4560, %v4561
        %v4563 = vsel %vm2822, %v4530, 0.0
        %v4564 = vadd.f32 %v4562, %v4563
        %v4565 = vsel %vm2822, %v4531, 0.0
        %v4566 = vadd.f32 %v4564, %v4565
        %v4567 = vsel %vm2822, %v4532, 0.0
        %v4568 = vadd.f32 %v4566, %v4567
        %v4569 = vsel %vm2822, %v4533, 0.0
        %v4570 = vadd.f32 %v4568, %v4569
        %v4571 = vsel %vm2822, %v4534, 0.0
        %v4572 = vadd.f32 %v4570, %v4571
        %v4573 = vsel %vm2822, %v4535, 0.0
        %v4574 = vadd.f32 %v4572, %v4573
        %v4575 = vsel %vm2822, %v4536, 0.0
        %v4576 = vadd.f32 %v4574, %v4575
        %v4577 = vsel %vm2822, %v4537, 0.0
        %v4578 = vadd.f32 %v4576, %v4577
        %v4579 = vsel %vm2822, %v4538, 0.0
        %v4580 = vadd.f32 %v4578, %v4579
        %v4581 = vsel %vm2822, %v4539, 0.0
        %v4582 = vadd.f32 %v4580, %v4581
        %v4583 = vsel %vm2822, %v4540, 0.0
        %v4584 = vadd.f32 %v4582, %v4583
        %v4585 = vsel %vm2822, %v4541, 0.0
        %v4586 = vadd.f32 %v4584, %v4585
        %v4587 = vsel %vm2822, %v4542, 0.0
        %v4588 = vadd.f32 %v4586, %v4587
        %v4589 = vsel %vm2822, %v4543, 0.0
        %v4590 = vadd.f32 %v4588, %v4589
        %v4591 = vsel %vm2822, %v4544, 0.0
        %v4592 = vadd.f32 %v4590, %v4591
        %v4593 = vsel %vm2822, %v4545, 0.0
        %v4594 = vadd.f32 %v4592, %v4593
        %v4595 = vsel %vm2822, %v4546, 0.0
        %v4596 = vadd.f32 %v4594, %v4595
        %v4597 = vsel %vm2822, %v4547, 0.0
        %v4598 = vadd.f32 %v4596, %v4597
        %v4599 = vsel %vm2822, %v4548, 0.0
        %v4600 = vadd.f32 %v4598, %v4599
        %v4601 = vsel %vm2822, %v4549, 0.0
        %v4602 = vadd.f32 %v4600, %v4601
        %v4603 = vsel %vm2822, %v4550, 0.0
        %v4604 = vadd.f32 %v4602, %v4603
        %v4605 = vsel %vm2822, %v4551, 0.0
        %v4606 = vadd.f32 %v4604, %v4605
        %v4607 = vsel %vm2822, %v4552, 0.0
        %v4608 = vadd.f32 %v4606, %v4607
        %v4609 = vsel %vm2822, %v4553, 0.0
        %v4610 = vadd.f32 %v4608, %v4609
        %v4611 = vsel %vm2822, %v4554, 0.0
        %v4612 = vadd.f32 %v4610, %v4611
        %v4613 = vsel %vm2822, %v4555, 0.0
        %v4614 = vadd.f32 %v4612, %v4613
        %v4615 = vsel %vm2822, %v4556, 0.0
        %v4616 = vadd.f32 %v4614, %v4615
        %v4617 = vsel %vm2822, %v4557, 0.0
        %v4618 = vadd.f32 %v4616, %v4617
        %v4619 = vsel %vm2822, %v4558, 0.0
        %v4620 = vadd.f32 %v4618, %v4619
        %v4621 = vsel %vm2822, %v4559, 0.0
        %v4622 = vadd.f32 %v4620, %v4621
        %v4623 = vrot.slane %v4622, 4
        %v4624 = vadd.f32 %v4622, %v4623
        %v4625 = vrot.slane %v4624, 2
        %v4626 = vadd.f32 %v4624, %v4625
        %v4627 = vrot.slane %v4626, 1
        %v4628 = vadd.f32 %v4626, %v4627
        %v4629 = vmul.f32 %v4628, %v4494
        %v4630 = vadd.f32 %v4629, 1e-05
        %v4631 = vrsqrt.pop %v4630
        %v4632 = vmul.f32 %v4496, %v4631
        %v4633 = vmul.f32 %v4497, %v4631
        %v4634 = vmul.f32 %v4498, %v4631
        %v4635 = vmul.f32 %v4499, %v4631
        %v4636 = vmul.f32 %v4500, %v4631
        %v4637 = vmul.f32 %v4501, %v4631
        %v4638 = vmul.f32 %v4502, %v4631
        %v4639 = vmul.f32 %v4503, %v4631
        %v4640 = vmul.f32 %v4504, %v4631
        %v4641 = vmul.f32 %v4505, %v4631
        %v4642 = vmul.f32 %v4506, %v4631
        %v4643 = vmul.f32 %v4507, %v4631
        %v4644 = vmul.f32 %v4508, %v4631
        %v4645 = vmul.f32 %v4509, %v4631
        %v4646 = vmul.f32 %v4510, %v4631
        %v4647 = vmul.f32 %v4511, %v4631
        %v4648 = vmul.f32 %v4512, %v4631
        %v4649 = vmul.f32 %v4513, %v4631
        %v4650 = vmul.f32 %v4514, %v4631
        %v4651 = vmul.f32 %v4515, %v4631
        %v4652 = vmul.f32 %v4516, %v4631
        %v4653 = vmul.f32 %v4517, %v4631
        %v4654 = vmul.f32 %v4518, %v4631
        %v4655 = vmul.f32 %v4519, %v4631
        %v4656 = vmul.f32 %v4520, %v4631
        %v4657 = vmul.f32 %v4521, %v4631
        %v4658 = vmul.f32 %v4522, %v4631
        %v4659 = vmul.f32 %v4523, %v4631
        %v4660 = vmul.f32 %v4524, %v4631
        %v4661 = vmul.f32 %v4525, %v4631
        %v4662 = vmul.f32 %v4526, %v4631
        %v4663 = vmul.f32 %v4527, %v4631
        %4664 = vxpose.xlu0.b32.start [1/16] %v4632, 128
        %4665 = vxpose.xlu0.b32.cont [2/16] %v4633, 128
        %4666 = vxpose.xlu0.b32.cont [3/16] %v4634, 128
        %4667 = vxpose.xlu0.b32.cont [4/16] %v4635, 128
        %4668 = vxpose.xlu0.b32.cont [5/16] %v4636, 128
        %4669 = vxpose.xlu0.b32.cont [6/16] %v4637, 128
        %4670 = vxpose.xlu0.b32.cont [7/16] %v4638, 128
        %4671 = vxpose.xlu0.b32.cont [8/16] %v4639, 128
        %4672 = vxpose.xlu0.b32.cont [9/16] %v4640, 128
        %4673 = vxpose.xlu0.b32.cont [10/16] %v4641, 128
        %4674 = vxpose.xlu0.b32.cont [11/16] %v4642, 128
        %4675 = vxpose.xlu0.b32.cont [12/16] %v4643, 128
        %4676 = vxpose.xlu0.b32.cont [13/16] %v4644, 128
        %4677 = vxpose.xlu0.b32.cont [14/16] %v4645, 128
        %4678 = vxpose.xlu0.b32.cont [15/16] %v4646, 128
        %4679 = vxpose.xlu0.b32.end [16/16] %v4647, 128
        %v4680 = vpop.trf.xlu0
        %v4681 = vpop.trf.xlu0
        %v4682 = vpop.trf.xlu0
        %v4683 = vpop.trf.xlu0
        %v4684 = vpop.trf.xlu0
        %v4685 = vpop.trf.xlu0
        %v4686 = vpop.trf.xlu0
        %v4687 = vpop.trf.xlu0
        %v4688 = vpop.trf.xlu0
        %v4689 = vpop.trf.xlu0
        %v4690 = vpop.trf.xlu0
        %v4691 = vpop.trf.xlu0
        %v4692 = vpop.trf.xlu0
        %v4693 = vpop.trf.xlu0
        %v4694 = vpop.trf.xlu0
        %v4695 = vpop.trf.xlu0
        %4696 = vxpose.xlu0.b32.start [1/16] %v4648, 128
        %4697 = vxpose.xlu0.b32.cont [2/16] %v4649, 128
        %4698 = vxpose.xlu0.b32.cont [3/16] %v4650, 128
        %4699 = vxpose.xlu0.b32.cont [4/16] %v4651, 128
        %4700 = vxpose.xlu0.b32.cont [5/16] %v4652, 128
        %4701 = vxpose.xlu0.b32.cont [6/16] %v4653, 128
        %4702 = vxpose.xlu0.b32.cont [7/16] %v4654, 128
        %4703 = vxpose.xlu0.b32.cont [8/16] %v4655, 128
        %4704 = vxpose.xlu0.b32.cont [9/16] %v4656, 128
        %4705 = vxpose.xlu0.b32.cont [10/16] %v4657, 128
        %4706 = vxpose.xlu0.b32.cont [11/16] %v4658, 128
        %4707 = vxpose.xlu0.b32.cont [12/16] %v4659, 128
        %4708 = vxpose.xlu0.b32.cont [13/16] %v4660, 128
        %4709 = vxpose.xlu0.b32.cont [14/16] %v4661, 128
        %4710 = vxpose.xlu0.b32.cont [15/16] %v4662, 128
        %4711 = vxpose.xlu0.b32.end [16/16] %v4663, 128
        %v4712 = vpop.trf.xlu0
        %v4713 = vpop.trf.xlu0
        %v4714 = vpop.trf.xlu0
        %v4715 = vpop.trf.xlu0
        %v4716 = vpop.trf.xlu0
        %v4717 = vpop.trf.xlu0
        %v4718 = vpop.trf.xlu0
        %v4719 = vpop.trf.xlu0
        %v4720 = vpop.trf.xlu0
        %v4721 = vpop.trf.xlu0
        %v4722 = vpop.trf.xlu0
        %v4723 = vpop.trf.xlu0
        %v4724 = vpop.trf.xlu0
        %v4725 = vpop.trf.xlu0
        %v4726 = vpop.trf.xlu0
        %v4727 = vpop.trf.xlu0
        %4728 = vst [vmem:[%s701] sm:$0xff] %v4680
        %4729 = vst [vmem:[%s701 + $0x8] sm:$0xff] %v4712
        %4730 = vst [vmem:[%s701 + $0x10] sm:$0xff] %v4681
        %4731 = vst [vmem:[%s701 + $0x18] sm:$0xff] %v4713
        %4732 = vst [vmem:[%s701 + $0x20] sm:$0xff] %v4682
        %4733 = vst [vmem:[%s701 + $0x28] sm:$0xff] %v4714
        %4734 = vst [vmem:[%s701 + $0x30] sm:$0xff] %v4683
        %4735 = vst [vmem:[%s701 + $0x38] sm:$0xff] %v4715
      $region95: #{transformer_bridge_forward.1} parent=79 // pred_fallthru
        _
      %p4736 = scmp.lt.s32.totalorder %s30, 1
      %s4737 = scalar_select %p4736, %s30, 1
      %s4738 = smul.addr %s4737, 8
      %s4739 = smul.addr %s4738, 8
      %s4740 = scalar_lea.vmem %s15, %s4739
      // Predicated region
      $region96: #{transformer_bridge_forward.1} parent=79 // pred_check
        %p4741 = pneg %p436
      $region97: #{transformer_bridge_forward.1} parent=79 // pred_check_branch
        %4743 = sbr.rel (%p4741) target = $region99
      $region98: #{transformer_bridge_forward.1} parent=79 // pred_region
        _
      $region99: #{transformer_bridge_forward.1} parent=79 // pred_fallthru
        _
    $region80: #{transformer_bridge_forward.1} parent=5 // pred_fallthru
      _
    %p4744 = scmp.le.s32.totalorder 2, %s21
    // Predicated region
    $region100: #{transformer_bridge_forward.1} parent=5 // pred_check
      %p4745 = pneg %p4744
    $region101: #{transformer_bridge_forward.1} parent=5 // pred_check_branch
      %4747 = sbr.rel (%p4745) target = $region103
    $region102: #{transformer_bridge_forward.1} parent=5 // pred_region
      %s4748 = ssub.s32 %s21, 2
      // Predicated region
      $region104: #{transformer_bridge_forward.1} parent=102 // pred_check
        %p4749 = pneg %p442
      $region105: #{transformer_bridge_forward.1} parent=102 // pred_check_branch
        %4751 = sbr.rel (%p4749) target = $region107
      $region106: #{transformer_bridge_forward.1} parent=102 // pred_region
        %p4752 = scmp.lt.s32.totalorder %s32, 1
        %s4753 = scalar_select %p4752, %s32, 1
        %s4754 = smul.addr %s4753, 8
        %s4755 = smul.addr %s4754, 8
        %s4756 = scalar_lea.vmem %s15, %s4755
      $region107: #{transformer_bridge_forward.1} parent=102 // pred_fallthru
        _
    $region103: #{transformer_bridge_forward.1} parent=5 // pred_fallthru
      _
  $region6: #{transformer_bridge_forward.1} parent=0 // loop_footer
    %s25 = sadd.s32 1, %s21
  $region7: #{transformer_bridge_forward.1} parent=0 // loop_footer_branch
    %20 = sbr.rel target = $region3
  $region8: #{transformer_bridge_forward.1} parent=0 // loop_exit
    _

</llo_original>
